<compile_context>
chip_gen: v5e
topology: v5e:2x2
jax: 0.10.0
libtpu: 0.0.40
codegen_flags: <defaults>
</compile_context>

<pallas_src>
import functools
import math

import jax
import jax.numpy as jnp
from jax.experimental import pallas as pl
from jax.experimental.pallas import tpu as pltpu


# ----------------------------------------------------------------------------
# Geometry helpers (padded channel-major layout)
# ----------------------------------------------------------------------------
def make_geom(N, H, W):
    """Geometry of the padded channel-major layout for an (N, H, W) map.

    Activations are stored as (C, Mext): the lane axis enumerates (n, y, x)
    over the zero-padded (Hp, Wp) image, plus `ext = Wp + 1` extra zero lanes
    on each side so every 3x3 tap becomes a non-negative static lane offset.
    """
    Hp, Wp = H + 2, W + 2
    Mp = N * Hp * Wp
    ext = Wp + 1
    Mext = Mp + 2 * ext
    offsets = tuple(dy * Wp + dx for dy in range(3) for dx in range(3))
    # interior (real-pixel) mask over the ext-width lane axis
    q = jnp.arange(Mext) - ext
    valid = (q >= 0) & (q < Mp)
    r = jnp.where(valid, q, 0) % (Hp * Wp)
    yy = r // Wp
    xx = r % Wp
    interior = valid & (yy >= 1) & (yy <= H) & (xx >= 1) & (xx <= W)
    mask_ext = interior.astype(jnp.float32).reshape(1, Mext)
    return dict(N=N, H=H, W=W, Hp=Hp, Wp=Wp, Mp=Mp, ext=ext, Mext=Mext,
                offsets=offsets, mask_ext=mask_ext)


def cmajor_to_ext(x_cnhw, geom):
    """(C, N, H, W) -> (C, Mext) bf16 padded channel-major layout."""
    C = x_cnhw.shape[0]
    xp = jnp.pad(x_cnhw, ((0, 0), (0, 0), (1, 1), (1, 1)))
    xf = xp.reshape(C, geom["Mp"])
    return jnp.pad(xf, ((0, 0), (geom["ext"], geom["ext"]))).astype(jnp.bfloat16)


def padflat_to_cmajor(x_flat, geom, C):
    """(C, Mp) padded-flat -> compact (C, N, H, W)."""
    N, H, W, Hp, Wp = geom["N"], geom["H"], geom["W"], geom["Hp"], geom["Wp"]
    return x_flat.reshape(C, N, Hp, Wp)[:, :, 1:1 + H, 1:1 + W]


def fold_bn(gamma, beta, mean, var, eps=1e-5):
    scale = gamma / jnp.sqrt(var + eps)
    shift = beta - mean * scale
    return scale, shift


# ----------------------------------------------------------------------------
# Pallas kernels
# ----------------------------------------------------------------------------
def make_res_block_kernel(Mp, ext, offsets, has_proj, has_in_affine):
    """Fused ResConvBlock kernel on the padded channel-major layout."""

    def kernel(*refs):
        y_scr = refs[-1]          # (Cout, Mext) bf16 VMEM scratch: conv1 out
        o_ref = refs[-2]          # (Cout, Mp) output (padded-flat, zero ring)
        it = iter(refs[:-2])
        x_ref = next(it)          # (Cin, Mext) bf16 input
        mask_ref = next(it)       # (1, Mext) f32 interior mask
        w1_ref = next(it)         # (9, Cout, Cin) bf16 conv1 taps
        w2_ref = next(it)         # (9, Cout, Cout) bf16 conv2 taps
        s1_ref = next(it)         # (Cout, 1) f32 bn1 scale
        t1_ref = next(it)         # (Cout, 1) f32 bn1 shift (+ conv1 bias)
        s2_ref = next(it)         # (Cout, 1) f32 bn2 scale
        t2_ref = next(it)         # (Cout, 1) f32 bn2 shift (+ conv2/res bias)
        s0_ref = t0_ref = wr_ref = None
        if has_in_affine:
            s0_ref = next(it)     # (Cin, 1) f32   folded entry BatchNorm
            t0_ref = next(it)
        if has_proj:
            wr_ref = next(it)     # (Cout, Cin) bf16  1x1 residual projection

        f32 = jnp.float32
        mask_ext = mask_ref[...]
        mask_c = mask_ext[:, ext:ext + Mp]

        x_ext = x_ref[...]
        if has_in_affine:
            # entry BatchNorm, applied in-VMEM; mask keeps the zero padding
            xb = (x_ext.astype(f32) * s0_ref[...] + t0_ref[...]) * mask_ext
            x_ext = xb.astype(x_ref.dtype)

        # conv1: nine shifted-tap MXU dots with f32 accumulation
        acc1 = None
        for t, d in enumerate(offsets):
            part = jnp.dot(w1_ref[t], x_ext[:, d:d + Mp],
                           preferred_element_type=f32)
            acc1 = part if acc1 is None else acc1 + part
        # bn1 (conv1 bias folded into t1) + relu1, re-zero the padding ring
        y1 = jnp.maximum(acc1 * s1_ref[...] + t1_ref[...], 0.0) * mask_c

        # stage conv1 output (with zero halo) in VMEM for conv2's taps
        y_scr[...] = jnp.zeros(y_scr.shape, y_scr.dtype)
        y_scr[:, ext:ext + Mp] = y1.astype(y_scr.dtype)

        # conv2
        acc2 = None
        for t, d in enumerate(offsets):
            part = jnp.dot(w2_ref[t], y_scr[:, d:d + Mp],
                           preferred_element_type=f32)
            acc2 = part if acc2 is None else acc2 + part

        # residual: 1x1 projection or identity (no zero tensor is ever read)
        xc = x_ext[:, ext:ext + Mp]
        if has_proj:
            res = jnp.dot(wr_ref[...], xc, preferred_element_type=f32)
        else:
            res = xc.astype(f32)

        out = jnp.maximum(acc2 * s2_ref[...] + t2_ref[...] + res, 0.0) * mask_c
        o_ref[...] = out.astype(o_ref.dtype)

    return kernel


def _avg_pool_kernel(inv_p, x_ref, o_ref):
    """x: (ph*pw, C, M2) window slabs -> mean over the window axis."""
    o_ref[...] = (jnp.sum(x_ref[...].astype(jnp.float32), axis=0)
                  * inv_p).astype(o_ref.dtype)


# ----------------------------------------------------------------------------
# Pallas wrappers
# ----------------------------------------------------------------------------
def res_conv_block(x_ext, geom, p, in_affine=None):
    """One ResConvBlock as a single fused pallas_call.

    x_ext: (Cin, Mext) bf16 padded channel-major activation.
    Returns (Cout, Mp) bf16 padded-flat activation (zeroed padding ring).
    """
    Cout, Cin = p["w1"].shape[:2]
    has_proj = "wr" in p
    has_aff = in_affine is not None
    bf16 = jnp.bfloat16

    def conv3x3_taps(w):  # (Cout, Cin, 3, 3) -> (9, Cout, Cin), tap = dy*3+dx
        co, ci = w.shape[:2]
        return jnp.transpose(w, (2, 3, 0, 1)).reshape(9, co, ci).astype(bf16)

    s1, t1 = fold_bn(*p["bn1"])
    t1 = s1 * p["b1"] + t1                       # fold conv1 bias
    s2, t2 = fold_bn(*p["bn2"])
    t2 = s2 * p["b2"] + t2                       # fold conv2 bias
    if has_proj:
        t2 = t2 + p["br"]                        # fold 1x1 residual bias

    args = [x_ext, geom["mask_ext"],
            conv3x3_taps(p["w1"]), conv3x3_taps(p["w2"]),
            s1.reshape(Cout, 1), t1.reshape(Cout, 1),
            s2.reshape(Cout, 1), t2.reshape(Cout, 1)]
    if has_aff:
        s0, t0 = in_affine
        args += [s0.reshape(Cin, 1), t0.reshape(Cin, 1)]
    if has_proj:
        args += [p["wr"].reshape(Cout, Cin).astype(bf16)]

    kernel = make_res_block_kernel(geom["Mp"], geom["ext"], geom["offsets"],
                                   has_proj, has_aff)
    return pl.pallas_call(
        kernel,
        out_shape=jax.ShapeDtypeStruct((Cout, geom["Mp"]), bf16),
        scratch_shapes=[pltpu.VMEM((Cout, geom["Mext"]), bf16)],
    )(*args)


def avg_pool(feat_flat, geom, pool_size):
    """AvgPool2d(kernel_size=pool_size, stride=pool_size).

    feat_flat: (C, Mp) bf16 padded-flat feature map.
    Returns (pooled (C, N, Ho, Wo) bf16, pre-pool compact (C, N, H, W) bf16).
    """
    C = feat_flat.shape[0]
    N, H, W = geom["N"], geom["H"], geom["W"]
    ph, pw = pool_size
    Ho, Wo = H // ph, W // pw
    t = padflat_to_cmajor(feat_flat, geom, C)            # (C, N, H, W)
    tc = t[:, :, :Ho * ph, :Wo * pw]
    slabs = jnp.stack([tc[:, :, py::ph, px::pw].reshape(C, N * Ho * Wo)
                       for py in range(ph) for px in range(pw)], axis=0)
    pooled = pl.pallas_call(
        functools.partial(_avg_pool_kernel, 1.0 / float(ph * pw)),
        out_shape=jax.ShapeDtypeStruct((C, N * Ho * Wo), feat_flat.dtype),
    )(slabs)
    return pooled.reshape(C, N, Ho, Wo), t


# ----------------------------------------------------------------------------
# Parameter init (deterministic, mirrors the module's __init__ shapes)
# ----------------------------------------------------------------------------
def init_conv(key, cin, cout, k):
    wkey, bkey = jax.random.split(key)
    bound = 1.0 / math.sqrt(cin * k * k)
    w = jax.random.uniform(wkey, (cout, cin, k, k), jnp.float32, -bound, bound)
    b = jax.random.uniform(bkey, (cout,), jnp.float32, -bound, bound)
    return w, b


def init_bn(key, c):
    k1, k2, k3, k4 = jax.random.split(key, 4)
    gamma = 1.0 + 0.1 * jax.random.normal(k1, (c,), jnp.float32)
    beta = 0.1 * jax.random.normal(k2, (c,), jnp.float32)
    mean = 0.1 * jax.random.normal(k3, (c,), jnp.float32)
    var = jnp.abs(jax.random.normal(k4, (c,), jnp.float32)) + 0.5
    return (gamma, beta, mean, var)


def init_res_conv_block(key, cin, cout):
    ks = jax.random.split(key, 5)
    p = {}
    p["w1"], p["b1"] = init_conv(ks[0], cin, cout, 3)
    p["bn1"] = init_bn(ks[1], cout)
    p["w2"], p["b2"] = init_conv(ks[2], cout, cout, 3)
    p["bn2"] = init_bn(ks[3], cout)
    if cin != cout:  # stride is always (1,1) here
        p["wr"], p["br"] = init_conv(ks[4], cin, cout, 1)
    return p


def init_encoder(key, in_channels, out_channels, n_layers, n_blocks=1):
    keys = jax.random.split(key, n_layers + 1)
    params = {"bn": init_bn(keys[0], in_channels), "layers": []}
    cin, cout = in_channels, out_channels
    for i in range(n_layers):
        bkeys = jax.random.split(keys[i + 1], n_blocks)
        blocks = []
        for j in range(n_blocks):
            ic = cin if j == 0 else cout
            blocks.append(init_res_conv_block(bkeys[j], ic, cout))
        params["layers"].append(blocks)
        cin = cout
        cout *= 2
    return params


# ----------------------------------------------------------------------------
# Forward pass
# ----------------------------------------------------------------------------
def encoder_fwd(x_nchw, params, pool_size):
    """x: (N, C, H, W) like the PyTorch module. Returns (pooled, [features]),
    both in NCHW f32 (activations flow through the kernels in bf16)."""
    N, C, H, W = x_nchw.shape
    s0, t0 = fold_bn(*params["bn"])              # entry BN, folded into block 0
    cur = jnp.transpose(x_nchw, (1, 0, 2, 3))    # channel-major (C, N, H, W)
    h = []
    for li, blocks in enumerate(params["layers"]):
        geom = make_geom(N, H, W)
        feat_ext = cmajor_to_ext(cur, geom)                     # (Cin, Mext)
        feat = None
        for bi, bp in enumerate(blocks):
            in_affine = (s0, t0) if (li == 0 and bi == 0) else None
            feat = res_conv_block(feat_ext, geom, bp, in_affine)  # (Cout, Mp)
            if bi + 1 < len(blocks):
                feat_ext = jnp.pad(feat, ((0, 0), (geom["ext"], geom["ext"])))
        pooled, t = avg_pool(feat, geom, pool_size)
        h.append(jnp.transpose(t, (1, 0, 2, 3)).astype(jnp.float32))  # NCHW
        cur = pooled
        C, H, W = cur.shape[0], cur.shape[2], cur.shape[3]
    out = jnp.transpose(cur, (1, 0, 2, 3)).astype(jnp.float32)        # NCHW
    return out, h


# ----------------------------------------------------------------------------
# Demo
# ----------------------------------------------------------------------------
if __name__ == "__main__":
    key = jax.random.PRNGKey(0)
    kx, kp = jax.random.split(key)

    # Encoder(in_channels=4, out_channels=8, n_layers=2, pool_size=(2, 2))
    N, Cin, H, W = 2, 4, 16, 16
    x_nchw = jax.random.normal(kx, (N, Cin, H, W), dtype=jnp.float32)
    params = init_encoder(kp, in_channels=Cin, out_channels=8,
                          n_layers=2, n_blocks=1)

    fwd = jax.jit(functools.partial(encoder_fwd, pool_size=(2, 2)))
    out, h = fwd(x_nchw, params)
    out = jax.block_until_ready(out)
    h = [jax.block_until_ready(t) for t in h]

    assert out.shape == (2, 16, 4, 4), out.shape
    assert h[0].shape == (2, 8, 16, 16) and h[1].shape == (2, 16, 8, 8)
    print("KERNEL_OK")
</pallas_src>

<mosaic_0001>
module attributes {stable_mosaic.version = 11 : i64} {
  func.func @kernel(%arg0: memref<4x686xbf16, #tpu.memory_space<vmem>>, %arg1: memref<1x686xf32, #tpu.memory_space<vmem>>, %arg2: memref<9x8x4xbf16, #tpu.memory_space<vmem>>, %arg3: memref<9x8x8xbf16, #tpu.memory_space<vmem>>, %arg4: memref<8x1xf32, #tpu.memory_space<vmem>>, %arg5: memref<8x1xf32, #tpu.memory_space<vmem>>, %arg6: memref<8x1xf32, #tpu.memory_space<vmem>>, %arg7: memref<8x1xf32, #tpu.memory_space<vmem>>, %arg8: memref<4x1xf32, #tpu.memory_space<vmem>>, %arg9: memref<4x1xf32, #tpu.memory_space<vmem>>, %arg10: memref<8x4xbf16, #tpu.memory_space<vmem>>, %arg11: memref<8x648xbf16, #tpu.memory_space<vmem>>, %arg12: memref<8x686xbf16, #tpu.memory_space<vmem>>) attributes {dimension_semantics = [], scalar_prefetch = 0 : i64, scratch_operands = 1 : i64, tpu.core_type = #tpu.core_type<tc>} {
    %c0 = arith.constant 0 : index
    %c0_0 = arith.constant 0 : index
    %0 = vector.load %arg1[%c0, %c0_0] : memref<1x686xf32, #tpu.memory_space<vmem>>, vector<1x686xf32>
    %1 = vector.extract_strided_slice %0 {offsets = [0, 19], sizes = [1, 648], strides = [1, 1]} : vector<1x686xf32> to vector<1x648xf32>
    %c0_1 = arith.constant 0 : index
    %c0_2 = arith.constant 0 : index
    %2 = vector.load %arg0[%c0_1, %c0_2] : memref<4x686xbf16, #tpu.memory_space<vmem>>, vector<4x686xbf16>
    %3 = arith.extf %2 : vector<4x686xbf16> to vector<4x686xf32>
    %c0_3 = arith.constant 0 : index
    %c0_4 = arith.constant 0 : index
    %4 = vector.load %arg8[%c0_3, %c0_4] : memref<4x1xf32, #tpu.memory_space<vmem>>, vector<4x1xf32>
    %5 = vector.broadcast %4 : vector<4x1xf32> to vector<4x686xf32>
    %6 = arith.mulf %3, %5 : vector<4x686xf32>
    %c0_5 = arith.constant 0 : index
    %c0_6 = arith.constant 0 : index
    %7 = vector.load %arg9[%c0_5, %c0_6] : memref<4x1xf32, #tpu.memory_space<vmem>>, vector<4x1xf32>
    %8 = vector.broadcast %7 : vector<4x1xf32> to vector<4x686xf32>
    %9 = arith.addf %6, %8 : vector<4x686xf32>
    %10 = vector.broadcast %0 : vector<1x686xf32> to vector<4x686xf32>
    %11 = arith.mulf %9, %10 : vector<4x686xf32>
    %12 = arith.truncf %11 : vector<4x686xf32> to vector<4x686xbf16>
    %c0_7 = arith.constant 0 : index
    %c0_8 = arith.constant 0 : index
    %c0_9 = arith.constant 0 : index
    %13 = vector.load %arg2[%c0_7, %c0_8, %c0_9] : memref<9x8x4xbf16, #tpu.memory_space<vmem>>, vector<1x8x4xbf16>
    %14 = vector.shape_cast %13 : vector<1x8x4xbf16> to vector<8x4xbf16>
    %15 = vector.extract_strided_slice %12 {offsets = [0, 0], sizes = [4, 648], strides = [1, 1]} : vector<4x686xbf16> to vector<4x648xbf16>
    %cst = arith.constant dense<0.000000e+00> : vector<8x648xf32>
    %16 = tpu.matmul %14, %15, %cst {dimension_numbers = #tpu.dot_dimension_numbers<[1], [0], [0], [1], [0, 0, 1, 1], [], []>} : vector<8x4xbf16>, vector<4x648xbf16>, vector<8x648xf32> -> vector<8x648xf32>
    %c1 = arith.constant 1 : index
    %c0_10 = arith.constant 0 : index
    %c0_11 = arith.constant 0 : index
    %17 = vector.load %arg2[%c1, %c0_10, %c0_11] : memref<9x8x4xbf16, #tpu.memory_space<vmem>>, vector<1x8x4xbf16>
    %18 = vector.shape_cast %17 : vector<1x8x4xbf16> to vector<8x4xbf16>
    %19 = vector.extract_strided_slice %12 {offsets = [0, 1], sizes = [4, 648], strides = [1, 1]} : vector<4x686xbf16> to vector<4x648xbf16>
    %cst_12 = arith.constant dense<0.000000e+00> : vector<8x648xf32>
    %20 = tpu.matmul %18, %19, %cst_12 {dimension_numbers = #tpu.dot_dimension_numbers<[1], [0], [0], [1], [0, 0, 1, 1], [], []>} : vector<8x4xbf16>, vector<4x648xbf16>, vector<8x648xf32> -> vector<8x648xf32>
    %21 = arith.addf %16, %20 : vector<8x648xf32>
    %c2 = arith.constant 2 : index
    %c0_13 = arith.constant 0 : index
    %c0_14 = arith.constant 0 : index
    %22 = vector.load %arg2[%c2, %c0_13, %c0_14] : memref<9x8x4xbf16, #tpu.memory_space<vmem>>, vector<1x8x4xbf16>
    %23 = vector.shape_cast %22 : vector<1x8x4xbf16> to vector<8x4xbf16>
    %24 = vector.extract_strided_slice %12 {offsets = [0, 2], sizes = [4, 648], strides = [1, 1]} : vector<4x686xbf16> to vector<4x648xbf16>
    %cst_15 = arith.constant dense<0.000000e+00> : vector<8x648xf32>
    %25 = tpu.matmul %23, %24, %cst_15 {dimension_numbers = #tpu.dot_dimension_numbers<[1], [0], [0], [1], [0, 0, 1, 1], [], []>} : vector<8x4xbf16>, vector<4x648xbf16>, vector<8x648xf32> -> vector<8x648xf32>
    %26 = arith.addf %21, %25 : vector<8x648xf32>
    %c3 = arith.constant 3 : index
    %c0_16 = arith.constant 0 : index
    %c0_17 = arith.constant 0 : index
    %27 = vector.load %arg2[%c3, %c0_16, %c0_17] : memref<9x8x4xbf16, #tpu.memory_space<vmem>>, vector<1x8x4xbf16>
    %28 = vector.shape_cast %27 : vector<1x8x4xbf16> to vector<8x4xbf16>
    %29 = vector.extract_strided_slice %12 {offsets = [0, 18], sizes = [4, 648], strides = [1, 1]} : vector<4x686xbf16> to vector<4x648xbf16>
    %cst_18 = arith.constant dense<0.000000e+00> : vector<8x648xf32>
    %30 = tpu.matmul %28, %29, %cst_18 {dimension_numbers = #tpu.dot_dimension_numbers<[1], [0], [0], [1], [0, 0, 1, 1], [], []>} : vector<8x4xbf16>, vector<4x648xbf16>, vector<8x648xf32> -> vector<8x648xf32>
    %31 = arith.addf %26, %30 : vector<8x648xf32>
    %c4 = arith.constant 4 : index
    %c0_19 = arith.constant 0 : index
    %c0_20 = arith.constant 0 : index
    %32 = vector.load %arg2[%c4, %c0_19, %c0_20] : memref<9x8x4xbf16, #tpu.memory_space<vmem>>, vector<1x8x4xbf16>
    %33 = vector.shape_cast %32 : vector<1x8x4xbf16> to vector<8x4xbf16>
    %34 = vector.extract_strided_slice %12 {offsets = [0, 19], sizes = [4, 648], strides = [1, 1]} : vector<4x686xbf16> to vector<4x648xbf16>
    %cst_21 = arith.constant dense<0.000000e+00> : vector<8x648xf32>
    %35 = tpu.matmul %33, %34, %cst_21 {dimension_numbers = #tpu.dot_dimension_numbers<[1], [0], [0], [1], [0, 0, 1, 1], [], []>} : vector<8x4xbf16>, vector<4x648xbf16>, vector<8x648xf32> -> vector<8x648xf32>
    %36 = arith.addf %31, %35 : vector<8x648xf32>
    %c5 = arith.constant 5 : index
    %c0_22 = arith.constant 0 : index
    %c0_23 = arith.constant 0 : index
    %37 = vector.load %arg2[%c5, %c0_22, %c0_23] : memref<9x8x4xbf16, #tpu.memory_space<vmem>>, vector<1x8x4xbf16>
    %38 = vector.shape_cast %37 : vector<1x8x4xbf16> to vector<8x4xbf16>
    %39 = vector.extract_strided_slice %12 {offsets = [0, 20], sizes = [4, 648], strides = [1, 1]} : vector<4x686xbf16> to vector<4x648xbf16>
    %cst_24 = arith.constant dense<0.000000e+00> : vector<8x648xf32>
    %40 = tpu.matmul %38, %39, %cst_24 {dimension_numbers = #tpu.dot_dimension_numbers<[1], [0], [0], [1], [0, 0, 1, 1], [], []>} : vector<8x4xbf16>, vector<4x648xbf16>, vector<8x648xf32> -> vector<8x648xf32>
    %41 = arith.addf %36, %40 : vector<8x648xf32>
    %c6 = arith.constant 6 : index
    %c0_25 = arith.constant 0 : index
    %c0_26 = arith.constant 0 : index
    %42 = vector.load %arg2[%c6, %c0_25, %c0_26] : memref<9x8x4xbf16, #tpu.memory_space<vmem>>, vector<1x8x4xbf16>
    %43 = vector.shape_cast %42 : vector<1x8x4xbf16> to vector<8x4xbf16>
    %44 = vector.extract_strided_slice %12 {offsets = [0, 36], sizes = [4, 648], strides = [1, 1]} : vector<4x686xbf16> to vector<4x648xbf16>
    %cst_27 = arith.constant dense<0.000000e+00> : vector<8x648xf32>
    %45 = tpu.matmul %43, %44, %cst_27 {dimension_numbers = #tpu.dot_dimension_numbers<[1], [0], [0], [1], [0, 0, 1, 1], [], []>} : vector<8x4xbf16>, vector<4x648xbf16>, vector<8x648xf32> -> vector<8x648xf32>
    %46 = arith.addf %41, %45 : vector<8x648xf32>
    %c7 = arith.constant 7 : index
    %c0_28 = arith.constant 0 : index
    %c0_29 = arith.constant 0 : index
    %47 = vector.load %arg2[%c7, %c0_28, %c0_29] : memref<9x8x4xbf16, #tpu.memory_space<vmem>>, vector<1x8x4xbf16>
    %48 = vector.shape_cast %47 : vector<1x8x4xbf16> to vector<8x4xbf16>
    %49 = vector.extract_strided_slice %12 {offsets = [0, 37], sizes = [4, 648], strides = [1, 1]} : vector<4x686xbf16> to vector<4x648xbf16>
    %cst_30 = arith.constant dense<0.000000e+00> : vector<8x648xf32>
    %50 = tpu.matmul %48, %49, %cst_30 {dimension_numbers = #tpu.dot_dimension_numbers<[1], [0], [0], [1], [0, 0, 1, 1], [], []>} : vector<8x4xbf16>, vector<4x648xbf16>, vector<8x648xf32> -> vector<8x648xf32>
    %51 = arith.addf %46, %50 : vector<8x648xf32>
    %c8 = arith.constant 8 : index
    %c0_31 = arith.constant 0 : index
    %c0_32 = arith.constant 0 : index
    %52 = vector.load %arg2[%c8, %c0_31, %c0_32] : memref<9x8x4xbf16, #tpu.memory_space<vmem>>, vector<1x8x4xbf16>
    %53 = vector.shape_cast %52 : vector<1x8x4xbf16> to vector<8x4xbf16>
    %54 = vector.extract_strided_slice %12 {offsets = [0, 38], sizes = [4, 648], strides = [1, 1]} : vector<4x686xbf16> to vector<4x648xbf16>
    %cst_33 = arith.constant dense<0.000000e+00> : vector<8x648xf32>
    %55 = tpu.matmul %53, %54, %cst_33 {dimension_numbers = #tpu.dot_dimension_numbers<[1], [0], [0], [1], [0, 0, 1, 1], [], []>} : vector<8x4xbf16>, vector<4x648xbf16>, vector<8x648xf32> -> vector<8x648xf32>
    %56 = arith.addf %51, %55 : vector<8x648xf32>
    %c0_34 = arith.constant 0 : index
    %c0_35 = arith.constant 0 : index
    %57 = vector.load %arg4[%c0_34, %c0_35] : memref<8x1xf32, #tpu.memory_space<vmem>>, vector<8x1xf32>
    %58 = vector.broadcast %57 : vector<8x1xf32> to vector<8x648xf32>
    %59 = arith.mulf %56, %58 : vector<8x648xf32>
    %c0_36 = arith.constant 0 : index
    %c0_37 = arith.constant 0 : index
    %60 = vector.load %arg5[%c0_36, %c0_37] : memref<8x1xf32, #tpu.memory_space<vmem>>, vector<8x1xf32>
    %61 = vector.broadcast %60 : vector<8x1xf32> to vector<8x648xf32>
    %62 = arith.addf %59, %61 : vector<8x648xf32>
    %cst_38 = arith.constant 0.000000e+00 : f32
    %63 = vector.broadcast %cst_38 : f32 to vector<8x648xf32>
    %64 = arith.maximumf %62, %63 : vector<8x648xf32>
    %65 = vector.broadcast %1 : vector<1x648xf32> to vector<8x648xf32>
    %66 = arith.mulf %64, %65 : vector<8x648xf32>
    %cst_39 = arith.constant 0.000000e+00 : bf16
    %67 = vector.broadcast %cst_39 : bf16 to vector<8x686xbf16>
    %c0_40 = arith.constant 0 : index
    %c0_41 = arith.constant 0 : index
    %68 = vector.load %arg12[%c0_40, %c0_41] : memref<8x686xbf16, #tpu.memory_space<vmem>>, vector<8x686xbf16>
    tpu.vector_store %arg12[%c0_40, %c0_41], %67 {strides = array<i32>} : memref<8x686xbf16, #tpu.memory_space<vmem>>, vector<8x686xbf16>,
    %69 = arith.truncf %66 : vector<8x648xf32> to vector<8x648xbf16>
    %c0_42 = arith.constant 0 : index
    %c19 = arith.constant 19 : index
    %70 = vector.load %arg12[%c0_42, %c19] : memref<8x686xbf16, #tpu.memory_space<vmem>>, vector<8x648xbf16>
    tpu.vector_store %arg12[%c0_42, %c19], %69 {strides = array<i32>} : memref<8x686xbf16, #tpu.memory_space<vmem>>, vector<8x648xbf16>,
    %c0_43 = arith.constant 0 : index
    %c0_44 = arith.constant 0 : index
    %c0_45 = arith.constant 0 : index
    %71 = vector.load %arg3[%c0_43, %c0_44, %c0_45] : memref<9x8x8xbf16, #tpu.memory_space<vmem>>, vector<1x8x8xbf16>
    %72 = vector.shape_cast %71 : vector<1x8x8xbf16> to vector<8x8xbf16>
    %c0_46 = arith.constant 0 : index
    %c0_47 = arith.constant 0 : index
    %73 = vector.load %arg12[%c0_46, %c0_47] : memref<8x686xbf16, #tpu.memory_space<vmem>>, vector<8x648xbf16>
    %cst_48 = arith.constant dense<0.000000e+00> : vector<8x648xf32>
    %74 = tpu.matmul %72, %73, %cst_48 {dimension_numbers = #tpu.dot_dimension_numbers<[1], [0], [0], [1], [0, 0, 1, 1], [], []>} : vector<8x8xbf16>, vector<8x648xbf16>, vector<8x648xf32> -> vector<8x648xf32>
    %c1_49 = arith.constant 1 : index
    %c0_50 = arith.constant 0 : index
    %c0_51 = arith.constant 0 : index
    %75 = vector.load %arg3[%c1_49, %c0_50, %c0_51] : memref<9x8x8xbf16, #tpu.memory_space<vmem>>, vector<1x8x8xbf16>
    %76 = vector.shape_cast %75 : vector<1x8x8xbf16> to vector<8x8xbf16>
    %c0_52 = arith.constant 0 : index
    %c1_53 = arith.constant 1 : index
    %77 = vector.load %arg12[%c0_52, %c1_53] : memref<8x686xbf16, #tpu.memory_space<vmem>>, vector<8x648xbf16>
    %cst_54 = arith.constant dense<0.000000e+00> : vector<8x648xf32>
    %78 = tpu.matmul %76, %77, %cst_54 {dimension_numbers = #tpu.dot_dimension_numbers<[1], [0], [0], [1], [0, 0, 1, 1], [], []>} : vector<8x8xbf16>, vector<8x648xbf16>, vector<8x648xf32> -> vector<8x648xf32>
    %79 = arith.addf %74, %78 : vector<8x648xf32>
    %c2_55 = arith.constant 2 : index
    %c0_56 = arith.constant 0 : index
    %c0_57 = arith.constant 0 : index
    %80 = vector.load %arg3[%c2_55, %c0_56, %c0_57] : memref<9x8x8xbf16, #tpu.memory_space<vmem>>, vector<1x8x8xbf16>
    %81 = vector.shape_cast %80 : vector<1x8x8xbf16> to vector<8x8xbf16>
    %c0_58 = arith.constant 0 : index
    %c2_59 = arith.constant 2 : index
    %82 = vector.load %arg12[%c0_58, %c2_59] : memref<8x686xbf16, #tpu.memory_space<vmem>>, vector<8x648xbf16>
    %cst_60 = arith.constant dense<0.000000e+00> : vector<8x648xf32>
    %83 = tpu.matmul %81, %82, %cst_60 {dimension_numbers = #tpu.dot_dimension_numbers<[1], [0], [0], [1], [0, 0, 1, 1], [], []>} : vector<8x8xbf16>, vector<8x648xbf16>, vector<8x648xf32> -> vector<8x648xf32>
    %84 = arith.addf %79, %83 : vector<8x648xf32>
    %c3_61 = arith.constant 3 : index
    %c0_62 = arith.constant 0 : index
    %c0_63 = arith.constant 0 : index
    %85 = vector.load %arg3[%c3_61, %c0_62, %c0_63] : memref<9x8x8xbf16, #tpu.memory_space<vmem>>, vector<1x8x8xbf16>
    %86 = vector.shape_cast %85 : vector<1x8x8xbf16> to vector<8x8xbf16>
    %c0_64 = arith.constant 0 : index
    %c18 = arith.constant 18 : index
    %87 = vector.load %arg12[%c0_64, %c18] : memref<8x686xbf16, #tpu.memory_space<vmem>>, vector<8x648xbf16>
    %cst_65 = arith.constant dense<0.000000e+00> : vector<8x648xf32>
    %88 = tpu.matmul %86, %87, %cst_65 {dimension_numbers = #tpu.dot_dimension_numbers<[1], [0], [0], [1], [0, 0, 1, 1], [], []>} : vector<8x8xbf16>, vector<8x648xbf16>, vector<8x648xf32> -> vector<8x648xf32>
    %89 = arith.addf %84, %88 : vector<8x648xf32>
    %c4_66 = arith.constant 4 : index
    %c0_67 = arith.constant 0 : index
    %c0_68 = arith.constant 0 : index
    %90 = vector.load %arg3[%c4_66, %c0_67, %c0_68] : memref<9x8x8xbf16, #tpu.memory_space<vmem>>, vector<1x8x8xbf16>
    %91 = vector.shape_cast %90 : vector<1x8x8xbf16> to vector<8x8xbf16>
    %c0_69 = arith.constant 0 : index
    %c19_70 = arith.constant 19 : index
    %92 = vector.load %arg12[%c0_69, %c19_70] : memref<8x686xbf16, #tpu.memory_space<vmem>>, vector<8x648xbf16>
    %cst_71 = arith.constant dense<0.000000e+00> : vector<8x648xf32>
    %93 = tpu.matmul %91, %92, %cst_71 {dimension_numbers = #tpu.dot_dimension_numbers<[1], [0], [0], [1], [0, 0, 1, 1], [], []>} : vector<8x8xbf16>, vector<8x648xbf16>, vector<8x648xf32> -> vector<8x648xf32>
    %94 = arith.addf %89, %93 : vector<8x648xf32>
    %c5_72 = arith.constant 5 : index
    %c0_73 = arith.constant 0 : index
    %c0_74 = arith.constant 0 : index
    %95 = vector.load %arg3[%c5_72, %c0_73, %c0_74] : memref<9x8x8xbf16, #tpu.memory_space<vmem>>, vector<1x8x8xbf16>
    %96 = vector.shape_cast %95 : vector<1x8x8xbf16> to vector<8x8xbf16>
    %c0_75 = arith.constant 0 : index
    %c20 = arith.constant 20 : index
    %97 = vector.load %arg12[%c0_75, %c20] : memref<8x686xbf16, #tpu.memory_space<vmem>>, vector<8x648xbf16>
    %cst_76 = arith.constant dense<0.000000e+00> : vector<8x648xf32>
    %98 = tpu.matmul %96, %97, %cst_76 {dimension_numbers = #tpu.dot_dimension_numbers<[1], [0], [0], [1], [0, 0, 1, 1], [], []>} : vector<8x8xbf16>, vector<8x648xbf16>, vector<8x648xf32> -> vector<8x648xf32>
    %99 = arith.addf %94, %98 : vector<8x648xf32>
    %c6_77 = arith.constant 6 : index
    %c0_78 = arith.constant 0 : index
    %c0_79 = arith.constant 0 : index
    %100 = vector.load %arg3[%c6_77, %c0_78, %c0_79] : memref<9x8x8xbf16, #tpu.memory_space<vmem>>, vector<1x8x8xbf16>
    %101 = vector.shape_cast %100 : vector<1x8x8xbf16> to vector<8x8xbf16>
    %c0_80 = arith.constant 0 : index
    %c36 = arith.constant 36 : index
    %102 = vector.load %arg12[%c0_80, %c36] : memref<8x686xbf16, #tpu.memory_space<vmem>>, vector<8x648xbf16>
    %cst_81 = arith.constant dense<0.000000e+00> : vector<8x648xf32>
    %103 = tpu.matmul %101, %102, %cst_81 {dimension_numbers = #tpu.dot_dimension_numbers<[1], [0], [0], [1], [0, 0, 1, 1], [], []>} : vector<8x8xbf16>, vector<8x648xbf16>, vector<8x648xf32> -> vector<8x648xf32>
    %104 = arith.addf %99, %103 : vector<8x648xf32>
    %c7_82 = arith.constant 7 : index
    %c0_83 = arith.constant 0 : index
    %c0_84 = arith.constant 0 : index
    %105 = vector.load %arg3[%c7_82, %c0_83, %c0_84] : memref<9x8x8xbf16, #tpu.memory_space<vmem>>, vector<1x8x8xbf16>
    %106 = vector.shape_cast %105 : vector<1x8x8xbf16> to vector<8x8xbf16>
    %c0_85 = arith.constant 0 : index
    %c37 = arith.constant 37 : index
    %107 = vector.load %arg12[%c0_85, %c37] : memref<8x686xbf16, #tpu.memory_space<vmem>>, vector<8x648xbf16>
    %cst_86 = arith.constant dense<0.000000e+00> : vector<8x648xf32>
    %108 = tpu.matmul %106, %107, %cst_86 {dimension_numbers = #tpu.dot_dimension_numbers<[1], [0], [0], [1], [0, 0, 1, 1], [], []>} : vector<8x8xbf16>, vector<8x648xbf16>, vector<8x648xf32> -> vector<8x648xf32>
    %109 = arith.addf %104, %108 : vector<8x648xf32>
    %c8_87 = arith.constant 8 : index
    %c0_88 = arith.constant 0 : index
    %c0_89 = arith.constant 0 : index
    %110 = vector.load %arg3[%c8_87, %c0_88, %c0_89] : memref<9x8x8xbf16, #tpu.memory_space<vmem>>, vector<1x8x8xbf16>
    %111 = vector.shape_cast %110 : vector<1x8x8xbf16> to vector<8x8xbf16>
    %c0_90 = arith.constant 0 : index
    %c38 = arith.constant 38 : index
    %112 = vector.load %arg12[%c0_90, %c38] : memref<8x686xbf16, #tpu.memory_space<vmem>>, vector<8x648xbf16>
    %cst_91 = arith.constant dense<0.000000e+00> : vector<8x648xf32>
    %113 = tpu.matmul %111, %112, %cst_91 {dimension_numbers = #tpu.dot_dimension_numbers<[1], [0], [0], [1], [0, 0, 1, 1], [], []>} : vector<8x8xbf16>, vector<8x648xbf16>, vector<8x648xf32> -> vector<8x648xf32>
    %114 = arith.addf %109, %113 : vector<8x648xf32>
    %115 = vector.extract_strided_slice %12 {offsets = [0, 19], sizes = [4, 648], strides = [1, 1]} : vector<4x686xbf16> to vector<4x648xbf16>
    %c0_92 = arith.constant 0 : index
    %c0_93 = arith.constant 0 : index
    %116 = vector.load %arg10[%c0_92, %c0_93] : memref<8x4xbf16, #tpu.memory_space<vmem>>, vector<8x4xbf16>
    %cst_94 = arith.constant dense<0.000000e+00> : vector<8x648xf32>
    %117 = tpu.matmul %116, %115, %cst_94 {dimension_numbers = #tpu.dot_dimension_numbers<[1], [0], [0], [1], [0, 0, 1, 1], [], []>} : vector<8x4xbf16>, vector<4x648xbf16>, vector<8x648xf32> -> vector<8x648xf32>
    %c0_95 = arith.constant 0 : index
    %c0_96 = arith.constant 0 : index
    %118 = vector.load %arg6[%c0_95, %c0_96] : memref<8x1xf32, #tpu.memory_space<vmem>>, vector<8x1xf32>
    %119 = vector.broadcast %118 : vector<8x1xf32> to vector<8x648xf32>
    %120 = arith.mulf %114, %119 : vector<8x648xf32>
    %c0_97 = arith.constant 0 : index
    %c0_98 = arith.constant 0 : index
    %121 = vector.load %arg7[%c0_97, %c0_98] : memref<8x1xf32, #tpu.memory_space<vmem>>, vector<8x1xf32>
    %122 = vector.broadcast %121 : vector<8x1xf32> to vector<8x648xf32>
    %123 = arith.addf %120, %122 : vector<8x648xf32>
    %124 = arith.addf %123, %117 : vector<8x648xf32>
    %cst_99 = arith.constant 0.000000e+00 : f32
    %125 = vector.broadcast %cst_99 : f32 to vector<8x648xf32>
    %126 = arith.maximumf %124, %125 : vector<8x648xf32>
    %127 = vector.broadcast %1 : vector<1x648xf32> to vector<8x648xf32>
    %128 = arith.mulf %126, %127 : vector<8x648xf32>
    %129 = arith.truncf %128 : vector<8x648xf32> to vector<8x648xbf16>
    %c0_100 = arith.constant 0 : index
    %c0_101 = arith.constant 0 : index
    %130 = vector.load %arg11[%c0_100, %c0_101] : memref<8x648xbf16, #tpu.memory_space<vmem>>, vector<8x648xbf16>
    tpu.vector_store %arg11[%c0_100, %c0_101], %129 {strides = array<i32>} : memref<8x648xbf16, #tpu.memory_space<vmem>>, vector<8x648xbf16>,
    return
  }
}

module attributes {stable_mosaic.version = 11 : i64} {
  func.func @_avg_pool_kernel(%arg0: memref<4x8x128xbf16, #tpu.memory_space<vmem>>, %arg1: memref<8x128xbf16, #tpu.memory_space<vmem>>) attributes {dimension_semantics = [], scalar_prefetch = 0 : i64, scratch_operands = 0 : i64, tpu.core_type = #tpu.core_type<tc>} {
    %c0 = arith.constant 0 : index
    %c0_0 = arith.constant 0 : index
    %c0_1 = arith.constant 0 : index
    %0 = vector.load %arg0[%c0, %c0_0, %c0_1] : memref<4x8x128xbf16, #tpu.memory_space<vmem>>, vector<4x8x128xbf16>
    %1 = arith.extf %0 : vector<4x8x128xbf16> to vector<4x8x128xf32>
    %cst = arith.constant dense<0.000000e+00> : vector<8x128xf32>
    %2 = vector.multi_reduction <add>, %1, %cst [0] : vector<4x8x128xf32> to vector<8x128xf32>
    %cst_2 = arith.constant 2.500000e-01 : f32
    %3 = vector.broadcast %cst_2 : f32 to vector<8x128xf32>
    %4 = arith.mulf %2, %3 : vector<8x128xf32>
    %5 = arith.truncf %4 : vector<8x128xf32> to vector<8x128xbf16>
    %c0_3 = arith.constant 0 : index
    %c0_4 = arith.constant 0 : index
    %6 = vector.load %arg1[%c0_3, %c0_4] : memref<8x128xbf16, #tpu.memory_space<vmem>>, vector<8x128xbf16>
    tpu.vector_store %arg1[%c0_3, %c0_4], %5 {strides = array<i32>} : memref<8x128xbf16, #tpu.memory_space<vmem>>, vector<8x128xbf16>,
    return
  }
}

module attributes {stable_mosaic.version = 11 : i64} {
  func.func @kernel(%arg0: memref<8x222xbf16, #tpu.memory_space<vmem>>, %arg1: memref<1x222xf32, #tpu.memory_space<vmem>>, %arg2: memref<9x16x8xbf16, #tpu.memory_space<vmem>>, %arg3: memref<9x16x16xbf16, #tpu.memory_space<vmem>>, %arg4: memref<16x1xf32, #tpu.memory_space<vmem>>, %arg5: memref<16x1xf32, #tpu.memory_space<vmem>>, %arg6: memref<16x1xf32, #tpu.memory_space<vmem>>, %arg7: memref<16x1xf32, #tpu.memory_space<vmem>>, %arg8: memref<16x8xbf16, #tpu.memory_space<vmem>>, %arg9: memref<16x200xbf16, #tpu.memory_space<vmem>>, %arg10: memref<16x222xbf16, #tpu.memory_space<vmem>>) attributes {dimension_semantics = [], scalar_prefetch = 0 : i64, scratch_operands = 1 : i64, tpu.core_type = #tpu.core_type<tc>} {
    %c0 = arith.constant 0 : index
    %c0_0 = arith.constant 0 : index
    %0 = vector.load %arg1[%c0, %c0_0] : memref<1x222xf32, #tpu.memory_space<vmem>>, vector<1x222xf32>
    %1 = vector.extract_strided_slice %0 {offsets = [0, 11], sizes = [1, 200], strides = [1, 1]} : vector<1x222xf32> to vector<1x200xf32>
    %c0_1 = arith.constant 0 : index
    %c0_2 = arith.constant 0 : index
    %2 = vector.load %arg0[%c0_1, %c0_2] : memref<8x222xbf16, #tpu.memory_space<vmem>>, vector<8x222xbf16>
    %c0_3 = arith.constant 0 : index
    %c0_4 = arith.constant 0 : index
    %c0_5 = arith.constant 0 : index
    %3 = vector.load %arg2[%c0_3, %c0_4, %c0_5] : memref<9x16x8xbf16, #tpu.memory_space<vmem>>, vector<1x16x8xbf16>
    %4 = vector.shape_cast %3 : vector<1x16x8xbf16> to vector<16x8xbf16>
    %5 = vector.extract_strided_slice %2 {offsets = [0, 0], sizes = [8, 200], strides = [1, 1]} : vector<8x222xbf16> to vector<8x200xbf16>
    %cst = arith.constant dense<0.000000e+00> : vector<16x200xf32>
    %6 = tpu.matmul %4, %5, %cst {dimension_numbers = #tpu.dot_dimension_numbers<[1], [0], [0], [1], [0, 0, 1, 1], [], []>} : vector<16x8xbf16>, vector<8x200xbf16>, vector<16x200xf32> -> vector<16x200xf32>
    %c1 = arith.constant 1 : index
    %c0_6 = arith.constant 0 : index
    %c0_7 = arith.constant 0 : index
    %7 = vector.load %arg2[%c1, %c0_6, %c0_7] : memref<9x16x8xbf16, #tpu.memory_space<vmem>>, vector<1x16x8xbf16>
    %8 = vector.shape_cast %7 : vector<1x16x8xbf16> to vector<16x8xbf16>
    %9 = vector.extract_strided_slice %2 {offsets = [0, 1], sizes = [8, 200], strides = [1, 1]} : vector<8x222xbf16> to vector<8x200xbf16>
    %cst_8 = arith.constant dense<0.000000e+00> : vector<16x200xf32>
    %10 = tpu.matmul %8, %9, %cst_8 {dimension_numbers = #tpu.dot_dimension_numbers<[1], [0], [0], [1], [0, 0, 1, 1], [], []>} : vector<16x8xbf16>, vector<8x200xbf16>, vector<16x200xf32> -> vector<16x200xf32>
    %11 = arith.addf %6, %10 : vector<16x200xf32>
    %c2 = arith.constant 2 : index
    %c0_9 = arith.constant 0 : index
    %c0_10 = arith.constant 0 : index
    %12 = vector.load %arg2[%c2, %c0_9, %c0_10] : memref<9x16x8xbf16, #tpu.memory_space<vmem>>, vector<1x16x8xbf16>
    %13 = vector.shape_cast %12 : vector<1x16x8xbf16> to vector<16x8xbf16>
    %14 = vector.extract_strided_slice %2 {offsets = [0, 2], sizes = [8, 200], strides = [1, 1]} : vector<8x222xbf16> to vector<8x200xbf16>
    %cst_11 = arith.constant dense<0.000000e+00> : vector<16x200xf32>
    %15 = tpu.matmul %13, %14, %cst_11 {dimension_numbers = #tpu.dot_dimension_numbers<[1], [0], [0], [1], [0, 0, 1, 1], [], []>} : vector<16x8xbf16>, vector<8x200xbf16>, vector<16x200xf32> -> vector<16x200xf32>
    %16 = arith.addf %11, %15 : vector<16x200xf32>
    %c3 = arith.constant 3 : index
    %c0_12 = arith.constant 0 : index
    %c0_13 = arith.constant 0 : index
    %17 = vector.load %arg2[%c3, %c0_12, %c0_13] : memref<9x16x8xbf16, #tpu.memory_space<vmem>>, vector<1x16x8xbf16>
    %18 = vector.shape_cast %17 : vector<1x16x8xbf16> to vector<16x8xbf16>
    %19 = vector.extract_strided_slice %2 {offsets = [0, 10], sizes = [8, 200], strides = [1, 1]} : vector<8x222xbf16> to vector<8x200xbf16>
    %cst_14 = arith.constant dense<0.000000e+00> : vector<16x200xf32>
    %20 = tpu.matmul %18, %19, %cst_14 {dimension_numbers = #tpu.dot_dimension_numbers<[1], [0], [0], [1], [0, 0, 1, 1], [], []>} : vector<16x8xbf16>, vector<8x200xbf16>, vector<16x200xf32> -> vector<16x200xf32>
    %21 = arith.addf %16, %20 : vector<16x200xf32>
    %c4 = arith.constant 4 : index
    %c0_15 = arith.constant 0 : index
    %c0_16 = arith.constant 0 : index
    %22 = vector.load %arg2[%c4, %c0_15, %c0_16] : memref<9x16x8xbf16, #tpu.memory_space<vmem>>, vector<1x16x8xbf16>
    %23 = vector.shape_cast %22 : vector<1x16x8xbf16> to vector<16x8xbf16>
    %24 = vector.extract_strided_slice %2 {offsets = [0, 11], sizes = [8, 200], strides = [1, 1]} : vector<8x222xbf16> to vector<8x200xbf16>
    %cst_17 = arith.constant dense<0.000000e+00> : vector<16x200xf32>
    %25 = tpu.matmul %23, %24, %cst_17 {dimension_numbers = #tpu.dot_dimension_numbers<[1], [0], [0], [1], [0, 0, 1, 1], [], []>} : vector<16x8xbf16>, vector<8x200xbf16>, vector<16x200xf32> -> vector<16x200xf32>
    %26 = arith.addf %21, %25 : vector<16x200xf32>
    %c5 = arith.constant 5 : index
    %c0_18 = arith.constant 0 : index
    %c0_19 = arith.constant 0 : index
    %27 = vector.load %arg2[%c5, %c0_18, %c0_19] : memref<9x16x8xbf16, #tpu.memory_space<vmem>>, vector<1x16x8xbf16>
    %28 = vector.shape_cast %27 : vector<1x16x8xbf16> to vector<16x8xbf16>
    %29 = vector.extract_strided_slice %2 {offsets = [0, 12], sizes = [8, 200], strides = [1, 1]} : vector<8x222xbf16> to vector<8x200xbf16>
    %cst_20 = arith.constant dense<0.000000e+00> : vector<16x200xf32>
    %30 = tpu.matmul %28, %29, %cst_20 {dimension_numbers = #tpu.dot_dimension_numbers<[1], [0], [0], [1], [0, 0, 1, 1], [], []>} : vector<16x8xbf16>, vector<8x200xbf16>, vector<16x200xf32> -> vector<16x200xf32>
    %31 = arith.addf %26, %30 : vector<16x200xf32>
    %c6 = arith.constant 6 : index
    %c0_21 = arith.constant 0 : index
    %c0_22 = arith.constant 0 : index
    %32 = vector.load %arg2[%c6, %c0_21, %c0_22] : memref<9x16x8xbf16, #tpu.memory_space<vmem>>, vector<1x16x8xbf16>
    %33 = vector.shape_cast %32 : vector<1x16x8xbf16> to vector<16x8xbf16>
    %34 = vector.extract_strided_slice %2 {offsets = [0, 20], sizes = [8, 200], strides = [1, 1]} : vector<8x222xbf16> to vector<8x200xbf16>
    %cst_23 = arith.constant dense<0.000000e+00> : vector<16x200xf32>
    %35 = tpu.matmul %33, %34, %cst_23 {dimension_numbers = #tpu.dot_dimension_numbers<[1], [0], [0], [1], [0, 0, 1, 1], [], []>} : vector<16x8xbf16>, vector<8x200xbf16>, vector<16x200xf32> -> vector<16x200xf32>
    %36 = arith.addf %31, %35 : vector<16x200xf32>
    %c7 = arith.constant 7 : index
    %c0_24 = arith.constant 0 : index
    %c0_25 = arith.constant 0 : index
    %37 = vector.load %arg2[%c7, %c0_24, %c0_25] : memref<9x16x8xbf16, #tpu.memory_space<vmem>>, vector<1x16x8xbf16>
    %38 = vector.shape_cast %37 : vector<1x16x8xbf16> to vector<16x8xbf16>
    %39 = vector.extract_strided_slice %2 {offsets = [0, 21], sizes = [8, 200], strides = [1, 1]} : vector<8x222xbf16> to vector<8x200xbf16>
    %cst_26 = arith.constant dense<0.000000e+00> : vector<16x200xf32>
    %40 = tpu.matmul %38, %39, %cst_26 {dimension_numbers = #tpu.dot_dimension_numbers<[1], [0], [0], [1], [0, 0, 1, 1], [], []>} : vector<16x8xbf16>, vector<8x200xbf16>, vector<16x200xf32> -> vector<16x200xf32>
    %41 = arith.addf %36, %40 : vector<16x200xf32>
    %c8 = arith.constant 8 : index
    %c0_27 = arith.constant 0 : index
    %c0_28 = arith.constant 0 : index
    %42 = vector.load %arg2[%c8, %c0_27, %c0_28] : memref<9x16x8xbf16, #tpu.memory_space<vmem>>, vector<1x16x8xbf16>
    %43 = vector.shape_cast %42 : vector<1x16x8xbf16> to vector<16x8xbf16>
    %44 = vector.extract_strided_slice %2 {offsets = [0, 22], sizes = [8, 200], strides = [1, 1]} : vector<8x222xbf16> to vector<8x200xbf16>
    %cst_29 = arith.constant dense<0.000000e+00> : vector<16x200xf32>
    %45 = tpu.matmul %43, %44, %cst_29 {dimension_numbers = #tpu.dot_dimension_numbers<[1], [0], [0], [1], [0, 0, 1, 1], [], []>} : vector<16x8xbf16>, vector<8x200xbf16>, vector<16x200xf32> -> vector<16x200xf32>
    %46 = arith.addf %41, %45 : vector<16x200xf32>
    %c0_30 = arith.constant 0 : index
    %c0_31 = arith.constant 0 : index
    %47 = vector.load %arg4[%c0_30, %c0_31] : memref<16x1xf32, #tpu.memory_space<vmem>>, vector<16x1xf32>
    %48 = vector.broadcast %47 : vector<16x1xf32> to vector<16x200xf32>
    %49 = arith.mulf %46, %48 : vector<16x200xf32>
    %c0_32 = arith.constant 0 : index
    %c0_33 = arith.constant 0 : index
    %50 = vector.load %arg5[%c0_32, %c0_33] : memref<16x1xf32, #tpu.memory_space<vmem>>, vector<16x1xf32>
    %51 = vector.broadcast %50 : vector<16x1xf32> to vector<16x200xf32>
    %52 = arith.addf %49, %51 : vector<16x200xf32>
    %cst_34 = arith.constant 0.000000e+00 : f32
    %53 = vector.broadcast %cst_34 : f32 to vector<16x200xf32>
    %54 = arith.maximumf %52, %53 : vector<16x200xf32>
    %55 = vector.broadcast %1 : vector<1x200xf32> to vector<16x200xf32>
    %56 = arith.mulf %54, %55 : vector<16x200xf32>
    %cst_35 = arith.constant 0.000000e+00 : bf16
    %57 = vector.broadcast %cst_35 : bf16 to vector<16x222xbf16>
    %c0_36 = arith.constant 0 : index
    %c0_37 = arith.constant 0 : index
    %58 = vector.load %arg10[%c0_36, %c0_37] : memref<16x222xbf16, #tpu.memory_space<vmem>>, vector<16x222xbf16>
    tpu.vector_store %arg10[%c0_36, %c0_37], %57 {strides = array<i32>} : memref<16x222xbf16, #tpu.memory_space<vmem>>, vector<16x222xbf16>,
    %59 = arith.truncf %56 : vector<16x200xf32> to vector<16x200xbf16>
    %c0_38 = arith.constant 0 : index
    %c11 = arith.constant 11 : index
    %60 = vector.load %arg10[%c0_38, %c11] : memref<16x222xbf16, #tpu.memory_space<vmem>>, vector<16x200xbf16>
    tpu.vector_store %arg10[%c0_38, %c11], %59 {strides = array<i32>} : memref<16x222xbf16, #tpu.memory_space<vmem>>, vector<16x200xbf16>,
    %c0_39 = arith.constant 0 : index
    %c0_40 = arith.constant 0 : index
    %c0_41 = arith.constant 0 : index
    %61 = vector.load %arg3[%c0_39, %c0_40, %c0_41] : memref<9x16x16xbf16, #tpu.memory_space<vmem>>, vector<1x16x16xbf16>
    %62 = vector.shape_cast %61 : vector<1x16x16xbf16> to vector<16x16xbf16>
    %c0_42 = arith.constant 0 : index
    %c0_43 = arith.constant 0 : index
    %63 = vector.load %arg10[%c0_42, %c0_43] : memref<16x222xbf16, #tpu.memory_space<vmem>>, vector<16x200xbf16>
    %cst_44 = arith.constant dense<0.000000e+00> : vector<16x200xf32>
    %64 = tpu.matmul %62, %63, %cst_44 {dimension_numbers = #tpu.dot_dimension_numbers<[1], [0], [0], [1], [0, 0, 1, 1], [], []>} : vector<16x16xbf16>, vector<16x200xbf16>, vector<16x200xf32> -> vector<16x200xf32>
    %c1_45 = arith.constant 1 : index
    %c0_46 = arith.constant 0 : index
    %c0_47 = arith.constant 0 : index
    %65 = vector.load %arg3[%c1_45, %c0_46, %c0_47] : memref<9x16x16xbf16, #tpu.memory_space<vmem>>, vector<1x16x16xbf16>
    %66 = vector.shape_cast %65 : vector<1x16x16xbf16> to vector<16x16xbf16>
    %c0_48 = arith.constant 0 : index
    %c1_49 = arith.constant 1 : index
    %67 = vector.load %arg10[%c0_48, %c1_49] : memref<16x222xbf16, #tpu.memory_space<vmem>>, vector<16x200xbf16>
    %cst_50 = arith.constant dense<0.000000e+00> : vector<16x200xf32>
    %68 = tpu.matmul %66, %67, %cst_50 {dimension_numbers = #tpu.dot_dimension_numbers<[1], [0], [0], [1], [0, 0, 1, 1], [], []>} : vector<16x16xbf16>, vector<16x200xbf16>, vector<16x200xf32> -> vector<16x200xf32>
    %69 = arith.addf %64, %68 : vector<16x200xf32>
    %c2_51 = arith.constant 2 : index
    %c0_52 = arith.constant 0 : index
    %c0_53 = arith.constant 0 : index
    %70 = vector.load %arg3[%c2_51, %c0_52, %c0_53] : memref<9x16x16xbf16, #tpu.memory_space<vmem>>, vector<1x16x16xbf16>
    %71 = vector.shape_cast %70 : vector<1x16x16xbf16> to vector<16x16xbf16>
    %c0_54 = arith.constant 0 : index
    %c2_55 = arith.constant 2 : index
    %72 = vector.load %arg10[%c0_54, %c2_55] : memref<16x222xbf16, #tpu.memory_space<vmem>>, vector<16x200xbf16>
    %cst_56 = arith.constant dense<0.000000e+00> : vector<16x200xf32>
    %73 = tpu.matmul %71, %72, %cst_56 {dimension_numbers = #tpu.dot_dimension_numbers<[1], [0], [0], [1], [0, 0, 1, 1], [], []>} : vector<16x16xbf16>, vector<16x200xbf16>, vector<16x200xf32> -> vector<16x200xf32>
    %74 = arith.addf %69, %73 : vector<16x200xf32>
    %c3_57 = arith.constant 3 : index
    %c0_58 = arith.constant 0 : index
    %c0_59 = arith.constant 0 : index
    %75 = vector.load %arg3[%c3_57, %c0_58, %c0_59] : memref<9x16x16xbf16, #tpu.memory_space<vmem>>, vector<1x16x16xbf16>
    %76 = vector.shape_cast %75 : vector<1x16x16xbf16> to vector<16x16xbf16>
    %c0_60 = arith.constant 0 : index
    %c10 = arith.constant 10 : index
    %77 = vector.load %arg10[%c0_60, %c10] : memref<16x222xbf16, #tpu.memory_space<vmem>>, vector<16x200xbf16>
    %cst_61 = arith.constant dense<0.000000e+00> : vector<16x200xf32>
    %78 = tpu.matmul %76, %77, %cst_61 {dimension_numbers = #tpu.dot_dimension_numbers<[1], [0], [0], [1], [0, 0, 1, 1], [], []>} : vector<16x16xbf16>, vector<16x200xbf16>, vector<16x200xf32> -> vector<16x200xf32>
    %79 = arith.addf %74, %78 : vector<16x200xf32>
    %c4_62 = arith.constant 4 : index
    %c0_63 = arith.constant 0 : index
    %c0_64 = arith.constant 0 : index
    %80 = vector.load %arg3[%c4_62, %c0_63, %c0_64] : memref<9x16x16xbf16, #tpu.memory_space<vmem>>, vector<1x16x16xbf16>
    %81 = vector.shape_cast %80 : vector<1x16x16xbf16> to vector<16x16xbf16>
    %c0_65 = arith.constant 0 : index
    %c11_66 = arith.constant 11 : index
    %82 = vector.load %arg10[%c0_65, %c11_66] : memref<16x222xbf16, #tpu.memory_space<vmem>>, vector<16x200xbf16>
    %cst_67 = arith.constant dense<0.000000e+00> : vector<16x200xf32>
    %83 = tpu.matmul %81, %82, %cst_67 {dimension_numbers = #tpu.dot_dimension_numbers<[1], [0], [0], [1], [0, 0, 1, 1], [], []>} : vector<16x16xbf16>, vector<16x200xbf16>, vector<16x200xf32> -> vector<16x200xf32>
    %84 = arith.addf %79, %83 : vector<16x200xf32>
    %c5_68 = arith.constant 5 : index
    %c0_69 = arith.constant 0 : index
    %c0_70 = arith.constant 0 : index
    %85 = vector.load %arg3[%c5_68, %c0_69, %c0_70] : memref<9x16x16xbf16, #tpu.memory_space<vmem>>, vector<1x16x16xbf16>
    %86 = vector.shape_cast %85 : vector<1x16x16xbf16> to vector<16x16xbf16>
    %c0_71 = arith.constant 0 : index
    %c12 = arith.constant 12 : index
    %87 = vector.load %arg10[%c0_71, %c12] : memref<16x222xbf16, #tpu.memory_space<vmem>>, vector<16x200xbf16>
    %cst_72 = arith.constant dense<0.000000e+00> : vector<16x200xf32>
    %88 = tpu.matmul %86, %87, %cst_72 {dimension_numbers = #tpu.dot_dimension_numbers<[1], [0], [0], [1], [0, 0, 1, 1], [], []>} : vector<16x16xbf16>, vector<16x200xbf16>, vector<16x200xf32> -> vector<16x200xf32>
    %89 = arith.addf %84, %88 : vector<16x200xf32>
    %c6_73 = arith.constant 6 : index
    %c0_74 = arith.constant 0 : index
    %c0_75 = arith.constant 0 : index
    %90 = vector.load %arg3[%c6_73, %c0_74, %c0_75] : memref<9x16x16xbf16, #tpu.memory_space<vmem>>, vector<1x16x16xbf16>
    %91 = vector.shape_cast %90 : vector<1x16x16xbf16> to vector<16x16xbf16>
    %c0_76 = arith.constant 0 : index
    %c20 = arith.constant 20 : index
    %92 = vector.load %arg10[%c0_76, %c20] : memref<16x222xbf16, #tpu.memory_space<vmem>>, vector<16x200xbf16>
    %cst_77 = arith.constant dense<0.000000e+00> : vector<16x200xf32>
    %93 = tpu.matmul %91, %92, %cst_77 {dimension_numbers = #tpu.dot_dimension_numbers<[1], [0], [0], [1], [0, 0, 1, 1], [], []>} : vector<16x16xbf16>, vector<16x200xbf16>, vector<16x200xf32> -> vector<16x200xf32>
    %94 = arith.addf %89, %93 : vector<16x200xf32>
    %c7_78 = arith.constant 7 : index
    %c0_79 = arith.constant 0 : index
    %c0_80 = arith.constant 0 : index
    %95 = vector.load %arg3[%c7_78, %c0_79, %c0_80] : memref<9x16x16xbf16, #tpu.memory_space<vmem>>, vector<1x16x16xbf16>
    %96 = vector.shape_cast %95 : vector<1x16x16xbf16> to vector<16x16xbf16>
    %c0_81 = arith.constant 0 : index
    %c21 = arith.constant 21 : index
    %97 = vector.load %arg10[%c0_81, %c21] : memref<16x222xbf16, #tpu.memory_space<vmem>>, vector<16x200xbf16>
    %cst_82 = arith.constant dense<0.000000e+00> : vector<16x200xf32>
    %98 = tpu.matmul %96, %97, %cst_82 {dimension_numbers = #tpu.dot_dimension_numbers<[1], [0], [0], [1], [0, 0, 1, 1], [], []>} : vector<16x16xbf16>, vector<16x200xbf16>, vector<16x200xf32> -> vector<16x200xf32>
    %99 = arith.addf %94, %98 : vector<16x200xf32>
    %c8_83 = arith.constant 8 : index
    %c0_84 = arith.constant 0 : index
    %c0_85 = arith.constant 0 : index
    %100 = vector.load %arg3[%c8_83, %c0_84, %c0_85] : memref<9x16x16xbf16, #tpu.memory_space<vmem>>, vector<1x16x16xbf16>
    %101 = vector.shape_cast %100 : vector<1x16x16xbf16> to vector<16x16xbf16>
    %c0_86 = arith.constant 0 : index
    %c22 = arith.constant 22 : index
    %102 = vector.load %arg10[%c0_86, %c22] : memref<16x222xbf16, #tpu.memory_space<vmem>>, vector<16x200xbf16>
    %cst_87 = arith.constant dense<0.000000e+00> : vector<16x200xf32>
    %103 = tpu.matmul %101, %102, %cst_87 {dimension_numbers = #tpu.dot_dimension_numbers<[1], [0], [0], [1], [0, 0, 1, 1], [], []>} : vector<16x16xbf16>, vector<16x200xbf16>, vector<16x200xf32> -> vector<16x200xf32>
    %104 = arith.addf %99, %103 : vector<16x200xf32>
    %105 = vector.extract_strided_slice %2 {offsets = [0, 11], sizes = [8, 200], strides = [1, 1]} : vector<8x222xbf16> to vector<8x200xbf16>
    %c0_88 = arith.constant 0 : index
    %c0_89 = arith.constant 0 : index
    %106 = vector.load %arg8[%c0_88, %c0_89] : memref<16x8xbf16, #tpu.memory_space<vmem>>, vector<16x8xbf16>
    %cst_90 = arith.constant dense<0.000000e+00> : vector<16x200xf32>
    %107 = tpu.matmul %106, %105, %cst_90 {dimension_numbers = #tpu.dot_dimension_numbers<[1], [0], [0], [1], [0, 0, 1, 1], [], []>} : vector<16x8xbf16>, vector<8x200xbf16>, vector<16x200xf32> -> vector<16x200xf32>
    %c0_91 = arith.constant 0 : index
    %c0_92 = arith.constant 0 : index
    %108 = vector.load %arg6[%c0_91, %c0_92] : memref<16x1xf32, #tpu.memory_space<vmem>>, vector<16x1xf32>
    %109 = vector.broadcast %108 : vector<16x1xf32> to vector<16x200xf32>
    %110 = arith.mulf %104, %109 : vector<16x200xf32>
    %c0_93 = arith.constant 0 : index
    %c0_94 = arith.constant 0 : index
    %111 = vector.load %arg7[%c0_93, %c0_94] : memref<16x1xf32, #tpu.memory_space<vmem>>, vector<16x1xf32>
    %112 = vector.broadcast %111 : vector<16x1xf32> to vector<16x200xf32>
    %113 = arith.addf %110, %112 : vector<16x200xf32>
    %114 = arith.addf %113, %107 : vector<16x200xf32>
    %cst_95 = arith.constant 0.000000e+00 : f32
    %115 = vector.broadcast %cst_95 : f32 to vector<16x200xf32>
    %116 = arith.maximumf %114, %115 : vector<16x200xf32>
    %117 = vector.broadcast %1 : vector<1x200xf32> to vector<16x200xf32>
    %118 = arith.mulf %116, %117 : vector<16x200xf32>
    %119 = arith.truncf %118 : vector<16x200xf32> to vector<16x200xbf16>
    %c0_96 = arith.constant 0 : index
    %c0_97 = arith.constant 0 : index
    %120 = vector.load %arg9[%c0_96, %c0_97] : memref<16x200xbf16, #tpu.memory_space<vmem>>, vector<16x200xbf16>
    tpu.vector_store %arg9[%c0_96, %c0_97], %119 {strides = array<i32>} : memref<16x200xbf16, #tpu.memory_space<vmem>>, vector<16x200xbf16>,
    return
  }
}

module attributes {stable_mosaic.version = 11 : i64} {
  func.func @_avg_pool_kernel(%arg0: memref<4x16x32xbf16, #tpu.memory_space<vmem>>, %arg1: memref<16x32xbf16, #tpu.memory_space<vmem>>) attributes {dimension_semantics = [], scalar_prefetch = 0 : i64, scratch_operands = 0 : i64, tpu.core_type = #tpu.core_type<tc>} {
    %c0 = arith.constant 0 : index
    %c0_0 = arith.constant 0 : index
    %c0_1 = arith.constant 0 : index
    %0 = vector.load %arg0[%c0, %c0_0, %c0_1] : memref<4x16x32xbf16, #tpu.memory_space<vmem>>, vector<4x16x32xbf16>
    %1 = arith.extf %0 : vector<4x16x32xbf16> to vector<4x16x32xf32>
    %cst = arith.constant dense<0.000000e+00> : vector<16x32xf32>
    %2 = vector.multi_reduction <add>, %1, %cst [0] : vector<4x16x32xf32> to vector<16x32xf32>
    %cst_2 = arith.constant 2.500000e-01 : f32
    %3 = vector.broadcast %cst_2 : f32 to vector<16x32xf32>
    %4 = arith.mulf %2, %3 : vector<16x32xf32>
    %5 = arith.truncf %4 : vector<16x32xf32> to vector<16x32xbf16>
    %c0_3 = arith.constant 0 : index
    %c0_4 = arith.constant 0 : index
    %6 = vector.load %arg1[%c0_3, %c0_4] : memref<16x32xbf16, #tpu.memory_space<vmem>>, vector<16x32xbf16>
    tpu.vector_store %arg1[%c0_3, %c0_4], %5 {strides = array<i32>} : memref<16x32xbf16, #tpu.memory_space<vmem>>, vector<16x32xbf16>,
    return
  }
}

</mosaic_0001>

<llo_original>
// kernel: encoder_fwd.5
$region0: #{encoder_fwd.5}
  #allocation0 [shape = 'u32[]', space=smem, size = 0x4, offset = 0x4, fixed_abs, tag = 'smem constant byte address 0x4 - core index']
  #allocation1 [shape = 'u32[72,128]{1,0:T(1,128)}', space=vmem, size = 0x9000, scoped, tag = 'internal scratch']
  %s0 = inlined_call_operand.vmem [shape: bf16[4,8,128], index: 0, kind: input, shape index: {}]
  %s1 = inlined_call_operand.vmem [shape: bf16[8,128], index: 1, kind: output, shape index: {}]
  %s2 = sld [smem:[#allocation0]]
  $region14: #{encoder_fwd.5} parent=0
    _
  %s4 = ssub.s32 1, %s2
  %s5 = scalar_select 0, %s4, %s2
  // Predicated region
  $region2: #{encoder_fwd.5} parent=0 // pred_check
    _
  $region3: #{encoder_fwd.5} parent=0 // pred_check_branch
    %7 = sbr.rel (0) target = $region5
  $region4: #{encoder_fwd.5} parent=0 // pred_region
    _
  $region5: #{encoder_fwd.5} parent=0 // pred_fallthru
    _
  %v8 = vld [vmem:[%s0] sm:$0xf]
  %v9 = vld [vmem:[%s0 + $0x4] sm:$0xf]
  %v10 = vld [vmem:[%s0 + $0x8] sm:$0xf]
  %v11 = vld [vmem:[%s0 + $0xc] sm:$0xf]
  %v12 = vunpack.c.l.bf16 %v8
  %v13 = vunpack.c.l.bf16 %v9
  %v14 = vunpack.c.l.bf16 %v10
  %v15 = vunpack.c.l.bf16 %v11
  %v16 = vadd.f32 %v12, %v13
  %v17 = vadd.f32 %v16, %v14
  %v18 = vadd.f32 %v17, %v15
  %v19 = vmul.f32 %v18, 0.25
  %v20 = vpack.c.bf16 %v19, %v19
  %21 = vst [vmem:[%s1] sm:$0xf] %v20
  // Predicated region
  $region6: #{encoder_fwd.5} parent=0 // pred_check
    _
  $region7: #{encoder_fwd.5} parent=0 // pred_check_branch
    %23 = sbr.rel (0) target = $region9
  $region8: #{encoder_fwd.5} parent=0 // pred_region
    _
  $region9: #{encoder_fwd.5} parent=0 // pred_fallthru
    _
  // Predicated region
  $region10: #{encoder_fwd.5} parent=0 // pred_check
    _
  $region11: #{encoder_fwd.5} parent=0 // pred_check_branch
    %25 = sbr.rel (0) target = $region13
  $region12: #{encoder_fwd.5} parent=0 // pred_region
    _
  $region13: #{encoder_fwd.5} parent=0 // pred_fallthru
    _

// kernel: encoder_fwd.4
$region0: #{encoder_fwd.4}
  #allocation0 [shape = 'u32[]', space=smem, size = 0x4, offset = 0x4, fixed_abs, tag = 'smem constant byte address 0x4 - core index']
  #allocation1 [shape = 'u32[72,128]{1,0:T(1,128)}', space=vmem, size = 0x9000, scoped, tag = 'internal scratch']
  #allocation2 [shape = 'bf16[8,686]{1,0:T(8,128)(2,1)}', space=vmem, size = 0x3000, scoped, tag = 'scratch operand']
  %s0 = inlined_call_operand.vmem [shape: bf16[4,686], index: 0, kind: input, shape index: {}]
  %s1 = inlined_call_operand.vmem [shape: f32[1,686], index: 1, kind: input, shape index: {}]
  %s2 = inlined_call_operand.vmem [shape: bf16[9,8,4], index: 2, kind: input, shape index: {}]
  %s3 = inlined_call_operand.vmem [shape: bf16[9,8,8], index: 3, kind: input, shape index: {}]
  %s4 = inlined_call_operand.vmem [shape: f32[8,1], index: 4, kind: input, shape index: {}]
  %s5 = inlined_call_operand.vmem [shape: f32[8,1], index: 5, kind: input, shape index: {}]
  %s6 = inlined_call_operand.vmem [shape: f32[8,1], index: 6, kind: input, shape index: {}]
  %s7 = inlined_call_operand.vmem [shape: f32[8,1], index: 7, kind: input, shape index: {}]
  %s8 = inlined_call_operand.vmem [shape: f32[4,1], index: 8, kind: input, shape index: {}]
  %s9 = inlined_call_operand.vmem [shape: f32[4,1], index: 9, kind: input, shape index: {}]
  %s10 = inlined_call_operand.vmem [shape: bf16[8,4], index: 10, kind: input, shape index: {}]
  %s11 = inlined_call_operand.vmem [shape: bf16[8,648], index: 11, kind: output, shape index: {}]
  %s12 = sld [smem:[#allocation0]]
  $region54: #{encoder_fwd.4} parent=0
    _
  %s14 = ssub.s32 1, %s12
  %s15 = scalar_select 0, %s14, %s12
  // Predicated region
  $region2: #{encoder_fwd.4} parent=0 // pred_check
    _
  $region3: #{encoder_fwd.4} parent=0 // pred_check_branch
    %17 = sbr.rel (0) target = $region5
  $region4: #{encoder_fwd.4} parent=0 // pred_region
    _
  $region5: #{encoder_fwd.4} parent=0 // pred_fallthru
    _
  // Predicated region
  $region6: #{encoder_fwd.4} parent=0 // pred_check
    _
  $region7: #{encoder_fwd.4} parent=0 // pred_check_branch
    %19 = sbr.rel (0) target = $region9
  $region8: #{encoder_fwd.4} parent=0 // pred_region
    _
  $region9: #{encoder_fwd.4} parent=0 // pred_fallthru
    _
  // Predicated region
  $region10: #{encoder_fwd.4} parent=0 // pred_check
    _
  $region11: #{encoder_fwd.4} parent=0 // pred_check_branch
    %21 = sbr.rel (0) target = $region13
  $region12: #{encoder_fwd.4} parent=0 // pred_region
    _
  $region13: #{encoder_fwd.4} parent=0 // pred_fallthru
    _
  // Predicated region
  $region14: #{encoder_fwd.4} parent=0 // pred_check
    _
  $region15: #{encoder_fwd.4} parent=0 // pred_check_branch
    %23 = sbr.rel (0) target = $region17
  $region16: #{encoder_fwd.4} parent=0 // pred_region
    _
  $region17: #{encoder_fwd.4} parent=0 // pred_fallthru
    _
  // Predicated region
  $region18: #{encoder_fwd.4} parent=0 // pred_check
    _
  $region19: #{encoder_fwd.4} parent=0 // pred_check_branch
    %25 = sbr.rel (0) target = $region21
  $region20: #{encoder_fwd.4} parent=0 // pred_region
    _
  $region21: #{encoder_fwd.4} parent=0 // pred_fallthru
    _
  // Predicated region
  $region22: #{encoder_fwd.4} parent=0 // pred_check
    _
  $region23: #{encoder_fwd.4} parent=0 // pred_check_branch
    %27 = sbr.rel (0) target = $region25
  $region24: #{encoder_fwd.4} parent=0 // pred_region
    _
  $region25: #{encoder_fwd.4} parent=0 // pred_fallthru
    _
  // Predicated region
  $region26: #{encoder_fwd.4} parent=0 // pred_check
    _
  $region27: #{encoder_fwd.4} parent=0 // pred_check_branch
    %29 = sbr.rel (0) target = $region29
  $region28: #{encoder_fwd.4} parent=0 // pred_region
    _
  $region29: #{encoder_fwd.4} parent=0 // pred_fallthru
    _
  // Predicated region
  $region30: #{encoder_fwd.4} parent=0 // pred_check
    _
  $region31: #{encoder_fwd.4} parent=0 // pred_check_branch
    %31 = sbr.rel (0) target = $region33
  $region32: #{encoder_fwd.4} parent=0 // pred_region
    _
  $region33: #{encoder_fwd.4} parent=0 // pred_fallthru
    _
  // Predicated region
  $region34: #{encoder_fwd.4} parent=0 // pred_check
    _
  $region35: #{encoder_fwd.4} parent=0 // pred_check_branch
    %33 = sbr.rel (0) target = $region37
  $region36: #{encoder_fwd.4} parent=0 // pred_region
    _
  $region37: #{encoder_fwd.4} parent=0 // pred_fallthru
    _
  // Predicated region
  $region38: #{encoder_fwd.4} parent=0 // pred_check
    _
  $region39: #{encoder_fwd.4} parent=0 // pred_check_branch
    %35 = sbr.rel (0) target = $region41
  $region40: #{encoder_fwd.4} parent=0 // pred_region
    _
  $region41: #{encoder_fwd.4} parent=0 // pred_fallthru
    _
  // Predicated region
  $region42: #{encoder_fwd.4} parent=0 // pred_check
    _
  $region43: #{encoder_fwd.4} parent=0 // pred_check_branch
    %37 = sbr.rel (0) target = $region45
  $region44: #{encoder_fwd.4} parent=0 // pred_region
    _
  $region45: #{encoder_fwd.4} parent=0 // pred_fallthru
    _
  %v39 = vld [vmem:[%s1] sm:$0x3f]
  %v40 = vld [vmem:[%s0] sm:$0xff]
  %v41 = vld [vmem:[%s0 + $0x8] sm:$0xf]
  %v42 = vunpack.c.l.bf16 %v40
  %v43 = vunpack.c.h.bf16 %v40
  %v44 = vunpack.c.l.bf16 %v41
  %v45 = vld [vmem:[%s8] sm:$0xf]
  %47 = vset.pattern.permute.xlu0 0
  %48 = vperm.xlu0 %47, %v45
  %v49 = vpop.permute.xlu0 %48
  %v51 = vunpack.c.l.s4 839922192
  %v52 = vunpack.c.0.s8 %v51
  %v53 = vperm.slane %v49, %v52
  %v55 = vmul.f32 %v42, %v53
  %v56 = vmul.f32 %v43, %v53
  %v57 = vmul.f32 %v44, %v53
  %v58 = vld [vmem:[%s9] sm:$0xf]
  %60 = vset.pattern.permute.xlu0 0
  %61 = vperm.xlu0 %60, %v58
  %v62 = vpop.permute.xlu0 %61
  %v64 = vunpack.c.l.s4 839922192
  %v65 = vunpack.c.0.s8 %v64
  %v66 = vperm.slane %v62, %v65
  %v68 = vadd.f32 %v55, %v66
  %v69 = vadd.f32 %v56, %v66
  %v70 = vadd.f32 %v57, %v66
  %v72 = vperm.slane %v39, 0
  %v73 = vperm.slane %v39, 1
  %v74 = vperm.slane %v39, 2
  %v75 = vperm.slane %v39, 3
  %v76 = vperm.slane %v39, 4
  %v77 = vperm.slane %v39, 5
  %v78 = vrot.slane %v73, 4
  %v79 = vrot.slane %v75, 4
  %v80 = vrot.slane %v77, 4
  %vm81 = vcmask 1043456
  %v82 = vsel %vm81, %v72, %v78
  %v83 = vsel %vm81, %v74, %v79
  %v84 = vsel %vm81, %v76, %v80
  %v88 = vmul.f32 %v68, %v82
  %v89 = vmul.f32 %v69, %v83
  %v90 = vmul.f32 %v70, %v84
  %94 = vst [vmem:[#allocation1] ss:$2 sm:$0xff] %v88
  %s95 = scalar_lea.vmem [#allocation1], 16
  %96 = vst [vmem:[%s95] ss:$2 sm:$0xff] %v89
  %s97 = scalar_lea.vmem [#allocation1], 32
  %98 = vst [vmem:[%s97] ss:$2 sm:$0xff] %v90
  %v99 = vld.sshfl [vmem:[#allocation1] sm:$0xff pattern:$0x75316420]
  %v100 = vld.sshfl [vmem:[#allocation1 + $0x8] sm:$0xff pattern:$0x75316420]
  %v101 = vld.sshfl [vmem:[#allocation1 + $0x10] sm:$0xff pattern:$0x75316420]
  %v102 = vld.sshfl [vmem:[#allocation1 + $0x18] sm:$0xff pattern:$0x75316420]
  %v103 = vld.sshfl [vmem:[#allocation1 + $0x20] sm:$0xff pattern:$0x75316420]
  %v104 = vld.sshfl [vmem:[#allocation1 + $0x28] sm:$0xff pattern:$0x75316420]
  %v111 = vpack.c.bf16 %v100, %v99
  %v112 = vpack.c.bf16 %v102, %v101
  %v113 = vpack.c.bf16 %v104, %v103
  %v114 = vld [vmem:[%s2] sm:$0xf]
  %s115 = scalar_lea.vmem %s2, 4
  %v116 = vld [vmem:[%s115] sm:$0xf]
  %v120 = vunpack.c.l.b16 %v111
  %v121 = vunpack.c.h.b16 %v111
  %v122 = vunpack.c.l.b16 %v112
  %v123 = vunpack.c.h.b16 %v112
  %v124 = vunpack.c.l.b16 %v113
  %v125 = vunpack.c.h.b16 %v113
  %v126 = vpack.c.b16 %v120, %v120
  %v127 = vpack.c.b16 %v121, %v121
  %v128 = vpack.c.b16 %v122, %v122
  %v129 = vpack.c.b16 %v123, %v123
  %v130 = vpack.c.b16 %v124, %v124
  %v131 = vpack.c.b16 %v125, %v125
  %132 = vrot.lane.b32.xlu0 %v126, 127
  %v133 = vpop.permute.xlu0 %132
  %134 = vrot.lane.b32.xlu0 %v127, 127
  %v135 = vpop.permute.xlu0 %134
  %136 = vrot.lane.b32.xlu0 %v128, 127
  %v137 = vpop.permute.xlu0 %136
  %138 = vrot.lane.b32.xlu0 %v129, 127
  %v139 = vpop.permute.xlu0 %138
  %140 = vrot.lane.b32.xlu0 %v130, 127
  %v141 = vpop.permute.xlu0 %140
  %142 = vrot.lane.b32.xlu0 %v131, 127
  %v143 = vpop.permute.xlu0 %142
  %vm144 = vcmask 1039360
  %v145 = vsel %vm144, %v133, %v135
  %v146 = vsel %vm144, %v135, %v137
  %v147 = vsel %vm144, %v137, %v139
  %v148 = vsel %vm144, %v139, %v141
  %v149 = vsel %vm144, %v141, %v143
  %vm150 = vcmask 31744
  %v152 = vsel %vm150, %v116, 0
  %vm154 = vcmask 1041408
  %v156 = vsel %vm154, %v145, 0
  %v159 = vsel %vm154, %v146, 0
  %v162 = vsel %vm154, %v147, 0
  %v165 = vsel %vm154, %v148, 0
  %v168 = vsel %vm154, %v149, 0
  %v171 = vsel %vm154, %v143, 0
  %173 = vmatpush.bf16.msra.mxu0 0
  %174 = vmatpush.bf16.msra.mxu0 0
  %175 = vmatpush.bf16.msra.mxu0 0
  %176 = vmatpush.bf16.msra.mxu0 0
  %177 = vmatpush.bf16.msra.mxu0 0
  %178 = vmatpush.bf16.msra.mxu0 0
  %179 = vmatpush.bf16.msra.mxu0 0
  %180 = vmatpush.bf16.msra.mxu0 %v156
  %181 = vmatmul.bf16.gmra.mxu0 %v152
  %v182 = vpop.f32.mrf.mxu0
  %v183 = vadd.f32 0.0, %v182
  %v184 = vpop.f32.mrf.mxu0
  %185 = vdwg.mxu0
  %186 = vmatpush.bf16.msra.mxu0 0
  %187 = vmatpush.bf16.msra.mxu0 0
  %188 = vmatpush.bf16.msra.mxu0 0
  %189 = vmatpush.bf16.msra.mxu0 0
  %190 = vmatpush.bf16.msra.mxu0 0
  %191 = vmatpush.bf16.msra.mxu0 0
  %192 = vmatpush.bf16.msra.mxu0 0
  %193 = vmatpush.bf16.msra.mxu0 %v159
  %194 = vmatmul.bf16.gmra.mxu0 %v152
  %v195 = vpop.f32.mrf.mxu0
  %v196 = vadd.f32 0.0, %v195
  %v197 = vpop.f32.mrf.mxu0
  %198 = vdwg.mxu0
  %199 = vmatpush.bf16.msra.mxu0 0
  %200 = vmatpush.bf16.msra.mxu0 0
  %201 = vmatpush.bf16.msra.mxu0 0
  %202 = vmatpush.bf16.msra.mxu0 0
  %203 = vmatpush.bf16.msra.mxu0 0
  %204 = vmatpush.bf16.msra.mxu0 0
  %205 = vmatpush.bf16.msra.mxu0 0
  %206 = vmatpush.bf16.msra.mxu0 %v162
  %207 = vmatmul.bf16.gmra.mxu0 %v152
  %v208 = vpop.f32.mrf.mxu0
  %v209 = vadd.f32 0.0, %v208
  %v210 = vpop.f32.mrf.mxu0
  %211 = vdwg.mxu0
  %212 = vmatpush.bf16.msra.mxu0 0
  %213 = vmatpush.bf16.msra.mxu0 0
  %214 = vmatpush.bf16.msra.mxu0 0
  %215 = vmatpush.bf16.msra.mxu0 0
  %216 = vmatpush.bf16.msra.mxu0 0
  %217 = vmatpush.bf16.msra.mxu0 0
  %218 = vmatpush.bf16.msra.mxu0 0
  %219 = vmatpush.bf16.msra.mxu0 %v165
  %220 = vmatmul.bf16.gmra.mxu0 %v152
  %v221 = vpop.f32.mrf.mxu0
  %v222 = vadd.f32 0.0, %v221
  %v223 = vpop.f32.mrf.mxu0
  %224 = vdwg.mxu0
  %225 = vmatpush.bf16.msra.mxu0 0
  %226 = vmatpush.bf16.msra.mxu0 0
  %227 = vmatpush.bf16.msra.mxu0 0
  %228 = vmatpush.bf16.msra.mxu0 0
  %229 = vmatpush.bf16.msra.mxu0 0
  %230 = vmatpush.bf16.msra.mxu0 0
  %231 = vmatpush.bf16.msra.mxu0 0
  %232 = vmatpush.bf16.msra.mxu0 %v168
  %233 = vmatmul.bf16.gmra.mxu0 %v152
  %v234 = vpop.f32.mrf.mxu0
  %v235 = vadd.f32 0.0, %v234
  %v236 = vpop.f32.mrf.mxu0
  %237 = vdwg.mxu0
  %238 = vmatpush.bf16.msra.mxu0 0
  %239 = vmatpush.bf16.msra.mxu0 0
  %240 = vmatpush.bf16.msra.mxu0 0
  %241 = vmatpush.bf16.msra.mxu0 0
  %242 = vmatpush.bf16.msra.mxu0 0
  %243 = vmatpush.bf16.msra.mxu0 0
  %244 = vmatpush.bf16.msra.mxu0 0
  %245 = vmatpush.bf16.msra.mxu0 %v171
  %246 = vmatmul.bf16.gmra.mxu0 %v152
  %v247 = vpop.f32.mrf.mxu0
  %v248 = vadd.f32 0.0, %v247
  %v249 = vpop.f32.mrf.mxu0
  %250 = vdwg.mxu0
  %v252 = vsel %vm150, %v114, 0
  %v255 = vsel %vm154, %v126, 0
  %v258 = vsel %vm154, %v127, 0
  %v261 = vsel %vm154, %v128, 0
  %v264 = vsel %vm154, %v129, 0
  %v267 = vsel %vm154, %v130, 0
  %v270 = vsel %vm154, %v131, 0
  %272 = vmatpush.bf16.msra.mxu0 0
  %273 = vmatpush.bf16.msra.mxu0 0
  %274 = vmatpush.bf16.msra.mxu0 0
  %275 = vmatpush.bf16.msra.mxu0 0
  %276 = vmatpush.bf16.msra.mxu0 0
  %277 = vmatpush.bf16.msra.mxu0 0
  %278 = vmatpush.bf16.msra.mxu0 0
  %279 = vmatpush.bf16.msra.mxu0 %v255
  %280 = vmatmul.bf16.gmra.mxu0 %v252
  %v281 = vpop.f32.mrf.mxu0
  %v282 = vadd.f32 %v183, %v281
  %v283 = vpop.f32.mrf.mxu0
  %284 = vdwg.mxu0
  %285 = vmatpush.bf16.msra.mxu0 0
  %286 = vmatpush.bf16.msra.mxu0 0
  %287 = vmatpush.bf16.msra.mxu0 0
  %288 = vmatpush.bf16.msra.mxu0 0
  %289 = vmatpush.bf16.msra.mxu0 0
  %290 = vmatpush.bf16.msra.mxu0 0
  %291 = vmatpush.bf16.msra.mxu0 0
  %292 = vmatpush.bf16.msra.mxu0 %v258
  %293 = vmatmul.bf16.gmra.mxu0 %v252
  %v294 = vpop.f32.mrf.mxu0
  %v295 = vadd.f32 %v196, %v294
  %v296 = vpop.f32.mrf.mxu0
  %297 = vdwg.mxu0
  %298 = vmatpush.bf16.msra.mxu0 0
  %299 = vmatpush.bf16.msra.mxu0 0
  %300 = vmatpush.bf16.msra.mxu0 0
  %301 = vmatpush.bf16.msra.mxu0 0
  %302 = vmatpush.bf16.msra.mxu0 0
  %303 = vmatpush.bf16.msra.mxu0 0
  %304 = vmatpush.bf16.msra.mxu0 0
  %305 = vmatpush.bf16.msra.mxu0 %v261
  %306 = vmatmul.bf16.gmra.mxu0 %v252
  %v307 = vpop.f32.mrf.mxu0
  %v308 = vadd.f32 %v209, %v307
  %v309 = vpop.f32.mrf.mxu0
  %310 = vdwg.mxu0
  %311 = vmatpush.bf16.msra.mxu0 0
  %312 = vmatpush.bf16.msra.mxu0 0
  %313 = vmatpush.bf16.msra.mxu0 0
  %314 = vmatpush.bf16.msra.mxu0 0
  %315 = vmatpush.bf16.msra.mxu0 0
  %316 = vmatpush.bf16.msra.mxu0 0
  %317 = vmatpush.bf16.msra.mxu0 0
  %318 = vmatpush.bf16.msra.mxu0 %v264
  %319 = vmatmul.bf16.gmra.mxu0 %v252
  %v320 = vpop.f32.mrf.mxu0
  %v321 = vadd.f32 %v222, %v320
  %v322 = vpop.f32.mrf.mxu0
  %323 = vdwg.mxu0
  %324 = vmatpush.bf16.msra.mxu0 0
  %325 = vmatpush.bf16.msra.mxu0 0
  %326 = vmatpush.bf16.msra.mxu0 0
  %327 = vmatpush.bf16.msra.mxu0 0
  %328 = vmatpush.bf16.msra.mxu0 0
  %329 = vmatpush.bf16.msra.mxu0 0
  %330 = vmatpush.bf16.msra.mxu0 0
  %331 = vmatpush.bf16.msra.mxu0 %v267
  %332 = vmatmul.bf16.gmra.mxu0 %v252
  %v333 = vpop.f32.mrf.mxu0
  %v334 = vadd.f32 %v235, %v333
  %v335 = vpop.f32.mrf.mxu0
  %336 = vdwg.mxu0
  %337 = vmatpush.bf16.msra.mxu0 0
  %338 = vmatpush.bf16.msra.mxu0 0
  %339 = vmatpush.bf16.msra.mxu0 0
  %340 = vmatpush.bf16.msra.mxu0 0
  %341 = vmatpush.bf16.msra.mxu0 0
  %342 = vmatpush.bf16.msra.mxu0 0
  %343 = vmatpush.bf16.msra.mxu0 0
  %344 = vmatpush.bf16.msra.mxu0 %v270
  %345 = vmatmul.bf16.gmra.mxu0 %v252
  %v346 = vpop.f32.mrf.mxu0
  %v347 = vadd.f32 %v248, %v346
  %v348 = vpop.f32.mrf.mxu0
  %349 = vdwg.mxu0
  %s350 = scalar_lea.vmem %s2, 8
  %v351 = vld [vmem:[%s350] sm:$0xf]
  %352 = vrot.lane.b32.xlu0 %v126, 126
  %v353 = vpop.permute.xlu0 %352
  %354 = vrot.lane.b32.xlu0 %v127, 126
  %v355 = vpop.permute.xlu0 %354
  %356 = vrot.lane.b32.xlu0 %v128, 126
  %v357 = vpop.permute.xlu0 %356
  %358 = vrot.lane.b32.xlu0 %v129, 126
  %v359 = vpop.permute.xlu0 %358
  %360 = vrot.lane.b32.xlu0 %v130, 126
  %v361 = vpop.permute.xlu0 %360
  %362 = vrot.lane.b32.xlu0 %v131, 126
  %v363 = vpop.permute.xlu0 %362
  %vm364 = vcmask 1031168
  %v365 = vsel %vm364, %v353, %v355
  %v366 = vsel %vm364, %v355, %v357
  %v367 = vsel %vm364, %v357, %v359
  %v368 = vsel %vm364, %v359, %v361
  %v369 = vsel %vm364, %v361, %v363
  %v371 = vsel %vm150, %v351, 0
  %v374 = vsel %vm154, %v365, 0
  %v377 = vsel %vm154, %v366, 0
  %v380 = vsel %vm154, %v367, 0
  %v383 = vsel %vm154, %v368, 0
  %v386 = vsel %vm154, %v369, 0
  %v389 = vsel %vm154, %v363, 0
  %391 = vmatpush.bf16.msra.mxu0 0
  %392 = vmatpush.bf16.msra.mxu0 0
  %393 = vmatpush.bf16.msra.mxu0 0
  %394 = vmatpush.bf16.msra.mxu0 0
  %395 = vmatpush.bf16.msra.mxu0 0
  %396 = vmatpush.bf16.msra.mxu0 0
  %397 = vmatpush.bf16.msra.mxu0 0
  %398 = vmatpush.bf16.msra.mxu0 %v374
  %399 = vmatmul.bf16.gmra.mxu0 %v371
  %v400 = vpop.f32.mrf.mxu0
  %v401 = vadd.f32 0.0, %v400
  %v402 = vpop.f32.mrf.mxu0
  %403 = vdwg.mxu0
  %404 = vmatpush.bf16.msra.mxu0 0
  %405 = vmatpush.bf16.msra.mxu0 0
  %406 = vmatpush.bf16.msra.mxu0 0
  %407 = vmatpush.bf16.msra.mxu0 0
  %408 = vmatpush.bf16.msra.mxu0 0
  %409 = vmatpush.bf16.msra.mxu0 0
  %410 = vmatpush.bf16.msra.mxu0 0
  %411 = vmatpush.bf16.msra.mxu0 %v377
  %412 = vmatmul.bf16.gmra.mxu0 %v371
  %v413 = vpop.f32.mrf.mxu0
  %v414 = vadd.f32 0.0, %v413
  %v415 = vpop.f32.mrf.mxu0
  %416 = vdwg.mxu0
  %417 = vmatpush.bf16.msra.mxu0 0
  %418 = vmatpush.bf16.msra.mxu0 0
  %419 = vmatpush.bf16.msra.mxu0 0
  %420 = vmatpush.bf16.msra.mxu0 0
  %421 = vmatpush.bf16.msra.mxu0 0
  %422 = vmatpush.bf16.msra.mxu0 0
  %423 = vmatpush.bf16.msra.mxu0 0
  %424 = vmatpush.bf16.msra.mxu0 %v380
  %425 = vmatmul.bf16.gmra.mxu0 %v371
  %v426 = vpop.f32.mrf.mxu0
  %v427 = vadd.f32 0.0, %v426
  %v428 = vpop.f32.mrf.mxu0
  %429 = vdwg.mxu0
  %430 = vmatpush.bf16.msra.mxu0 0
  %431 = vmatpush.bf16.msra.mxu0 0
  %432 = vmatpush.bf16.msra.mxu0 0
  %433 = vmatpush.bf16.msra.mxu0 0
  %434 = vmatpush.bf16.msra.mxu0 0
  %435 = vmatpush.bf16.msra.mxu0 0
  %436 = vmatpush.bf16.msra.mxu0 0
  %437 = vmatpush.bf16.msra.mxu0 %v383
  %438 = vmatmul.bf16.gmra.mxu0 %v371
  %v439 = vpop.f32.mrf.mxu0
  %v440 = vadd.f32 0.0, %v439
  %v441 = vpop.f32.mrf.mxu0
  %442 = vdwg.mxu0
  %443 = vmatpush.bf16.msra.mxu0 0
  %444 = vmatpush.bf16.msra.mxu0 0
  %445 = vmatpush.bf16.msra.mxu0 0
  %446 = vmatpush.bf16.msra.mxu0 0
  %447 = vmatpush.bf16.msra.mxu0 0
  %448 = vmatpush.bf16.msra.mxu0 0
  %449 = vmatpush.bf16.msra.mxu0 0
  %450 = vmatpush.bf16.msra.mxu0 %v386
  %451 = vmatmul.bf16.gmra.mxu0 %v371
  %v452 = vpop.f32.mrf.mxu0
  %v453 = vadd.f32 0.0, %v452
  %v454 = vpop.f32.mrf.mxu0
  %455 = vdwg.mxu0
  %456 = vmatpush.bf16.msra.mxu0 0
  %457 = vmatpush.bf16.msra.mxu0 0
  %458 = vmatpush.bf16.msra.mxu0 0
  %459 = vmatpush.bf16.msra.mxu0 0
  %460 = vmatpush.bf16.msra.mxu0 0
  %461 = vmatpush.bf16.msra.mxu0 0
  %462 = vmatpush.bf16.msra.mxu0 0
  %463 = vmatpush.bf16.msra.mxu0 %v389
  %464 = vmatmul.bf16.gmra.mxu0 %v371
  %v465 = vpop.f32.mrf.mxu0
  %v466 = vadd.f32 0.0, %v465
  %v467 = vpop.f32.mrf.mxu0
  %468 = vdwg.mxu0
  %v469 = vadd.f32 %v282, %v401
  %v470 = vadd.f32 %v295, %v414
  %v471 = vadd.f32 %v308, %v427
  %v472 = vadd.f32 %v321, %v440
  %v473 = vadd.f32 %v334, %v453
  %v474 = vadd.f32 %v347, %v466
  %s475 = scalar_lea.vmem %s2, 12
  %v476 = vld [vmem:[%s475] sm:$0xf]
  %477 = vrot.lane.b32.xlu0 %v126, 110
  %v478 = vpop.permute.xlu0 %477
  %479 = vrot.lane.b32.xlu0 %v127, 110
  %v480 = vpop.permute.xlu0 %479
  %481 = vrot.lane.b32.xlu0 %v128, 110
  %v482 = vpop.permute.xlu0 %481
  %483 = vrot.lane.b32.xlu0 %v129, 110
  %v484 = vpop.permute.xlu0 %483
  %485 = vrot.lane.b32.xlu0 %v130, 110
  %v486 = vpop.permute.xlu0 %485
  %487 = vrot.lane.b32.xlu0 %v131, 110
  %v488 = vpop.permute.xlu0 %487
  %vm489 = vcmask 900096
  %v490 = vsel %vm489, %v478, %v480
  %v491 = vsel %vm489, %v480, %v482
  %v492 = vsel %vm489, %v482, %v484
  %v493 = vsel %vm489, %v484, %v486
  %v494 = vsel %vm489, %v486, %v488
  %v496 = vsel %vm150, %v476, 0
  %v499 = vsel %vm154, %v490, 0
  %v502 = vsel %vm154, %v491, 0
  %v505 = vsel %vm154, %v492, 0
  %v508 = vsel %vm154, %v493, 0
  %v511 = vsel %vm154, %v494, 0
  %v514 = vsel %vm154, %v488, 0
  %516 = vmatpush.bf16.msra.mxu0 0
  %517 = vmatpush.bf16.msra.mxu0 0
  %518 = vmatpush.bf16.msra.mxu0 0
  %519 = vmatpush.bf16.msra.mxu0 0
  %520 = vmatpush.bf16.msra.mxu0 0
  %521 = vmatpush.bf16.msra.mxu0 0
  %522 = vmatpush.bf16.msra.mxu0 0
  %523 = vmatpush.bf16.msra.mxu0 %v499
  %524 = vmatmul.bf16.gmra.mxu0 %v496
  %v525 = vpop.f32.mrf.mxu0
  %v526 = vadd.f32 0.0, %v525
  %v527 = vpop.f32.mrf.mxu0
  %528 = vdwg.mxu0
  %529 = vmatpush.bf16.msra.mxu0 0
  %530 = vmatpush.bf16.msra.mxu0 0
  %531 = vmatpush.bf16.msra.mxu0 0
  %532 = vmatpush.bf16.msra.mxu0 0
  %533 = vmatpush.bf16.msra.mxu0 0
  %534 = vmatpush.bf16.msra.mxu0 0
  %535 = vmatpush.bf16.msra.mxu0 0
  %536 = vmatpush.bf16.msra.mxu0 %v502
  %537 = vmatmul.bf16.gmra.mxu0 %v496
  %v538 = vpop.f32.mrf.mxu0
  %v539 = vadd.f32 0.0, %v538
  %v540 = vpop.f32.mrf.mxu0
  %541 = vdwg.mxu0
  %542 = vmatpush.bf16.msra.mxu0 0
  %543 = vmatpush.bf16.msra.mxu0 0
  %544 = vmatpush.bf16.msra.mxu0 0
  %545 = vmatpush.bf16.msra.mxu0 0
  %546 = vmatpush.bf16.msra.mxu0 0
  %547 = vmatpush.bf16.msra.mxu0 0
  %548 = vmatpush.bf16.msra.mxu0 0
  %549 = vmatpush.bf16.msra.mxu0 %v505
  %550 = vmatmul.bf16.gmra.mxu0 %v496
  %v551 = vpop.f32.mrf.mxu0
  %v552 = vadd.f32 0.0, %v551
  %v553 = vpop.f32.mrf.mxu0
  %554 = vdwg.mxu0
  %555 = vmatpush.bf16.msra.mxu0 0
  %556 = vmatpush.bf16.msra.mxu0 0
  %557 = vmatpush.bf16.msra.mxu0 0
  %558 = vmatpush.bf16.msra.mxu0 0
  %559 = vmatpush.bf16.msra.mxu0 0
  %560 = vmatpush.bf16.msra.mxu0 0
  %561 = vmatpush.bf16.msra.mxu0 0
  %562 = vmatpush.bf16.msra.mxu0 %v508
  %563 = vmatmul.bf16.gmra.mxu0 %v496
  %v564 = vpop.f32.mrf.mxu0
  %v565 = vadd.f32 0.0, %v564
  %v566 = vpop.f32.mrf.mxu0
  %567 = vdwg.mxu0
  %568 = vmatpush.bf16.msra.mxu0 0
  %569 = vmatpush.bf16.msra.mxu0 0
  %570 = vmatpush.bf16.msra.mxu0 0
  %571 = vmatpush.bf16.msra.mxu0 0
  %572 = vmatpush.bf16.msra.mxu0 0
  %573 = vmatpush.bf16.msra.mxu0 0
  %574 = vmatpush.bf16.msra.mxu0 0
  %575 = vmatpush.bf16.msra.mxu0 %v511
  %576 = vmatmul.bf16.gmra.mxu0 %v496
  %v577 = vpop.f32.mrf.mxu0
  %v578 = vadd.f32 0.0, %v577
  %v579 = vpop.f32.mrf.mxu0
  %580 = vdwg.mxu0
  %581 = vmatpush.bf16.msra.mxu0 0
  %582 = vmatpush.bf16.msra.mxu0 0
  %583 = vmatpush.bf16.msra.mxu0 0
  %584 = vmatpush.bf16.msra.mxu0 0
  %585 = vmatpush.bf16.msra.mxu0 0
  %586 = vmatpush.bf16.msra.mxu0 0
  %587 = vmatpush.bf16.msra.mxu0 0
  %588 = vmatpush.bf16.msra.mxu0 %v514
  %589 = vmatmul.bf16.gmra.mxu0 %v496
  %v590 = vpop.f32.mrf.mxu0
  %v591 = vadd.f32 0.0, %v590
  %v592 = vpop.f32.mrf.mxu0
  %593 = vdwg.mxu0
  %v594 = vadd.f32 %v469, %v526
  %v595 = vadd.f32 %v470, %v539
  %v596 = vadd.f32 %v471, %v552
  %v597 = vadd.f32 %v472, %v565
  %v598 = vadd.f32 %v473, %v578
  %v599 = vadd.f32 %v474, %v591
  %s600 = scalar_lea.vmem %s2, 16
  %v601 = vld [vmem:[%s600] sm:$0xf]
  %602 = vrot.lane.b32.xlu0 %v126, 109
  %v603 = vpop.permute.xlu0 %602
  %604 = vrot.lane.b32.xlu0 %v127, 109
  %v605 = vpop.permute.xlu0 %604
  %606 = vrot.lane.b32.xlu0 %v128, 109
  %v607 = vpop.permute.xlu0 %606
  %608 = vrot.lane.b32.xlu0 %v129, 109
  %v609 = vpop.permute.xlu0 %608
  %610 = vrot.lane.b32.xlu0 %v130, 109
  %v611 = vpop.permute.xlu0 %610
  %612 = vrot.lane.b32.xlu0 %v131, 109
  %v613 = vpop.permute.xlu0 %612
  %vm614 = vcmask 891904
  %v615 = vsel %vm614, %v603, %v605
  %v616 = vsel %vm614, %v605, %v607
  %v617 = vsel %vm614, %v607, %v609
  %v618 = vsel %vm614, %v609, %v611
  %v619 = vsel %vm614, %v611, %v613
  %v621 = vsel %vm150, %v601, 0
  %v624 = vsel %vm154, %v615, 0
  %v627 = vsel %vm154, %v616, 0
  %v630 = vsel %vm154, %v617, 0
  %v633 = vsel %vm154, %v618, 0
  %v636 = vsel %vm154, %v619, 0
  %v639 = vsel %vm154, %v613, 0
  %641 = vmatpush.bf16.msra.mxu0 0
  %642 = vmatpush.bf16.msra.mxu0 0
  %643 = vmatpush.bf16.msra.mxu0 0
  %644 = vmatpush.bf16.msra.mxu0 0
  %645 = vmatpush.bf16.msra.mxu0 0
  %646 = vmatpush.bf16.msra.mxu0 0
  %647 = vmatpush.bf16.msra.mxu0 0
  %648 = vmatpush.bf16.msra.mxu0 %v624
  %649 = vmatmul.bf16.gmra.mxu0 %v621
  %v650 = vpop.f32.mrf.mxu0
  %v651 = vadd.f32 0.0, %v650
  %v652 = vpop.f32.mrf.mxu0
  %653 = vdwg.mxu0
  %654 = vmatpush.bf16.msra.mxu0 0
  %655 = vmatpush.bf16.msra.mxu0 0
  %656 = vmatpush.bf16.msra.mxu0 0
  %657 = vmatpush.bf16.msra.mxu0 0
  %658 = vmatpush.bf16.msra.mxu0 0
  %659 = vmatpush.bf16.msra.mxu0 0
  %660 = vmatpush.bf16.msra.mxu0 0
  %661 = vmatpush.bf16.msra.mxu0 %v627
  %662 = vmatmul.bf16.gmra.mxu0 %v621
  %v663 = vpop.f32.mrf.mxu0
  %v664 = vadd.f32 0.0, %v663
  %v665 = vpop.f32.mrf.mxu0
  %666 = vdwg.mxu0
  %667 = vmatpush.bf16.msra.mxu0 0
  %668 = vmatpush.bf16.msra.mxu0 0
  %669 = vmatpush.bf16.msra.mxu0 0
  %670 = vmatpush.bf16.msra.mxu0 0
  %671 = vmatpush.bf16.msra.mxu0 0
  %672 = vmatpush.bf16.msra.mxu0 0
  %673 = vmatpush.bf16.msra.mxu0 0
  %674 = vmatpush.bf16.msra.mxu0 %v630
  %675 = vmatmul.bf16.gmra.mxu0 %v621
  %v676 = vpop.f32.mrf.mxu0
  %v677 = vadd.f32 0.0, %v676
  %v678 = vpop.f32.mrf.mxu0
  %679 = vdwg.mxu0
  %680 = vmatpush.bf16.msra.mxu0 0
  %681 = vmatpush.bf16.msra.mxu0 0
  %682 = vmatpush.bf16.msra.mxu0 0
  %683 = vmatpush.bf16.msra.mxu0 0
  %684 = vmatpush.bf16.msra.mxu0 0
  %685 = vmatpush.bf16.msra.mxu0 0
  %686 = vmatpush.bf16.msra.mxu0 0
  %687 = vmatpush.bf16.msra.mxu0 %v633
  %688 = vmatmul.bf16.gmra.mxu0 %v621
  %v689 = vpop.f32.mrf.mxu0
  %v690 = vadd.f32 0.0, %v689
  %v691 = vpop.f32.mrf.mxu0
  %692 = vdwg.mxu0
  %693 = vmatpush.bf16.msra.mxu0 0
  %694 = vmatpush.bf16.msra.mxu0 0
  %695 = vmatpush.bf16.msra.mxu0 0
  %696 = vmatpush.bf16.msra.mxu0 0
  %697 = vmatpush.bf16.msra.mxu0 0
  %698 = vmatpush.bf16.msra.mxu0 0
  %699 = vmatpush.bf16.msra.mxu0 0
  %700 = vmatpush.bf16.msra.mxu0 %v636
  %701 = vmatmul.bf16.gmra.mxu0 %v621
  %v702 = vpop.f32.mrf.mxu0
  %v703 = vadd.f32 0.0, %v702
  %v704 = vpop.f32.mrf.mxu0
  %705 = vdwg.mxu0
  %706 = vmatpush.bf16.msra.mxu0 0
  %707 = vmatpush.bf16.msra.mxu0 0
  %708 = vmatpush.bf16.msra.mxu0 0
  %709 = vmatpush.bf16.msra.mxu0 0
  %710 = vmatpush.bf16.msra.mxu0 0
  %711 = vmatpush.bf16.msra.mxu0 0
  %712 = vmatpush.bf16.msra.mxu0 0
  %713 = vmatpush.bf16.msra.mxu0 %v639
  %714 = vmatmul.bf16.gmra.mxu0 %v621
  %v715 = vpop.f32.mrf.mxu0
  %v716 = vadd.f32 0.0, %v715
  %v717 = vpop.f32.mrf.mxu0
  %718 = vdwg.mxu0
  %v719 = vadd.f32 %v594, %v651
  %v720 = vadd.f32 %v595, %v664
  %v721 = vadd.f32 %v596, %v677
  %v722 = vadd.f32 %v597, %v690
  %v723 = vadd.f32 %v598, %v703
  %v724 = vadd.f32 %v599, %v716
  %s725 = scalar_lea.vmem %s2, 20
  %v726 = vld [vmem:[%s725] sm:$0xf]
  %727 = vrot.lane.b32.xlu0 %v126, 108
  %v728 = vpop.permute.xlu0 %727
  %729 = vrot.lane.b32.xlu0 %v127, 108
  %v730 = vpop.permute.xlu0 %729
  %731 = vrot.lane.b32.xlu0 %v128, 108
  %v732 = vpop.permute.xlu0 %731
  %733 = vrot.lane.b32.xlu0 %v129, 108
  %v734 = vpop.permute.xlu0 %733
  %735 = vrot.lane.b32.xlu0 %v130, 108
  %v736 = vpop.permute.xlu0 %735
  %737 = vrot.lane.b32.xlu0 %v131, 108
  %v738 = vpop.permute.xlu0 %737
  %vm739 = vcmask 883712
  %v740 = vsel %vm739, %v728, %v730
  %v741 = vsel %vm739, %v730, %v732
  %v742 = vsel %vm739, %v732, %v734
  %v743 = vsel %vm739, %v734, %v736
  %v744 = vsel %vm739, %v736, %v738
  %v746 = vsel %vm150, %v726, 0
  %v749 = vsel %vm154, %v740, 0
  %v752 = vsel %vm154, %v741, 0
  %v755 = vsel %vm154, %v742, 0
  %v758 = vsel %vm154, %v743, 0
  %v761 = vsel %vm154, %v744, 0
  %v764 = vsel %vm154, %v738, 0
  %766 = vmatpush.bf16.msra.mxu0 0
  %767 = vmatpush.bf16.msra.mxu0 0
  %768 = vmatpush.bf16.msra.mxu0 0
  %769 = vmatpush.bf16.msra.mxu0 0
  %770 = vmatpush.bf16.msra.mxu0 0
  %771 = vmatpush.bf16.msra.mxu0 0
  %772 = vmatpush.bf16.msra.mxu0 0
  %773 = vmatpush.bf16.msra.mxu0 %v749
  %774 = vmatmul.bf16.gmra.mxu0 %v746
  %v775 = vpop.f32.mrf.mxu0
  %v776 = vadd.f32 0.0, %v775
  %v777 = vpop.f32.mrf.mxu0
  %778 = vdwg.mxu0
  %779 = vmatpush.bf16.msra.mxu0 0
  %780 = vmatpush.bf16.msra.mxu0 0
  %781 = vmatpush.bf16.msra.mxu0 0
  %782 = vmatpush.bf16.msra.mxu0 0
  %783 = vmatpush.bf16.msra.mxu0 0
  %784 = vmatpush.bf16.msra.mxu0 0
  %785 = vmatpush.bf16.msra.mxu0 0
  %786 = vmatpush.bf16.msra.mxu0 %v752
  %787 = vmatmul.bf16.gmra.mxu0 %v746
  %v788 = vpop.f32.mrf.mxu0
  %v789 = vadd.f32 0.0, %v788
  %v790 = vpop.f32.mrf.mxu0
  %791 = vdwg.mxu0
  %792 = vmatpush.bf16.msra.mxu0 0
  %793 = vmatpush.bf16.msra.mxu0 0
  %794 = vmatpush.bf16.msra.mxu0 0
  %795 = vmatpush.bf16.msra.mxu0 0
  %796 = vmatpush.bf16.msra.mxu0 0
  %797 = vmatpush.bf16.msra.mxu0 0
  %798 = vmatpush.bf16.msra.mxu0 0
  %799 = vmatpush.bf16.msra.mxu0 %v755
  %800 = vmatmul.bf16.gmra.mxu0 %v746
  %v801 = vpop.f32.mrf.mxu0
  %v802 = vadd.f32 0.0, %v801
  %v803 = vpop.f32.mrf.mxu0
  %804 = vdwg.mxu0
  %805 = vmatpush.bf16.msra.mxu0 0
  %806 = vmatpush.bf16.msra.mxu0 0
  %807 = vmatpush.bf16.msra.mxu0 0
  %808 = vmatpush.bf16.msra.mxu0 0
  %809 = vmatpush.bf16.msra.mxu0 0
  %810 = vmatpush.bf16.msra.mxu0 0
  %811 = vmatpush.bf16.msra.mxu0 0
  %812 = vmatpush.bf16.msra.mxu0 %v758
  %813 = vmatmul.bf16.gmra.mxu0 %v746
  %v814 = vpop.f32.mrf.mxu0
  %v815 = vadd.f32 0.0, %v814
  %v816 = vpop.f32.mrf.mxu0
  %817 = vdwg.mxu0
  %818 = vmatpush.bf16.msra.mxu0 0
  %819 = vmatpush.bf16.msra.mxu0 0
  %820 = vmatpush.bf16.msra.mxu0 0
  %821 = vmatpush.bf16.msra.mxu0 0
  %822 = vmatpush.bf16.msra.mxu0 0
  %823 = vmatpush.bf16.msra.mxu0 0
  %824 = vmatpush.bf16.msra.mxu0 0
  %825 = vmatpush.bf16.msra.mxu0 %v761
  %826 = vmatmul.bf16.gmra.mxu0 %v746
  %v827 = vpop.f32.mrf.mxu0
  %v828 = vadd.f32 0.0, %v827
  %v829 = vpop.f32.mrf.mxu0
  %830 = vdwg.mxu0
  %831 = vmatpush.bf16.msra.mxu0 0
  %832 = vmatpush.bf16.msra.mxu0 0
  %833 = vmatpush.bf16.msra.mxu0 0
  %834 = vmatpush.bf16.msra.mxu0 0
  %835 = vmatpush.bf16.msra.mxu0 0
  %836 = vmatpush.bf16.msra.mxu0 0
  %837 = vmatpush.bf16.msra.mxu0 0
  %838 = vmatpush.bf16.msra.mxu0 %v764
  %839 = vmatmul.bf16.gmra.mxu0 %v746
  %v840 = vpop.f32.mrf.mxu0
  %v841 = vadd.f32 0.0, %v840
  %v842 = vpop.f32.mrf.mxu0
  %843 = vdwg.mxu0
  %v844 = vadd.f32 %v719, %v776
  %v845 = vadd.f32 %v720, %v789
  %v846 = vadd.f32 %v721, %v802
  %v847 = vadd.f32 %v722, %v815
  %v848 = vadd.f32 %v723, %v828
  %v849 = vadd.f32 %v724, %v841
  %s850 = scalar_lea.vmem %s2, 24
  %v851 = vld [vmem:[%s850] sm:$0xf]
  %852 = vrot.lane.b32.xlu0 %v126, 92
  %v853 = vpop.permute.xlu0 %852
  %854 = vrot.lane.b32.xlu0 %v127, 92
  %v855 = vpop.permute.xlu0 %854
  %856 = vrot.lane.b32.xlu0 %v128, 92
  %v857 = vpop.permute.xlu0 %856
  %858 = vrot.lane.b32.xlu0 %v129, 92
  %v859 = vpop.permute.xlu0 %858
  %860 = vrot.lane.b32.xlu0 %v130, 92
  %v861 = vpop.permute.xlu0 %860
  %862 = vrot.lane.b32.xlu0 %v131, 92
  %v863 = vpop.permute.xlu0 %862
  %vm864 = vcmask 752640
  %v865 = vsel %vm864, %v853, %v855
  %v866 = vsel %vm864, %v855, %v857
  %v867 = vsel %vm864, %v857, %v859
  %v868 = vsel %vm864, %v859, %v861
  %v869 = vsel %vm864, %v861, %v863
  %v871 = vsel %vm150, %v851, 0
  %v874 = vsel %vm154, %v865, 0
  %v877 = vsel %vm154, %v866, 0
  %v880 = vsel %vm154, %v867, 0
  %v883 = vsel %vm154, %v868, 0
  %v886 = vsel %vm154, %v869, 0
  %v889 = vsel %vm154, %v863, 0
  %891 = vmatpush.bf16.msra.mxu0 0
  %892 = vmatpush.bf16.msra.mxu0 0
  %893 = vmatpush.bf16.msra.mxu0 0
  %894 = vmatpush.bf16.msra.mxu0 0
  %895 = vmatpush.bf16.msra.mxu0 0
  %896 = vmatpush.bf16.msra.mxu0 0
  %897 = vmatpush.bf16.msra.mxu0 0
  %898 = vmatpush.bf16.msra.mxu0 %v874
  %899 = vmatmul.bf16.gmra.mxu0 %v871
  %v900 = vpop.f32.mrf.mxu0
  %v901 = vadd.f32 0.0, %v900
  %v902 = vpop.f32.mrf.mxu0
  %903 = vdwg.mxu0
  %904 = vmatpush.bf16.msra.mxu0 0
  %905 = vmatpush.bf16.msra.mxu0 0
  %906 = vmatpush.bf16.msra.mxu0 0
  %907 = vmatpush.bf16.msra.mxu0 0
  %908 = vmatpush.bf16.msra.mxu0 0
  %909 = vmatpush.bf16.msra.mxu0 0
  %910 = vmatpush.bf16.msra.mxu0 0
  %911 = vmatpush.bf16.msra.mxu0 %v877
  %912 = vmatmul.bf16.gmra.mxu0 %v871
  %v913 = vpop.f32.mrf.mxu0
  %v914 = vadd.f32 0.0, %v913
  %v915 = vpop.f32.mrf.mxu0
  %916 = vdwg.mxu0
  %917 = vmatpush.bf16.msra.mxu0 0
  %918 = vmatpush.bf16.msra.mxu0 0
  %919 = vmatpush.bf16.msra.mxu0 0
  %920 = vmatpush.bf16.msra.mxu0 0
  %921 = vmatpush.bf16.msra.mxu0 0
  %922 = vmatpush.bf16.msra.mxu0 0
  %923 = vmatpush.bf16.msra.mxu0 0
  %924 = vmatpush.bf16.msra.mxu0 %v880
  %925 = vmatmul.bf16.gmra.mxu0 %v871
  %v926 = vpop.f32.mrf.mxu0
  %v927 = vadd.f32 0.0, %v926
  %v928 = vpop.f32.mrf.mxu0
  %929 = vdwg.mxu0
  %930 = vmatpush.bf16.msra.mxu0 0
  %931 = vmatpush.bf16.msra.mxu0 0
  %932 = vmatpush.bf16.msra.mxu0 0
  %933 = vmatpush.bf16.msra.mxu0 0
  %934 = vmatpush.bf16.msra.mxu0 0
  %935 = vmatpush.bf16.msra.mxu0 0
  %936 = vmatpush.bf16.msra.mxu0 0
  %937 = vmatpush.bf16.msra.mxu0 %v883
  %938 = vmatmul.bf16.gmra.mxu0 %v871
  %v939 = vpop.f32.mrf.mxu0
  %v940 = vadd.f32 0.0, %v939
  %v941 = vpop.f32.mrf.mxu0
  %942 = vdwg.mxu0
  %943 = vmatpush.bf16.msra.mxu0 0
  %944 = vmatpush.bf16.msra.mxu0 0
  %945 = vmatpush.bf16.msra.mxu0 0
  %946 = vmatpush.bf16.msra.mxu0 0
  %947 = vmatpush.bf16.msra.mxu0 0
  %948 = vmatpush.bf16.msra.mxu0 0
  %949 = vmatpush.bf16.msra.mxu0 0
  %950 = vmatpush.bf16.msra.mxu0 %v886
  %951 = vmatmul.bf16.gmra.mxu0 %v871
  %v952 = vpop.f32.mrf.mxu0
  %v953 = vadd.f32 0.0, %v952
  %v954 = vpop.f32.mrf.mxu0
  %955 = vdwg.mxu0
  %956 = vmatpush.bf16.msra.mxu0 0
  %957 = vmatpush.bf16.msra.mxu0 0
  %958 = vmatpush.bf16.msra.mxu0 0
  %959 = vmatpush.bf16.msra.mxu0 0
  %960 = vmatpush.bf16.msra.mxu0 0
  %961 = vmatpush.bf16.msra.mxu0 0
  %962 = vmatpush.bf16.msra.mxu0 0
  %963 = vmatpush.bf16.msra.mxu0 %v889
  %964 = vmatmul.bf16.gmra.mxu0 %v871
  %v965 = vpop.f32.mrf.mxu0
  %v966 = vadd.f32 0.0, %v965
  %v967 = vpop.f32.mrf.mxu0
  %968 = vdwg.mxu0
  %v969 = vadd.f32 %v844, %v901
  %v970 = vadd.f32 %v845, %v914
  %v971 = vadd.f32 %v846, %v927
  %v972 = vadd.f32 %v847, %v940
  %v973 = vadd.f32 %v848, %v953
  %v974 = vadd.f32 %v849, %v966
  %s975 = scalar_lea.vmem %s2, 28
  %v976 = vld [vmem:[%s975] sm:$0xf]
  %977 = vrot.lane.b32.xlu0 %v126, 91
  %v978 = vpop.permute.xlu0 %977
  %979 = vrot.lane.b32.xlu0 %v127, 91
  %v980 = vpop.permute.xlu0 %979
  %981 = vrot.lane.b32.xlu0 %v128, 91
  %v982 = vpop.permute.xlu0 %981
  %983 = vrot.lane.b32.xlu0 %v129, 91
  %v984 = vpop.permute.xlu0 %983
  %985 = vrot.lane.b32.xlu0 %v130, 91
  %v986 = vpop.permute.xlu0 %985
  %987 = vrot.lane.b32.xlu0 %v131, 91
  %v988 = vpop.permute.xlu0 %987
  %vm989 = vcmask 744448
  %v990 = vsel %vm989, %v978, %v980
  %v991 = vsel %vm989, %v980, %v982
  %v992 = vsel %vm989, %v982, %v984
  %v993 = vsel %vm989, %v984, %v986
  %v994 = vsel %vm989, %v986, %v988
  %v996 = vsel %vm150, %v976, 0
  %v999 = vsel %vm154, %v990, 0
  %v1002 = vsel %vm154, %v991, 0
  %v1005 = vsel %vm154, %v992, 0
  %v1008 = vsel %vm154, %v993, 0
  %v1011 = vsel %vm154, %v994, 0
  %v1014 = vsel %vm154, %v988, 0
  %1016 = vmatpush.bf16.msra.mxu0 0
  %1017 = vmatpush.bf16.msra.mxu0 0
  %1018 = vmatpush.bf16.msra.mxu0 0
  %1019 = vmatpush.bf16.msra.mxu0 0
  %1020 = vmatpush.bf16.msra.mxu0 0
  %1021 = vmatpush.bf16.msra.mxu0 0
  %1022 = vmatpush.bf16.msra.mxu0 0
  %1023 = vmatpush.bf16.msra.mxu0 %v999
  %1024 = vmatmul.bf16.gmra.mxu0 %v996
  %v1025 = vpop.f32.mrf.mxu0
  %v1026 = vadd.f32 0.0, %v1025
  %v1027 = vpop.f32.mrf.mxu0
  %1028 = vdwg.mxu0
  %1029 = vmatpush.bf16.msra.mxu0 0
  %1030 = vmatpush.bf16.msra.mxu0 0
  %1031 = vmatpush.bf16.msra.mxu0 0
  %1032 = vmatpush.bf16.msra.mxu0 0
  %1033 = vmatpush.bf16.msra.mxu0 0
  %1034 = vmatpush.bf16.msra.mxu0 0
  %1035 = vmatpush.bf16.msra.mxu0 0
  %1036 = vmatpush.bf16.msra.mxu0 %v1002
  %1037 = vmatmul.bf16.gmra.mxu0 %v996
  %v1038 = vpop.f32.mrf.mxu0
  %v1039 = vadd.f32 0.0, %v1038
  %v1040 = vpop.f32.mrf.mxu0
  %1041 = vdwg.mxu0
  %1042 = vmatpush.bf16.msra.mxu0 0
  %1043 = vmatpush.bf16.msra.mxu0 0
  %1044 = vmatpush.bf16.msra.mxu0 0
  %1045 = vmatpush.bf16.msra.mxu0 0
  %1046 = vmatpush.bf16.msra.mxu0 0
  %1047 = vmatpush.bf16.msra.mxu0 0
  %1048 = vmatpush.bf16.msra.mxu0 0
  %1049 = vmatpush.bf16.msra.mxu0 %v1005
  %1050 = vmatmul.bf16.gmra.mxu0 %v996
  %v1051 = vpop.f32.mrf.mxu0
  %v1052 = vadd.f32 0.0, %v1051
  %v1053 = vpop.f32.mrf.mxu0
  %1054 = vdwg.mxu0
  %1055 = vmatpush.bf16.msra.mxu0 0
  %1056 = vmatpush.bf16.msra.mxu0 0
  %1057 = vmatpush.bf16.msra.mxu0 0
  %1058 = vmatpush.bf16.msra.mxu0 0
  %1059 = vmatpush.bf16.msra.mxu0 0
  %1060 = vmatpush.bf16.msra.mxu0 0
  %1061 = vmatpush.bf16.msra.mxu0 0
  %1062 = vmatpush.bf16.msra.mxu0 %v1008
  %1063 = vmatmul.bf16.gmra.mxu0 %v996
  %v1064 = vpop.f32.mrf.mxu0
  %v1065 = vadd.f32 0.0, %v1064
  %v1066 = vpop.f32.mrf.mxu0
  %1067 = vdwg.mxu0
  %1068 = vmatpush.bf16.msra.mxu0 0
  %1069 = vmatpush.bf16.msra.mxu0 0
  %1070 = vmatpush.bf16.msra.mxu0 0
  %1071 = vmatpush.bf16.msra.mxu0 0
  %1072 = vmatpush.bf16.msra.mxu0 0
  %1073 = vmatpush.bf16.msra.mxu0 0
  %1074 = vmatpush.bf16.msra.mxu0 0
  %1075 = vmatpush.bf16.msra.mxu0 %v1011
  %1076 = vmatmul.bf16.gmra.mxu0 %v996
  %v1077 = vpop.f32.mrf.mxu0
  %v1078 = vadd.f32 0.0, %v1077
  %v1079 = vpop.f32.mrf.mxu0
  %1080 = vdwg.mxu0
  %1081 = vmatpush.bf16.msra.mxu0 0
  %1082 = vmatpush.bf16.msra.mxu0 0
  %1083 = vmatpush.bf16.msra.mxu0 0
  %1084 = vmatpush.bf16.msra.mxu0 0
  %1085 = vmatpush.bf16.msra.mxu0 0
  %1086 = vmatpush.bf16.msra.mxu0 0
  %1087 = vmatpush.bf16.msra.mxu0 0
  %1088 = vmatpush.bf16.msra.mxu0 %v1014
  %1089 = vmatmul.bf16.gmra.mxu0 %v996
  %v1090 = vpop.f32.mrf.mxu0
  %v1091 = vadd.f32 0.0, %v1090
  %v1092 = vpop.f32.mrf.mxu0
  %1093 = vdwg.mxu0
  %v1094 = vadd.f32 %v969, %v1026
  %v1095 = vadd.f32 %v970, %v1039
  %v1096 = vadd.f32 %v971, %v1052
  %v1097 = vadd.f32 %v972, %v1065
  %v1098 = vadd.f32 %v973, %v1078
  %v1099 = vadd.f32 %v974, %v1091
  %s1100 = scalar_lea.vmem %s2, 32
  %v1101 = vld [vmem:[%s1100] sm:$0xf]
  %1102 = vrot.lane.b32.xlu0 %v126, 90
  %v1103 = vpop.permute.xlu0 %1102
  %1104 = vrot.lane.b32.xlu0 %v127, 90
  %v1105 = vpop.permute.xlu0 %1104
  %1106 = vrot.lane.b32.xlu0 %v128, 90
  %v1107 = vpop.permute.xlu0 %1106
  %1108 = vrot.lane.b32.xlu0 %v129, 90
  %v1109 = vpop.permute.xlu0 %1108
  %1110 = vrot.lane.b32.xlu0 %v130, 90
  %v1111 = vpop.permute.xlu0 %1110
  %1112 = vrot.lane.b32.xlu0 %v131, 90
  %v1113 = vpop.permute.xlu0 %1112
  %vm1114 = vcmask 736256
  %v1115 = vsel %vm1114, %v1103, %v1105
  %v1116 = vsel %vm1114, %v1105, %v1107
  %v1117 = vsel %vm1114, %v1107, %v1109
  %v1118 = vsel %vm1114, %v1109, %v1111
  %v1119 = vsel %vm1114, %v1111, %v1113
  %v1121 = vsel %vm150, %v1101, 0
  %v1124 = vsel %vm154, %v1115, 0
  %v1127 = vsel %vm154, %v1116, 0
  %v1130 = vsel %vm154, %v1117, 0
  %v1133 = vsel %vm154, %v1118, 0
  %v1136 = vsel %vm154, %v1119, 0
  %v1139 = vsel %vm154, %v1113, 0
  %1141 = vmatpush.bf16.msra.mxu0 0
  %1142 = vmatpush.bf16.msra.mxu0 0
  %1143 = vmatpush.bf16.msra.mxu0 0
  %1144 = vmatpush.bf16.msra.mxu0 0
  %1145 = vmatpush.bf16.msra.mxu0 0
  %1146 = vmatpush.bf16.msra.mxu0 0
  %1147 = vmatpush.bf16.msra.mxu0 0
  %1148 = vmatpush.bf16.msra.mxu0 %v1124
  %1149 = vmatmul.bf16.gmra.mxu0 %v1121
  %v1150 = vpop.f32.mrf.mxu0
  %v1151 = vadd.f32 0.0, %v1150
  %v1152 = vpop.f32.mrf.mxu0
  %1153 = vdwg.mxu0
  %1154 = vmatpush.bf16.msra.mxu0 0
  %1155 = vmatpush.bf16.msra.mxu0 0
  %1156 = vmatpush.bf16.msra.mxu0 0
  %1157 = vmatpush.bf16.msra.mxu0 0
  %1158 = vmatpush.bf16.msra.mxu0 0
  %1159 = vmatpush.bf16.msra.mxu0 0
  %1160 = vmatpush.bf16.msra.mxu0 0
  %1161 = vmatpush.bf16.msra.mxu0 %v1127
  %1162 = vmatmul.bf16.gmra.mxu0 %v1121
  %v1163 = vpop.f32.mrf.mxu0
  %v1164 = vadd.f32 0.0, %v1163
  %v1165 = vpop.f32.mrf.mxu0
  %1166 = vdwg.mxu0
  %1167 = vmatpush.bf16.msra.mxu0 0
  %1168 = vmatpush.bf16.msra.mxu0 0
  %1169 = vmatpush.bf16.msra.mxu0 0
  %1170 = vmatpush.bf16.msra.mxu0 0
  %1171 = vmatpush.bf16.msra.mxu0 0
  %1172 = vmatpush.bf16.msra.mxu0 0
  %1173 = vmatpush.bf16.msra.mxu0 0
  %1174 = vmatpush.bf16.msra.mxu0 %v1130
  %1175 = vmatmul.bf16.gmra.mxu0 %v1121
  %v1176 = vpop.f32.mrf.mxu0
  %v1177 = vadd.f32 0.0, %v1176
  %v1178 = vpop.f32.mrf.mxu0
  %1179 = vdwg.mxu0
  %1180 = vmatpush.bf16.msra.mxu0 0
  %1181 = vmatpush.bf16.msra.mxu0 0
  %1182 = vmatpush.bf16.msra.mxu0 0
  %1183 = vmatpush.bf16.msra.mxu0 0
  %1184 = vmatpush.bf16.msra.mxu0 0
  %1185 = vmatpush.bf16.msra.mxu0 0
  %1186 = vmatpush.bf16.msra.mxu0 0
  %1187 = vmatpush.bf16.msra.mxu0 %v1133
  %1188 = vmatmul.bf16.gmra.mxu0 %v1121
  %v1189 = vpop.f32.mrf.mxu0
  %v1190 = vadd.f32 0.0, %v1189
  %v1191 = vpop.f32.mrf.mxu0
  %1192 = vdwg.mxu0
  %1193 = vmatpush.bf16.msra.mxu0 0
  %1194 = vmatpush.bf16.msra.mxu0 0
  %1195 = vmatpush.bf16.msra.mxu0 0
  %1196 = vmatpush.bf16.msra.mxu0 0
  %1197 = vmatpush.bf16.msra.mxu0 0
  %1198 = vmatpush.bf16.msra.mxu0 0
  %1199 = vmatpush.bf16.msra.mxu0 0
  %1200 = vmatpush.bf16.msra.mxu0 %v1136
  %1201 = vmatmul.bf16.gmra.mxu0 %v1121
  %v1202 = vpop.f32.mrf.mxu0
  %v1203 = vadd.f32 0.0, %v1202
  %v1204 = vpop.f32.mrf.mxu0
  %1205 = vdwg.mxu0
  %1206 = vmatpush.bf16.msra.mxu0 0
  %1207 = vmatpush.bf16.msra.mxu0 0
  %1208 = vmatpush.bf16.msra.mxu0 0
  %1209 = vmatpush.bf16.msra.mxu0 0
  %1210 = vmatpush.bf16.msra.mxu0 0
  %1211 = vmatpush.bf16.msra.mxu0 0
  %1212 = vmatpush.bf16.msra.mxu0 0
  %1213 = vmatpush.bf16.msra.mxu0 %v1139
  %1214 = vmatmul.bf16.gmra.mxu0 %v1121
  %v1215 = vpop.f32.mrf.mxu0
  %v1216 = vadd.f32 0.0, %v1215
  %v1217 = vpop.f32.mrf.mxu0
  %1218 = vdwg.mxu0
  %v1219 = vadd.f32 %v1094, %v1151
  %v1220 = vadd.f32 %v1095, %v1164
  %v1221 = vadd.f32 %v1096, %v1177
  %v1222 = vadd.f32 %v1097, %v1190
  %v1223 = vadd.f32 %v1098, %v1203
  %v1224 = vadd.f32 %v1099, %v1216
  %v1225 = vld [vmem:[%s4] sm:$0xff]
  %1227 = vset.pattern.permute.xlu0 0
  %1228 = vperm.xlu0 %1227, %v1225
  %v1229 = vpop.permute.xlu0 %1228
  %v1231 = vmul.f32 %v1219, %v1229
  %v1232 = vmul.f32 %v1220, %v1229
  %v1233 = vmul.f32 %v1221, %v1229
  %v1234 = vmul.f32 %v1222, %v1229
  %v1235 = vmul.f32 %v1223, %v1229
  %v1236 = vmul.f32 %v1224, %v1229
  %v1237 = vld [vmem:[%s5] sm:$0xff]
  %1239 = vset.pattern.permute.xlu0 0
  %1240 = vperm.xlu0 %1239, %v1237
  %v1241 = vpop.permute.xlu0 %1240
  %v1243 = vadd.f32 %v1231, %v1241
  %v1244 = vadd.f32 %v1232, %v1241
  %v1245 = vadd.f32 %v1233, %v1241
  %v1246 = vadd.f32 %v1234, %v1241
  %v1247 = vadd.f32 %v1235, %v1241
  %v1248 = vadd.f32 %v1236, %v1241
  %v1249 = vmax.f32 %v1243, 0.0
  %v1250 = vmax.f32 %v1244, 0.0
  %v1251 = vmax.f32 %v1245, 0.0
  %v1252 = vmax.f32 %v1246, 0.0
  %v1253 = vmax.f32 %v1247, 0.0
  %v1254 = vmax.f32 %v1248, 0.0
  %1255 = vrot.lane.b32.xlu0 %v72, 109
  %v1256 = vpop.permute.xlu0 %1255
  %1257 = vrot.lane.b32.xlu0 %v73, 109
  %v1258 = vpop.permute.xlu0 %1257
  %1259 = vrot.lane.b32.xlu0 %v74, 109
  %v1260 = vpop.permute.xlu0 %1259
  %1261 = vrot.lane.b32.xlu0 %v75, 109
  %v1262 = vpop.permute.xlu0 %1261
  %1263 = vrot.lane.b32.xlu0 %v76, 109
  %v1264 = vpop.permute.xlu0 %1263
  %1265 = vrot.lane.b32.xlu0 %v77, 109
  %v1266 = vpop.permute.xlu0 %1265
  %vm1267 = vcmask 891904
  %v1268 = vsel %vm1267, %v1256, %v1258
  %v1269 = vsel %vm1267, %v1258, %v1260
  %v1270 = vsel %vm1267, %v1260, %v1262
  %v1271 = vsel %vm1267, %v1262, %v1264
  %v1272 = vsel %vm1267, %v1264, %v1266
  %v1279 = vmul.f32 %v1249, %v1268
  %v1280 = vmul.f32 %v1250, %v1269
  %v1281 = vmul.f32 %v1251, %v1270
  %v1282 = vmul.f32 %v1252, %v1271
  %v1283 = vmul.f32 %v1253, %v1272
  %v1284 = vmul.f32 %v1254, %v1266
  %1285 = vst [vmem:[#allocation2] sm:$0xff] 0
  %1286 = vst [vmem:[#allocation2 + $0x8] sm:$0xff] 0
  %vm1287 = vcmask 375812
  %vm1288 = vmor %vm1287, %vm81
  %1289 = vst.msk [vmem:[#allocation2 + $0x10] sm:$0xff] %vm1288, 0
  %v1290 = vpack.c.bf16 %v1280, %v1279
  %v1291 = vpack.c.bf16 %v1282, %v1281
  %v1292 = vpack.c.bf16 %v1284, %v1283
  %1296 = vrot.lane.b32.xlu0 %v1290, 19
  %v1297 = vpop.permute.xlu0 %1296
  %1298 = vrot.lane.b32.xlu0 %v1291, 19
  %v1299 = vpop.permute.xlu0 %1298
  %1300 = vrot.lane.b32.xlu0 %v1292, 19
  %v1301 = vpop.permute.xlu0 %1300
  %v1302 = vrot.slane %v1297, 4
  %v1303 = vrot.slane %v1299, 4
  %v1304 = vrot.slane %v1301, 4
  %vm1305 = vcmask 154624
  %v1306 = vsel %vm1305, %v1302, %v1297
  %vm1307 = vcmask 1043456
  %v1308 = vsel %vm1307, %v1302, %v1303
  %v1309 = vsel %vm1305, %v1308, %v1299
  %v1310 = vsel %vm1307, %v1303, %v1304
  %v1311 = vsel %vm1305, %v1310, %v1301
  %vm1315 = vcmask 1043608
  %vm1316 = vcmask 1047556
  %vm1317 = vmor %vm1316, %vm1315
  %1318 = vst.msk [vmem:[#allocation2] sm:$0xff] %vm1317, %v1306
  %1319 = vst [vmem:[#allocation2 + $0x8] sm:$0xff] %v1309
  %vm1320 = vcmask 220164
  %vm1321 = vmor %vm1320, %vm81
  %1322 = vst.msk [vmem:[#allocation2 + $0x10] sm:$0xff] %vm1321, %v1311
  %v1323 = vld [vmem:[%s3] sm:$0xf]
  %v1324 = vld [vmem:[#allocation2] sm:$0xff]
  %v1325 = vld [vmem:[#allocation2 + $0x8] sm:$0xff]
  %v1326 = vld [vmem:[#allocation2 + $0x10] sm:$0xff]
  %s1327 = scalar_lea.vmem %s3, 4
  %v1328 = vld [vmem:[%s1327] sm:$0xf]
  %v1332 = vunpack.c.l.b16 %v1324
  %v1333 = vunpack.c.h.b16 %v1324
  %v1334 = vunpack.c.l.b16 %v1325
  %v1335 = vunpack.c.h.b16 %v1325
  %v1336 = vunpack.c.l.b16 %v1326
  %v1337 = vunpack.c.h.b16 %v1326
  %v1338 = vpack.c.b16 %v1332, %v1332
  %v1339 = vpack.c.b16 %v1333, %v1333
  %v1340 = vpack.c.b16 %v1334, %v1334
  %v1341 = vpack.c.b16 %v1335, %v1335
  %v1342 = vpack.c.b16 %v1336, %v1336
  %v1343 = vpack.c.b16 %v1337, %v1337
  %1344 = vrot.lane.b32.xlu0 %v1338, 127
  %v1345 = vpop.permute.xlu0 %1344
  %1346 = vrot.lane.b32.xlu0 %v1339, 127
  %v1347 = vpop.permute.xlu0 %1346
  %1348 = vrot.lane.b32.xlu0 %v1340, 127
  %v1349 = vpop.permute.xlu0 %1348
  %1350 = vrot.lane.b32.xlu0 %v1341, 127
  %v1351 = vpop.permute.xlu0 %1350
  %1352 = vrot.lane.b32.xlu0 %v1342, 127
  %v1353 = vpop.permute.xlu0 %1352
  %1354 = vrot.lane.b32.xlu0 %v1343, 127
  %v1355 = vpop.permute.xlu0 %1354
  %v1356 = vsel %vm144, %v1345, %v1347
  %v1357 = vsel %vm144, %v1347, %v1349
  %v1358 = vsel %vm144, %v1349, %v1351
  %v1359 = vsel %vm144, %v1351, %v1353
  %v1360 = vsel %vm144, %v1353, %v1355
  %vm1361 = vcmask 64512
  %v1363 = vsel %vm1361, %v1328, 0
  %v1366 = vsel %vm81, %v1356, 0
  %v1369 = vsel %vm81, %v1357, 0
  %v1372 = vsel %vm81, %v1358, 0
  %v1375 = vsel %vm81, %v1359, 0
  %v1378 = vsel %vm81, %v1360, 0
  %v1381 = vsel %vm81, %v1355, 0
  %1383 = vmatpush.bf16.msra.mxu0 0
  %1384 = vmatpush.bf16.msra.mxu0 0
  %1385 = vmatpush.bf16.msra.mxu0 0
  %1386 = vmatpush.bf16.msra.mxu0 0
  %1387 = vmatpush.bf16.msra.mxu0 0
  %1388 = vmatpush.bf16.msra.mxu0 0
  %1389 = vmatpush.bf16.msra.mxu0 0
  %1390 = vmatpush.bf16.msra.mxu0 %v1366
  %1391 = vmatmul.bf16.gmra.mxu0 %v1363
  %v1392 = vpop.f32.mrf.mxu0
  %v1393 = vadd.f32 0.0, %v1392
  %v1394 = vpop.f32.mrf.mxu0
  %1395 = vdwg.mxu0
  %1396 = vmatpush.bf16.msra.mxu0 0
  %1397 = vmatpush.bf16.msra.mxu0 0
  %1398 = vmatpush.bf16.msra.mxu0 0
  %1399 = vmatpush.bf16.msra.mxu0 0
  %1400 = vmatpush.bf16.msra.mxu0 0
  %1401 = vmatpush.bf16.msra.mxu0 0
  %1402 = vmatpush.bf16.msra.mxu0 0
  %1403 = vmatpush.bf16.msra.mxu0 %v1369
  %1404 = vmatmul.bf16.gmra.mxu0 %v1363
  %v1405 = vpop.f32.mrf.mxu0
  %v1406 = vadd.f32 0.0, %v1405
  %v1407 = vpop.f32.mrf.mxu0
  %1408 = vdwg.mxu0
  %1409 = vmatpush.bf16.msra.mxu0 0
  %1410 = vmatpush.bf16.msra.mxu0 0
  %1411 = vmatpush.bf16.msra.mxu0 0
  %1412 = vmatpush.bf16.msra.mxu0 0
  %1413 = vmatpush.bf16.msra.mxu0 0
  %1414 = vmatpush.bf16.msra.mxu0 0
  %1415 = vmatpush.bf16.msra.mxu0 0
  %1416 = vmatpush.bf16.msra.mxu0 %v1372
  %1417 = vmatmul.bf16.gmra.mxu0 %v1363
  %v1418 = vpop.f32.mrf.mxu0
  %v1419 = vadd.f32 0.0, %v1418
  %v1420 = vpop.f32.mrf.mxu0
  %1421 = vdwg.mxu0
  %1422 = vmatpush.bf16.msra.mxu0 0
  %1423 = vmatpush.bf16.msra.mxu0 0
  %1424 = vmatpush.bf16.msra.mxu0 0
  %1425 = vmatpush.bf16.msra.mxu0 0
  %1426 = vmatpush.bf16.msra.mxu0 0
  %1427 = vmatpush.bf16.msra.mxu0 0
  %1428 = vmatpush.bf16.msra.mxu0 0
  %1429 = vmatpush.bf16.msra.mxu0 %v1375
  %1430 = vmatmul.bf16.gmra.mxu0 %v1363
  %v1431 = vpop.f32.mrf.mxu0
  %v1432 = vadd.f32 0.0, %v1431
  %v1433 = vpop.f32.mrf.mxu0
  %1434 = vdwg.mxu0
  %1435 = vmatpush.bf16.msra.mxu0 0
  %1436 = vmatpush.bf16.msra.mxu0 0
  %1437 = vmatpush.bf16.msra.mxu0 0
  %1438 = vmatpush.bf16.msra.mxu0 0
  %1439 = vmatpush.bf16.msra.mxu0 0
  %1440 = vmatpush.bf16.msra.mxu0 0
  %1441 = vmatpush.bf16.msra.mxu0 0
  %1442 = vmatpush.bf16.msra.mxu0 %v1378
  %1443 = vmatmul.bf16.gmra.mxu0 %v1363
  %v1444 = vpop.f32.mrf.mxu0
  %v1445 = vadd.f32 0.0, %v1444
  %v1446 = vpop.f32.mrf.mxu0
  %1447 = vdwg.mxu0
  %1448 = vmatpush.bf16.msra.mxu0 0
  %1449 = vmatpush.bf16.msra.mxu0 0
  %1450 = vmatpush.bf16.msra.mxu0 0
  %1451 = vmatpush.bf16.msra.mxu0 0
  %1452 = vmatpush.bf16.msra.mxu0 0
  %1453 = vmatpush.bf16.msra.mxu0 0
  %1454 = vmatpush.bf16.msra.mxu0 0
  %1455 = vmatpush.bf16.msra.mxu0 %v1381
  %1456 = vmatmul.bf16.gmra.mxu0 %v1363
  %v1457 = vpop.f32.mrf.mxu0
  %v1458 = vadd.f32 0.0, %v1457
  %v1459 = vpop.f32.mrf.mxu0
  %1460 = vdwg.mxu0
  %v1462 = vsel %vm1361, %v1323, 0
  %v1465 = vsel %vm81, %v1338, 0
  %v1468 = vsel %vm81, %v1339, 0
  %v1471 = vsel %vm81, %v1340, 0
  %v1474 = vsel %vm81, %v1341, 0
  %v1477 = vsel %vm81, %v1342, 0
  %v1480 = vsel %vm81, %v1343, 0
  %1482 = vmatpush.bf16.msra.mxu0 0
  %1483 = vmatpush.bf16.msra.mxu0 0
  %1484 = vmatpush.bf16.msra.mxu0 0
  %1485 = vmatpush.bf16.msra.mxu0 0
  %1486 = vmatpush.bf16.msra.mxu0 0
  %1487 = vmatpush.bf16.msra.mxu0 0
  %1488 = vmatpush.bf16.msra.mxu0 0
  %1489 = vmatpush.bf16.msra.mxu0 %v1465
  %1490 = vmatmul.bf16.gmra.mxu0 %v1462
  %v1491 = vpop.f32.mrf.mxu0
  %v1492 = vadd.f32 %v1393, %v1491
  %v1493 = vpop.f32.mrf.mxu0
  %1494 = vdwg.mxu0
  %1495 = vmatpush.bf16.msra.mxu0 0
  %1496 = vmatpush.bf16.msra.mxu0 0
  %1497 = vmatpush.bf16.msra.mxu0 0
  %1498 = vmatpush.bf16.msra.mxu0 0
  %1499 = vmatpush.bf16.msra.mxu0 0
  %1500 = vmatpush.bf16.msra.mxu0 0
  %1501 = vmatpush.bf16.msra.mxu0 0
  %1502 = vmatpush.bf16.msra.mxu0 %v1468
  %1503 = vmatmul.bf16.gmra.mxu0 %v1462
  %v1504 = vpop.f32.mrf.mxu0
  %v1505 = vadd.f32 %v1406, %v1504
  %v1506 = vpop.f32.mrf.mxu0
  %1507 = vdwg.mxu0
  %1508 = vmatpush.bf16.msra.mxu0 0
  %1509 = vmatpush.bf16.msra.mxu0 0
  %1510 = vmatpush.bf16.msra.mxu0 0
  %1511 = vmatpush.bf16.msra.mxu0 0
  %1512 = vmatpush.bf16.msra.mxu0 0
  %1513 = vmatpush.bf16.msra.mxu0 0
  %1514 = vmatpush.bf16.msra.mxu0 0
  %1515 = vmatpush.bf16.msra.mxu0 %v1471
  %1516 = vmatmul.bf16.gmra.mxu0 %v1462
  %v1517 = vpop.f32.mrf.mxu0
  %v1518 = vadd.f32 %v1419, %v1517
  %v1519 = vpop.f32.mrf.mxu0
  %1520 = vdwg.mxu0
  %1521 = vmatpush.bf16.msra.mxu0 0
  %1522 = vmatpush.bf16.msra.mxu0 0
  %1523 = vmatpush.bf16.msra.mxu0 0
  %1524 = vmatpush.bf16.msra.mxu0 0
  %1525 = vmatpush.bf16.msra.mxu0 0
  %1526 = vmatpush.bf16.msra.mxu0 0
  %1527 = vmatpush.bf16.msra.mxu0 0
  %1528 = vmatpush.bf16.msra.mxu0 %v1474
  %1529 = vmatmul.bf16.gmra.mxu0 %v1462
  %v1530 = vpop.f32.mrf.mxu0
  %v1531 = vadd.f32 %v1432, %v1530
  %v1532 = vpop.f32.mrf.mxu0
  %1533 = vdwg.mxu0
  %1534 = vmatpush.bf16.msra.mxu0 0
  %1535 = vmatpush.bf16.msra.mxu0 0
  %1536 = vmatpush.bf16.msra.mxu0 0
  %1537 = vmatpush.bf16.msra.mxu0 0
  %1538 = vmatpush.bf16.msra.mxu0 0
  %1539 = vmatpush.bf16.msra.mxu0 0
  %1540 = vmatpush.bf16.msra.mxu0 0
  %1541 = vmatpush.bf16.msra.mxu0 %v1477
  %1542 = vmatmul.bf16.gmra.mxu0 %v1462
  %v1543 = vpop.f32.mrf.mxu0
  %v1544 = vadd.f32 %v1445, %v1543
  %v1545 = vpop.f32.mrf.mxu0
  %1546 = vdwg.mxu0
  %1547 = vmatpush.bf16.msra.mxu0 0
  %1548 = vmatpush.bf16.msra.mxu0 0
  %1549 = vmatpush.bf16.msra.mxu0 0
  %1550 = vmatpush.bf16.msra.mxu0 0
  %1551 = vmatpush.bf16.msra.mxu0 0
  %1552 = vmatpush.bf16.msra.mxu0 0
  %1553 = vmatpush.bf16.msra.mxu0 0
  %1554 = vmatpush.bf16.msra.mxu0 %v1480
  %1555 = vmatmul.bf16.gmra.mxu0 %v1462
  %v1556 = vpop.f32.mrf.mxu0
  %v1557 = vadd.f32 %v1458, %v1556
  %v1558 = vpop.f32.mrf.mxu0
  %1559 = vdwg.mxu0
  %s1560 = scalar_lea.vmem %s3, 8
  %v1561 = vld [vmem:[%s1560] sm:$0xf]
  %1562 = vrot.lane.b32.xlu0 %v1338, 126
  %v1563 = vpop.permute.xlu0 %1562
  %1564 = vrot.lane.b32.xlu0 %v1339, 126
  %v1565 = vpop.permute.xlu0 %1564
  %1566 = vrot.lane.b32.xlu0 %v1340, 126
  %v1567 = vpop.permute.xlu0 %1566
  %1568 = vrot.lane.b32.xlu0 %v1341, 126
  %v1569 = vpop.permute.xlu0 %1568
  %1570 = vrot.lane.b32.xlu0 %v1342, 126
  %v1571 = vpop.permute.xlu0 %1570
  %1572 = vrot.lane.b32.xlu0 %v1343, 126
  %v1573 = vpop.permute.xlu0 %1572
  %v1574 = vsel %vm364, %v1563, %v1565
  %v1575 = vsel %vm364, %v1565, %v1567
  %v1576 = vsel %vm364, %v1567, %v1569
  %v1577 = vsel %vm364, %v1569, %v1571
  %v1578 = vsel %vm364, %v1571, %v1573
  %v1580 = vsel %vm1361, %v1561, 0
  %v1583 = vsel %vm81, %v1574, 0
  %v1586 = vsel %vm81, %v1575, 0
  %v1589 = vsel %vm81, %v1576, 0
  %v1592 = vsel %vm81, %v1577, 0
  %v1595 = vsel %vm81, %v1578, 0
  %v1598 = vsel %vm81, %v1573, 0
  %1600 = vmatpush.bf16.msra.mxu0 0
  %1601 = vmatpush.bf16.msra.mxu0 0
  %1602 = vmatpush.bf16.msra.mxu0 0
  %1603 = vmatpush.bf16.msra.mxu0 0
  %1604 = vmatpush.bf16.msra.mxu0 0
  %1605 = vmatpush.bf16.msra.mxu0 0
  %1606 = vmatpush.bf16.msra.mxu0 0
  %1607 = vmatpush.bf16.msra.mxu0 %v1583
  %1608 = vmatmul.bf16.gmra.mxu0 %v1580
  %v1609 = vpop.f32.mrf.mxu0
  %v1610 = vadd.f32 0.0, %v1609
  %v1611 = vpop.f32.mrf.mxu0
  %1612 = vdwg.mxu0
  %1613 = vmatpush.bf16.msra.mxu0 0
  %1614 = vmatpush.bf16.msra.mxu0 0
  %1615 = vmatpush.bf16.msra.mxu0 0
  %1616 = vmatpush.bf16.msra.mxu0 0
  %1617 = vmatpush.bf16.msra.mxu0 0
  %1618 = vmatpush.bf16.msra.mxu0 0
  %1619 = vmatpush.bf16.msra.mxu0 0
  %1620 = vmatpush.bf16.msra.mxu0 %v1586
  %1621 = vmatmul.bf16.gmra.mxu0 %v1580
  %v1622 = vpop.f32.mrf.mxu0
  %v1623 = vadd.f32 0.0, %v1622
  %v1624 = vpop.f32.mrf.mxu0
  %1625 = vdwg.mxu0
  %1626 = vmatpush.bf16.msra.mxu0 0
  %1627 = vmatpush.bf16.msra.mxu0 0
  %1628 = vmatpush.bf16.msra.mxu0 0
  %1629 = vmatpush.bf16.msra.mxu0 0
  %1630 = vmatpush.bf16.msra.mxu0 0
  %1631 = vmatpush.bf16.msra.mxu0 0
  %1632 = vmatpush.bf16.msra.mxu0 0
  %1633 = vmatpush.bf16.msra.mxu0 %v1589
  %1634 = vmatmul.bf16.gmra.mxu0 %v1580
  %v1635 = vpop.f32.mrf.mxu0
  %v1636 = vadd.f32 0.0, %v1635
  %v1637 = vpop.f32.mrf.mxu0
  %1638 = vdwg.mxu0
  %1639 = vmatpush.bf16.msra.mxu0 0
  %1640 = vmatpush.bf16.msra.mxu0 0
  %1641 = vmatpush.bf16.msra.mxu0 0
  %1642 = vmatpush.bf16.msra.mxu0 0
  %1643 = vmatpush.bf16.msra.mxu0 0
  %1644 = vmatpush.bf16.msra.mxu0 0
  %1645 = vmatpush.bf16.msra.mxu0 0
  %1646 = vmatpush.bf16.msra.mxu0 %v1592
  %1647 = vmatmul.bf16.gmra.mxu0 %v1580
  %v1648 = vpop.f32.mrf.mxu0
  %v1649 = vadd.f32 0.0, %v1648
  %v1650 = vpop.f32.mrf.mxu0
  %1651 = vdwg.mxu0
  %1652 = vmatpush.bf16.msra.mxu0 0
  %1653 = vmatpush.bf16.msra.mxu0 0
  %1654 = vmatpush.bf16.msra.mxu0 0
  %1655 = vmatpush.bf16.msra.mxu0 0
  %1656 = vmatpush.bf16.msra.mxu0 0
  %1657 = vmatpush.bf16.msra.mxu0 0
  %1658 = vmatpush.bf16.msra.mxu0 0
  %1659 = vmatpush.bf16.msra.mxu0 %v1595
  %1660 = vmatmul.bf16.gmra.mxu0 %v1580
  %v1661 = vpop.f32.mrf.mxu0
  %v1662 = vadd.f32 0.0, %v1661
  %v1663 = vpop.f32.mrf.mxu0
  %1664 = vdwg.mxu0
  %1665 = vmatpush.bf16.msra.mxu0 0
  %1666 = vmatpush.bf16.msra.mxu0 0
  %1667 = vmatpush.bf16.msra.mxu0 0
  %1668 = vmatpush.bf16.msra.mxu0 0
  %1669 = vmatpush.bf16.msra.mxu0 0
  %1670 = vmatpush.bf16.msra.mxu0 0
  %1671 = vmatpush.bf16.msra.mxu0 0
  %1672 = vmatpush.bf16.msra.mxu0 %v1598
  %1673 = vmatmul.bf16.gmra.mxu0 %v1580
  %v1674 = vpop.f32.mrf.mxu0
  %v1675 = vadd.f32 0.0, %v1674
  %v1676 = vpop.f32.mrf.mxu0
  %1677 = vdwg.mxu0
  %v1678 = vadd.f32 %v1492, %v1610
  %v1679 = vadd.f32 %v1505, %v1623
  %v1680 = vadd.f32 %v1518, %v1636
  %v1681 = vadd.f32 %v1531, %v1649
  %v1682 = vadd.f32 %v1544, %v1662
  %v1683 = vadd.f32 %v1557, %v1675
  %s1684 = scalar_lea.vmem %s3, 12
  %v1685 = vld [vmem:[%s1684] sm:$0xf]
  %1686 = vrot.lane.b32.xlu0 %v1338, 110
  %v1687 = vpop.permute.xlu0 %1686
  %1688 = vrot.lane.b32.xlu0 %v1339, 110
  %v1689 = vpop.permute.xlu0 %1688
  %1690 = vrot.lane.b32.xlu0 %v1340, 110
  %v1691 = vpop.permute.xlu0 %1690
  %1692 = vrot.lane.b32.xlu0 %v1341, 110
  %v1693 = vpop.permute.xlu0 %1692
  %1694 = vrot.lane.b32.xlu0 %v1342, 110
  %v1695 = vpop.permute.xlu0 %1694
  %1696 = vrot.lane.b32.xlu0 %v1343, 110
  %v1697 = vpop.permute.xlu0 %1696
  %v1698 = vsel %vm489, %v1687, %v1689
  %v1699 = vsel %vm489, %v1689, %v1691
  %v1700 = vsel %vm489, %v1691, %v1693
  %v1701 = vsel %vm489, %v1693, %v1695
  %v1702 = vsel %vm489, %v1695, %v1697
  %v1704 = vsel %vm1361, %v1685, 0
  %v1707 = vsel %vm81, %v1698, 0
  %v1710 = vsel %vm81, %v1699, 0
  %v1713 = vsel %vm81, %v1700, 0
  %v1716 = vsel %vm81, %v1701, 0
  %v1719 = vsel %vm81, %v1702, 0
  %v1722 = vsel %vm81, %v1697, 0
  %1724 = vmatpush.bf16.msra.mxu0 0
  %1725 = vmatpush.bf16.msra.mxu0 0
  %1726 = vmatpush.bf16.msra.mxu0 0
  %1727 = vmatpush.bf16.msra.mxu0 0
  %1728 = vmatpush.bf16.msra.mxu0 0
  %1729 = vmatpush.bf16.msra.mxu0 0
  %1730 = vmatpush.bf16.msra.mxu0 0
  %1731 = vmatpush.bf16.msra.mxu0 %v1707
  %1732 = vmatmul.bf16.gmra.mxu0 %v1704
  %v1733 = vpop.f32.mrf.mxu0
  %v1734 = vadd.f32 0.0, %v1733
  %v1735 = vpop.f32.mrf.mxu0
  %1736 = vdwg.mxu0
  %1737 = vmatpush.bf16.msra.mxu0 0
  %1738 = vmatpush.bf16.msra.mxu0 0
  %1739 = vmatpush.bf16.msra.mxu0 0
  %1740 = vmatpush.bf16.msra.mxu0 0
  %1741 = vmatpush.bf16.msra.mxu0 0
  %1742 = vmatpush.bf16.msra.mxu0 0
  %1743 = vmatpush.bf16.msra.mxu0 0
  %1744 = vmatpush.bf16.msra.mxu0 %v1710
  %1745 = vmatmul.bf16.gmra.mxu0 %v1704
  %v1746 = vpop.f32.mrf.mxu0
  %v1747 = vadd.f32 0.0, %v1746
  %v1748 = vpop.f32.mrf.mxu0
  %1749 = vdwg.mxu0
  %1750 = vmatpush.bf16.msra.mxu0 0
  %1751 = vmatpush.bf16.msra.mxu0 0
  %1752 = vmatpush.bf16.msra.mxu0 0
  %1753 = vmatpush.bf16.msra.mxu0 0
  %1754 = vmatpush.bf16.msra.mxu0 0
  %1755 = vmatpush.bf16.msra.mxu0 0
  %1756 = vmatpush.bf16.msra.mxu0 0
  %1757 = vmatpush.bf16.msra.mxu0 %v1713
  %1758 = vmatmul.bf16.gmra.mxu0 %v1704
  %v1759 = vpop.f32.mrf.mxu0
  %v1760 = vadd.f32 0.0, %v1759
  %v1761 = vpop.f32.mrf.mxu0
  %1762 = vdwg.mxu0
  %1763 = vmatpush.bf16.msra.mxu0 0
  %1764 = vmatpush.bf16.msra.mxu0 0
  %1765 = vmatpush.bf16.msra.mxu0 0
  %1766 = vmatpush.bf16.msra.mxu0 0
  %1767 = vmatpush.bf16.msra.mxu0 0
  %1768 = vmatpush.bf16.msra.mxu0 0
  %1769 = vmatpush.bf16.msra.mxu0 0
  %1770 = vmatpush.bf16.msra.mxu0 %v1716
  %1771 = vmatmul.bf16.gmra.mxu0 %v1704
  %v1772 = vpop.f32.mrf.mxu0
  %v1773 = vadd.f32 0.0, %v1772
  %v1774 = vpop.f32.mrf.mxu0
  %1775 = vdwg.mxu0
  %1776 = vmatpush.bf16.msra.mxu0 0
  %1777 = vmatpush.bf16.msra.mxu0 0
  %1778 = vmatpush.bf16.msra.mxu0 0
  %1779 = vmatpush.bf16.msra.mxu0 0
  %1780 = vmatpush.bf16.msra.mxu0 0
  %1781 = vmatpush.bf16.msra.mxu0 0
  %1782 = vmatpush.bf16.msra.mxu0 0
  %1783 = vmatpush.bf16.msra.mxu0 %v1719
  %1784 = vmatmul.bf16.gmra.mxu0 %v1704
  %v1785 = vpop.f32.mrf.mxu0
  %v1786 = vadd.f32 0.0, %v1785
  %v1787 = vpop.f32.mrf.mxu0
  %1788 = vdwg.mxu0
  %1789 = vmatpush.bf16.msra.mxu0 0
  %1790 = vmatpush.bf16.msra.mxu0 0
  %1791 = vmatpush.bf16.msra.mxu0 0
  %1792 = vmatpush.bf16.msra.mxu0 0
  %1793 = vmatpush.bf16.msra.mxu0 0
  %1794 = vmatpush.bf16.msra.mxu0 0
  %1795 = vmatpush.bf16.msra.mxu0 0
  %1796 = vmatpush.bf16.msra.mxu0 %v1722
  %1797 = vmatmul.bf16.gmra.mxu0 %v1704
  %v1798 = vpop.f32.mrf.mxu0
  %v1799 = vadd.f32 0.0, %v1798
  %v1800 = vpop.f32.mrf.mxu0
  %1801 = vdwg.mxu0
  %v1802 = vadd.f32 %v1678, %v1734
  %v1803 = vadd.f32 %v1679, %v1747
  %v1804 = vadd.f32 %v1680, %v1760
  %v1805 = vadd.f32 %v1681, %v1773
  %v1806 = vadd.f32 %v1682, %v1786
  %v1807 = vadd.f32 %v1683, %v1799
  %s1808 = scalar_lea.vmem %s3, 16
  %v1809 = vld [vmem:[%s1808] sm:$0xf]
  %1810 = vrot.lane.b32.xlu0 %v1338, 109
  %v1811 = vpop.permute.xlu0 %1810
  %1812 = vrot.lane.b32.xlu0 %v1339, 109
  %v1813 = vpop.permute.xlu0 %1812
  %1814 = vrot.lane.b32.xlu0 %v1340, 109
  %v1815 = vpop.permute.xlu0 %1814
  %1816 = vrot.lane.b32.xlu0 %v1341, 109
  %v1817 = vpop.permute.xlu0 %1816
  %1818 = vrot.lane.b32.xlu0 %v1342, 109
  %v1819 = vpop.permute.xlu0 %1818
  %1820 = vrot.lane.b32.xlu0 %v1343, 109
  %v1821 = vpop.permute.xlu0 %1820
  %v1822 = vsel %vm614, %v1811, %v1813
  %v1823 = vsel %vm614, %v1813, %v1815
  %v1824 = vsel %vm614, %v1815, %v1817
  %v1825 = vsel %vm614, %v1817, %v1819
  %v1826 = vsel %vm614, %v1819, %v1821
  %v1828 = vsel %vm1361, %v1809, 0
  %v1831 = vsel %vm81, %v1822, 0
  %v1834 = vsel %vm81, %v1823, 0
  %v1837 = vsel %vm81, %v1824, 0
  %v1840 = vsel %vm81, %v1825, 0
  %v1843 = vsel %vm81, %v1826, 0
  %v1846 = vsel %vm81, %v1821, 0
  %1848 = vmatpush.bf16.msra.mxu0 0
  %1849 = vmatpush.bf16.msra.mxu0 0
  %1850 = vmatpush.bf16.msra.mxu0 0
  %1851 = vmatpush.bf16.msra.mxu0 0
  %1852 = vmatpush.bf16.msra.mxu0 0
  %1853 = vmatpush.bf16.msra.mxu0 0
  %1854 = vmatpush.bf16.msra.mxu0 0
  %1855 = vmatpush.bf16.msra.mxu0 %v1831
  %1856 = vmatmul.bf16.gmra.mxu0 %v1828
  %v1857 = vpop.f32.mrf.mxu0
  %v1858 = vadd.f32 0.0, %v1857
  %v1859 = vpop.f32.mrf.mxu0
  %1860 = vdwg.mxu0
  %1861 = vmatpush.bf16.msra.mxu0 0
  %1862 = vmatpush.bf16.msra.mxu0 0
  %1863 = vmatpush.bf16.msra.mxu0 0
  %1864 = vmatpush.bf16.msra.mxu0 0
  %1865 = vmatpush.bf16.msra.mxu0 0
  %1866 = vmatpush.bf16.msra.mxu0 0
  %1867 = vmatpush.bf16.msra.mxu0 0
  %1868 = vmatpush.bf16.msra.mxu0 %v1834
  %1869 = vmatmul.bf16.gmra.mxu0 %v1828
  %v1870 = vpop.f32.mrf.mxu0
  %v1871 = vadd.f32 0.0, %v1870
  %v1872 = vpop.f32.mrf.mxu0
  %1873 = vdwg.mxu0
  %1874 = vmatpush.bf16.msra.mxu0 0
  %1875 = vmatpush.bf16.msra.mxu0 0
  %1876 = vmatpush.bf16.msra.mxu0 0
  %1877 = vmatpush.bf16.msra.mxu0 0
  %1878 = vmatpush.bf16.msra.mxu0 0
  %1879 = vmatpush.bf16.msra.mxu0 0
  %1880 = vmatpush.bf16.msra.mxu0 0
  %1881 = vmatpush.bf16.msra.mxu0 %v1837
  %1882 = vmatmul.bf16.gmra.mxu0 %v1828
  %v1883 = vpop.f32.mrf.mxu0
  %v1884 = vadd.f32 0.0, %v1883
  %v1885 = vpop.f32.mrf.mxu0
  %1886 = vdwg.mxu0
  %1887 = vmatpush.bf16.msra.mxu0 0
  %1888 = vmatpush.bf16.msra.mxu0 0
  %1889 = vmatpush.bf16.msra.mxu0 0
  %1890 = vmatpush.bf16.msra.mxu0 0
  %1891 = vmatpush.bf16.msra.mxu0 0
  %1892 = vmatpush.bf16.msra.mxu0 0
  %1893 = vmatpush.bf16.msra.mxu0 0
  %1894 = vmatpush.bf16.msra.mxu0 %v1840
  %1895 = vmatmul.bf16.gmra.mxu0 %v1828
  %v1896 = vpop.f32.mrf.mxu0
  %v1897 = vadd.f32 0.0, %v1896
  %v1898 = vpop.f32.mrf.mxu0
  %1899 = vdwg.mxu0
  %1900 = vmatpush.bf16.msra.mxu0 0
  %1901 = vmatpush.bf16.msra.mxu0 0
  %1902 = vmatpush.bf16.msra.mxu0 0
  %1903 = vmatpush.bf16.msra.mxu0 0
  %1904 = vmatpush.bf16.msra.mxu0 0
  %1905 = vmatpush.bf16.msra.mxu0 0
  %1906 = vmatpush.bf16.msra.mxu0 0
  %1907 = vmatpush.bf16.msra.mxu0 %v1843
  %1908 = vmatmul.bf16.gmra.mxu0 %v1828
  %v1909 = vpop.f32.mrf.mxu0
  %v1910 = vadd.f32 0.0, %v1909
  %v1911 = vpop.f32.mrf.mxu0
  %1912 = vdwg.mxu0
  %1913 = vmatpush.bf16.msra.mxu0 0
  %1914 = vmatpush.bf16.msra.mxu0 0
  %1915 = vmatpush.bf16.msra.mxu0 0
  %1916 = vmatpush.bf16.msra.mxu0 0
  %1917 = vmatpush.bf16.msra.mxu0 0
  %1918 = vmatpush.bf16.msra.mxu0 0
  %1919 = vmatpush.bf16.msra.mxu0 0
  %1920 = vmatpush.bf16.msra.mxu0 %v1846
  %1921 = vmatmul.bf16.gmra.mxu0 %v1828
  %v1922 = vpop.f32.mrf.mxu0
  %v1923 = vadd.f32 0.0, %v1922
  %v1924 = vpop.f32.mrf.mxu0
  %1925 = vdwg.mxu0
  %v1926 = vadd.f32 %v1802, %v1858
  %v1927 = vadd.f32 %v1803, %v1871
  %v1928 = vadd.f32 %v1804, %v1884
  %v1929 = vadd.f32 %v1805, %v1897
  %v1930 = vadd.f32 %v1806, %v1910
  %v1931 = vadd.f32 %v1807, %v1923
  %s1932 = scalar_lea.vmem %s3, 20
  %v1933 = vld [vmem:[%s1932] sm:$0xf]
  %1934 = vrot.lane.b32.xlu0 %v1338, 108
  %v1935 = vpop.permute.xlu0 %1934
  %1936 = vrot.lane.b32.xlu0 %v1339, 108
  %v1937 = vpop.permute.xlu0 %1936
  %1938 = vrot.lane.b32.xlu0 %v1340, 108
  %v1939 = vpop.permute.xlu0 %1938
  %1940 = vrot.lane.b32.xlu0 %v1341, 108
  %v1941 = vpop.permute.xlu0 %1940
  %1942 = vrot.lane.b32.xlu0 %v1342, 108
  %v1943 = vpop.permute.xlu0 %1942
  %1944 = vrot.lane.b32.xlu0 %v1343, 108
  %v1945 = vpop.permute.xlu0 %1944
  %v1946 = vsel %vm739, %v1935, %v1937
  %v1947 = vsel %vm739, %v1937, %v1939
  %v1948 = vsel %vm739, %v1939, %v1941
  %v1949 = vsel %vm739, %v1941, %v1943
  %v1950 = vsel %vm739, %v1943, %v1945
  %v1952 = vsel %vm1361, %v1933, 0
  %v1955 = vsel %vm81, %v1946, 0
  %v1958 = vsel %vm81, %v1947, 0
  %v1961 = vsel %vm81, %v1948, 0
  %v1964 = vsel %vm81, %v1949, 0
  %v1967 = vsel %vm81, %v1950, 0
  %v1970 = vsel %vm81, %v1945, 0
  %1972 = vmatpush.bf16.msra.mxu0 0
  %1973 = vmatpush.bf16.msra.mxu0 0
  %1974 = vmatpush.bf16.msra.mxu0 0
  %1975 = vmatpush.bf16.msra.mxu0 0
  %1976 = vmatpush.bf16.msra.mxu0 0
  %1977 = vmatpush.bf16.msra.mxu0 0
  %1978 = vmatpush.bf16.msra.mxu0 0
  %1979 = vmatpush.bf16.msra.mxu0 %v1955
  %1980 = vmatmul.bf16.gmra.mxu0 %v1952
  %v1981 = vpop.f32.mrf.mxu0
  %v1982 = vadd.f32 0.0, %v1981
  %v1983 = vpop.f32.mrf.mxu0
  %1984 = vdwg.mxu0
  %1985 = vmatpush.bf16.msra.mxu0 0
  %1986 = vmatpush.bf16.msra.mxu0 0
  %1987 = vmatpush.bf16.msra.mxu0 0
  %1988 = vmatpush.bf16.msra.mxu0 0
  %1989 = vmatpush.bf16.msra.mxu0 0
  %1990 = vmatpush.bf16.msra.mxu0 0
  %1991 = vmatpush.bf16.msra.mxu0 0
  %1992 = vmatpush.bf16.msra.mxu0 %v1958
  %1993 = vmatmul.bf16.gmra.mxu0 %v1952
  %v1994 = vpop.f32.mrf.mxu0
  %v1995 = vadd.f32 0.0, %v1994
  %v1996 = vpop.f32.mrf.mxu0
  %1997 = vdwg.mxu0
  %1998 = vmatpush.bf16.msra.mxu0 0
  %1999 = vmatpush.bf16.msra.mxu0 0
  %2000 = vmatpush.bf16.msra.mxu0 0
  %2001 = vmatpush.bf16.msra.mxu0 0
  %2002 = vmatpush.bf16.msra.mxu0 0
  %2003 = vmatpush.bf16.msra.mxu0 0
  %2004 = vmatpush.bf16.msra.mxu0 0
  %2005 = vmatpush.bf16.msra.mxu0 %v1961
  %2006 = vmatmul.bf16.gmra.mxu0 %v1952
  %v2007 = vpop.f32.mrf.mxu0
  %v2008 = vadd.f32 0.0, %v2007
  %v2009 = vpop.f32.mrf.mxu0
  %2010 = vdwg.mxu0
  %2011 = vmatpush.bf16.msra.mxu0 0
  %2012 = vmatpush.bf16.msra.mxu0 0
  %2013 = vmatpush.bf16.msra.mxu0 0
  %2014 = vmatpush.bf16.msra.mxu0 0
  %2015 = vmatpush.bf16.msra.mxu0 0
  %2016 = vmatpush.bf16.msra.mxu0 0
  %2017 = vmatpush.bf16.msra.mxu0 0
  %2018 = vmatpush.bf16.msra.mxu0 %v1964
  %2019 = vmatmul.bf16.gmra.mxu0 %v1952
  %v2020 = vpop.f32.mrf.mxu0
  %v2021 = vadd.f32 0.0, %v2020
  %v2022 = vpop.f32.mrf.mxu0
  %2023 = vdwg.mxu0
  %2024 = vmatpush.bf16.msra.mxu0 0
  %2025 = vmatpush.bf16.msra.mxu0 0
  %2026 = vmatpush.bf16.msra.mxu0 0
  %2027 = vmatpush.bf16.msra.mxu0 0
  %2028 = vmatpush.bf16.msra.mxu0 0
  %2029 = vmatpush.bf16.msra.mxu0 0
  %2030 = vmatpush.bf16.msra.mxu0 0
  %2031 = vmatpush.bf16.msra.mxu0 %v1967
  %2032 = vmatmul.bf16.gmra.mxu0 %v1952
  %v2033 = vpop.f32.mrf.mxu0
  %v2034 = vadd.f32 0.0, %v2033
  %v2035 = vpop.f32.mrf.mxu0
  %2036 = vdwg.mxu0
  %2037 = vmatpush.bf16.msra.mxu0 0
  %2038 = vmatpush.bf16.msra.mxu0 0
  %2039 = vmatpush.bf16.msra.mxu0 0
  %2040 = vmatpush.bf16.msra.mxu0 0
  %2041 = vmatpush.bf16.msra.mxu0 0
  %2042 = vmatpush.bf16.msra.mxu0 0
  %2043 = vmatpush.bf16.msra.mxu0 0
  %2044 = vmatpush.bf16.msra.mxu0 %v1970
  %2045 = vmatmul.bf16.gmra.mxu0 %v1952
  %v2046 = vpop.f32.mrf.mxu0
  %v2047 = vadd.f32 0.0, %v2046
  %v2048 = vpop.f32.mrf.mxu0
  %2049 = vdwg.mxu0
  %v2050 = vadd.f32 %v1926, %v1982
  %v2051 = vadd.f32 %v1927, %v1995
  %v2052 = vadd.f32 %v1928, %v2008
  %v2053 = vadd.f32 %v1929, %v2021
  %v2054 = vadd.f32 %v1930, %v2034
  %v2055 = vadd.f32 %v1931, %v2047
  %s2056 = scalar_lea.vmem %s3, 24
  %v2057 = vld [vmem:[%s2056] sm:$0xf]
  %2058 = vrot.lane.b32.xlu0 %v1338, 92
  %v2059 = vpop.permute.xlu0 %2058
  %2060 = vrot.lane.b32.xlu0 %v1339, 92
  %v2061 = vpop.permute.xlu0 %2060
  %2062 = vrot.lane.b32.xlu0 %v1340, 92
  %v2063 = vpop.permute.xlu0 %2062
  %2064 = vrot.lane.b32.xlu0 %v1341, 92
  %v2065 = vpop.permute.xlu0 %2064
  %2066 = vrot.lane.b32.xlu0 %v1342, 92
  %v2067 = vpop.permute.xlu0 %2066
  %2068 = vrot.lane.b32.xlu0 %v1343, 92
  %v2069 = vpop.permute.xlu0 %2068
  %v2070 = vsel %vm864, %v2059, %v2061
  %v2071 = vsel %vm864, %v2061, %v2063
  %v2072 = vsel %vm864, %v2063, %v2065
  %v2073 = vsel %vm864, %v2065, %v2067
  %v2074 = vsel %vm864, %v2067, %v2069
  %v2076 = vsel %vm1361, %v2057, 0
  %v2079 = vsel %vm81, %v2070, 0
  %v2082 = vsel %vm81, %v2071, 0
  %v2085 = vsel %vm81, %v2072, 0
  %v2088 = vsel %vm81, %v2073, 0
  %v2091 = vsel %vm81, %v2074, 0
  %v2094 = vsel %vm81, %v2069, 0
  %2096 = vmatpush.bf16.msra.mxu0 0
  %2097 = vmatpush.bf16.msra.mxu0 0
  %2098 = vmatpush.bf16.msra.mxu0 0
  %2099 = vmatpush.bf16.msra.mxu0 0
  %2100 = vmatpush.bf16.msra.mxu0 0
  %2101 = vmatpush.bf16.msra.mxu0 0
  %2102 = vmatpush.bf16.msra.mxu0 0
  %2103 = vmatpush.bf16.msra.mxu0 %v2079
  %2104 = vmatmul.bf16.gmra.mxu0 %v2076
  %v2105 = vpop.f32.mrf.mxu0
  %v2106 = vadd.f32 0.0, %v2105
  %v2107 = vpop.f32.mrf.mxu0
  %2108 = vdwg.mxu0
  %2109 = vmatpush.bf16.msra.mxu0 0
  %2110 = vmatpush.bf16.msra.mxu0 0
  %2111 = vmatpush.bf16.msra.mxu0 0
  %2112 = vmatpush.bf16.msra.mxu0 0
  %2113 = vmatpush.bf16.msra.mxu0 0
  %2114 = vmatpush.bf16.msra.mxu0 0
  %2115 = vmatpush.bf16.msra.mxu0 0
  %2116 = vmatpush.bf16.msra.mxu0 %v2082
  %2117 = vmatmul.bf16.gmra.mxu0 %v2076
  %v2118 = vpop.f32.mrf.mxu0
  %v2119 = vadd.f32 0.0, %v2118
  %v2120 = vpop.f32.mrf.mxu0
  %2121 = vdwg.mxu0
  %2122 = vmatpush.bf16.msra.mxu0 0
  %2123 = vmatpush.bf16.msra.mxu0 0
  %2124 = vmatpush.bf16.msra.mxu0 0
  %2125 = vmatpush.bf16.msra.mxu0 0
  %2126 = vmatpush.bf16.msra.mxu0 0
  %2127 = vmatpush.bf16.msra.mxu0 0
  %2128 = vmatpush.bf16.msra.mxu0 0
  %2129 = vmatpush.bf16.msra.mxu0 %v2085
  %2130 = vmatmul.bf16.gmra.mxu0 %v2076
  %v2131 = vpop.f32.mrf.mxu0
  %v2132 = vadd.f32 0.0, %v2131
  %v2133 = vpop.f32.mrf.mxu0
  %2134 = vdwg.mxu0
  %2135 = vmatpush.bf16.msra.mxu0 0
  %2136 = vmatpush.bf16.msra.mxu0 0
  %2137 = vmatpush.bf16.msra.mxu0 0
  %2138 = vmatpush.bf16.msra.mxu0 0
  %2139 = vmatpush.bf16.msra.mxu0 0
  %2140 = vmatpush.bf16.msra.mxu0 0
  %2141 = vmatpush.bf16.msra.mxu0 0
  %2142 = vmatpush.bf16.msra.mxu0 %v2088
  %2143 = vmatmul.bf16.gmra.mxu0 %v2076
  %v2144 = vpop.f32.mrf.mxu0
  %v2145 = vadd.f32 0.0, %v2144
  %v2146 = vpop.f32.mrf.mxu0
  %2147 = vdwg.mxu0
  %2148 = vmatpush.bf16.msra.mxu0 0
  %2149 = vmatpush.bf16.msra.mxu0 0
  %2150 = vmatpush.bf16.msra.mxu0 0
  %2151 = vmatpush.bf16.msra.mxu0 0
  %2152 = vmatpush.bf16.msra.mxu0 0
  %2153 = vmatpush.bf16.msra.mxu0 0
  %2154 = vmatpush.bf16.msra.mxu0 0
  %2155 = vmatpush.bf16.msra.mxu0 %v2091
  %2156 = vmatmul.bf16.gmra.mxu0 %v2076
  %v2157 = vpop.f32.mrf.mxu0
  %v2158 = vadd.f32 0.0, %v2157
  %v2159 = vpop.f32.mrf.mxu0
  %2160 = vdwg.mxu0
  %2161 = vmatpush.bf16.msra.mxu0 0
  %2162 = vmatpush.bf16.msra.mxu0 0
  %2163 = vmatpush.bf16.msra.mxu0 0
  %2164 = vmatpush.bf16.msra.mxu0 0
  %2165 = vmatpush.bf16.msra.mxu0 0
  %2166 = vmatpush.bf16.msra.mxu0 0
  %2167 = vmatpush.bf16.msra.mxu0 0
  %2168 = vmatpush.bf16.msra.mxu0 %v2094
  %2169 = vmatmul.bf16.gmra.mxu0 %v2076
  %v2170 = vpop.f32.mrf.mxu0
  %v2171 = vadd.f32 0.0, %v2170
  %v2172 = vpop.f32.mrf.mxu0
  %2173 = vdwg.mxu0
  %v2174 = vadd.f32 %v2050, %v2106
  %v2175 = vadd.f32 %v2051, %v2119
  %v2176 = vadd.f32 %v2052, %v2132
  %v2177 = vadd.f32 %v2053, %v2145
  %v2178 = vadd.f32 %v2054, %v2158
  %v2179 = vadd.f32 %v2055, %v2171
  %s2180 = scalar_lea.vmem %s3, 28
  %v2181 = vld [vmem:[%s2180] sm:$0xf]
  %2182 = vrot.lane.b32.xlu0 %v1338, 91
  %v2183 = vpop.permute.xlu0 %2182
  %2184 = vrot.lane.b32.xlu0 %v1339, 91
  %v2185 = vpop.permute.xlu0 %2184
  %2186 = vrot.lane.b32.xlu0 %v1340, 91
  %v2187 = vpop.permute.xlu0 %2186
  %2188 = vrot.lane.b32.xlu0 %v1341, 91
  %v2189 = vpop.permute.xlu0 %2188
  %2190 = vrot.lane.b32.xlu0 %v1342, 91
  %v2191 = vpop.permute.xlu0 %2190
  %2192 = vrot.lane.b32.xlu0 %v1343, 91
  %v2193 = vpop.permute.xlu0 %2192
  %v2194 = vsel %vm989, %v2183, %v2185
  %v2195 = vsel %vm989, %v2185, %v2187
  %v2196 = vsel %vm989, %v2187, %v2189
  %v2197 = vsel %vm989, %v2189, %v2191
  %v2198 = vsel %vm989, %v2191, %v2193
  %v2200 = vsel %vm1361, %v2181, 0
  %v2203 = vsel %vm81, %v2194, 0
  %v2206 = vsel %vm81, %v2195, 0
  %v2209 = vsel %vm81, %v2196, 0
  %v2212 = vsel %vm81, %v2197, 0
  %v2215 = vsel %vm81, %v2198, 0
  %v2218 = vsel %vm81, %v2193, 0
  %2220 = vmatpush.bf16.msra.mxu0 0
  %2221 = vmatpush.bf16.msra.mxu0 0
  %2222 = vmatpush.bf16.msra.mxu0 0
  %2223 = vmatpush.bf16.msra.mxu0 0
  %2224 = vmatpush.bf16.msra.mxu0 0
  %2225 = vmatpush.bf16.msra.mxu0 0
  %2226 = vmatpush.bf16.msra.mxu0 0
  %2227 = vmatpush.bf16.msra.mxu0 %v2203
  %2228 = vmatmul.bf16.gmra.mxu0 %v2200
  %v2229 = vpop.f32.mrf.mxu0
  %v2230 = vadd.f32 0.0, %v2229
  %v2231 = vpop.f32.mrf.mxu0
  %2232 = vdwg.mxu0
  %2233 = vmatpush.bf16.msra.mxu0 0
  %2234 = vmatpush.bf16.msra.mxu0 0
  %2235 = vmatpush.bf16.msra.mxu0 0
  %2236 = vmatpush.bf16.msra.mxu0 0
  %2237 = vmatpush.bf16.msra.mxu0 0
  %2238 = vmatpush.bf16.msra.mxu0 0
  %2239 = vmatpush.bf16.msra.mxu0 0
  %2240 = vmatpush.bf16.msra.mxu0 %v2206
  %2241 = vmatmul.bf16.gmra.mxu0 %v2200
  %v2242 = vpop.f32.mrf.mxu0
  %v2243 = vadd.f32 0.0, %v2242
  %v2244 = vpop.f32.mrf.mxu0
  %2245 = vdwg.mxu0
  %2246 = vmatpush.bf16.msra.mxu0 0
  %2247 = vmatpush.bf16.msra.mxu0 0
  %2248 = vmatpush.bf16.msra.mxu0 0
  %2249 = vmatpush.bf16.msra.mxu0 0
  %2250 = vmatpush.bf16.msra.mxu0 0
  %2251 = vmatpush.bf16.msra.mxu0 0
  %2252 = vmatpush.bf16.msra.mxu0 0
  %2253 = vmatpush.bf16.msra.mxu0 %v2209
  %2254 = vmatmul.bf16.gmra.mxu0 %v2200
  %v2255 = vpop.f32.mrf.mxu0
  %v2256 = vadd.f32 0.0, %v2255
  %v2257 = vpop.f32.mrf.mxu0
  %2258 = vdwg.mxu0
  %2259 = vmatpush.bf16.msra.mxu0 0
  %2260 = vmatpush.bf16.msra.mxu0 0
  %2261 = vmatpush.bf16.msra.mxu0 0
  %2262 = vmatpush.bf16.msra.mxu0 0
  %2263 = vmatpush.bf16.msra.mxu0 0
  %2264 = vmatpush.bf16.msra.mxu0 0
  %2265 = vmatpush.bf16.msra.mxu0 0
  %2266 = vmatpush.bf16.msra.mxu0 %v2212
  %2267 = vmatmul.bf16.gmra.mxu0 %v2200
  %v2268 = vpop.f32.mrf.mxu0
  %v2269 = vadd.f32 0.0, %v2268
  %v2270 = vpop.f32.mrf.mxu0
  %2271 = vdwg.mxu0
  %2272 = vmatpush.bf16.msra.mxu0 0
  %2273 = vmatpush.bf16.msra.mxu0 0
  %2274 = vmatpush.bf16.msra.mxu0 0
  %2275 = vmatpush.bf16.msra.mxu0 0
  %2276 = vmatpush.bf16.msra.mxu0 0
  %2277 = vmatpush.bf16.msra.mxu0 0
  %2278 = vmatpush.bf16.msra.mxu0 0
  %2279 = vmatpush.bf16.msra.mxu0 %v2215
  %2280 = vmatmul.bf16.gmra.mxu0 %v2200
  %v2281 = vpop.f32.mrf.mxu0
  %v2282 = vadd.f32 0.0, %v2281
  %v2283 = vpop.f32.mrf.mxu0
  %2284 = vdwg.mxu0
  %2285 = vmatpush.bf16.msra.mxu0 0
  %2286 = vmatpush.bf16.msra.mxu0 0
  %2287 = vmatpush.bf16.msra.mxu0 0
  %2288 = vmatpush.bf16.msra.mxu0 0
  %2289 = vmatpush.bf16.msra.mxu0 0
  %2290 = vmatpush.bf16.msra.mxu0 0
  %2291 = vmatpush.bf16.msra.mxu0 0
  %2292 = vmatpush.bf16.msra.mxu0 %v2218
  %2293 = vmatmul.bf16.gmra.mxu0 %v2200
  %v2294 = vpop.f32.mrf.mxu0
  %v2295 = vadd.f32 0.0, %v2294
  %v2296 = vpop.f32.mrf.mxu0
  %2297 = vdwg.mxu0
  %v2298 = vadd.f32 %v2174, %v2230
  %v2299 = vadd.f32 %v2175, %v2243
  %v2300 = vadd.f32 %v2176, %v2256
  %v2301 = vadd.f32 %v2177, %v2269
  %v2302 = vadd.f32 %v2178, %v2282
  %v2303 = vadd.f32 %v2179, %v2295
  %s2304 = scalar_lea.vmem %s3, 32
  %v2305 = vld [vmem:[%s2304] sm:$0xf]
  %2306 = vrot.lane.b32.xlu0 %v1338, 90
  %v2307 = vpop.permute.xlu0 %2306
  %2308 = vrot.lane.b32.xlu0 %v1339, 90
  %v2309 = vpop.permute.xlu0 %2308
  %2310 = vrot.lane.b32.xlu0 %v1340, 90
  %v2311 = vpop.permute.xlu0 %2310
  %2312 = vrot.lane.b32.xlu0 %v1341, 90
  %v2313 = vpop.permute.xlu0 %2312
  %2314 = vrot.lane.b32.xlu0 %v1342, 90
  %v2315 = vpop.permute.xlu0 %2314
  %2316 = vrot.lane.b32.xlu0 %v1343, 90
  %v2317 = vpop.permute.xlu0 %2316
  %v2318 = vsel %vm1114, %v2307, %v2309
  %v2319 = vsel %vm1114, %v2309, %v2311
  %v2320 = vsel %vm1114, %v2311, %v2313
  %v2321 = vsel %vm1114, %v2313, %v2315
  %v2322 = vsel %vm1114, %v2315, %v2317
  %v2324 = vsel %vm1361, %v2305, 0
  %v2327 = vsel %vm81, %v2318, 0
  %v2330 = vsel %vm81, %v2319, 0
  %v2333 = vsel %vm81, %v2320, 0
  %v2336 = vsel %vm81, %v2321, 0
  %v2339 = vsel %vm81, %v2322, 0
  %v2342 = vsel %vm81, %v2317, 0
  %2344 = vmatpush.bf16.msra.mxu0 0
  %2345 = vmatpush.bf16.msra.mxu0 0
  %2346 = vmatpush.bf16.msra.mxu0 0
  %2347 = vmatpush.bf16.msra.mxu0 0
  %2348 = vmatpush.bf16.msra.mxu0 0
  %2349 = vmatpush.bf16.msra.mxu0 0
  %2350 = vmatpush.bf16.msra.mxu0 0
  %2351 = vmatpush.bf16.msra.mxu0 %v2327
  %2352 = vmatmul.bf16.gmra.mxu0 %v2324
  %v2353 = vpop.f32.mrf.mxu0
  %v2354 = vadd.f32 0.0, %v2353
  %v2355 = vpop.f32.mrf.mxu0
  %2356 = vdwg.mxu0
  %2357 = vmatpush.bf16.msra.mxu0 0
  %2358 = vmatpush.bf16.msra.mxu0 0
  %2359 = vmatpush.bf16.msra.mxu0 0
  %2360 = vmatpush.bf16.msra.mxu0 0
  %2361 = vmatpush.bf16.msra.mxu0 0
  %2362 = vmatpush.bf16.msra.mxu0 0
  %2363 = vmatpush.bf16.msra.mxu0 0
  %2364 = vmatpush.bf16.msra.mxu0 %v2330
  %2365 = vmatmul.bf16.gmra.mxu0 %v2324
  %v2366 = vpop.f32.mrf.mxu0
  %v2367 = vadd.f32 0.0, %v2366
  %v2368 = vpop.f32.mrf.mxu0
  %2369 = vdwg.mxu0
  %2370 = vmatpush.bf16.msra.mxu0 0
  %2371 = vmatpush.bf16.msra.mxu0 0
  %2372 = vmatpush.bf16.msra.mxu0 0
  %2373 = vmatpush.bf16.msra.mxu0 0
  %2374 = vmatpush.bf16.msra.mxu0 0
  %2375 = vmatpush.bf16.msra.mxu0 0
  %2376 = vmatpush.bf16.msra.mxu0 0
  %2377 = vmatpush.bf16.msra.mxu0 %v2333
  %2378 = vmatmul.bf16.gmra.mxu0 %v2324
  %v2379 = vpop.f32.mrf.mxu0
  %v2380 = vadd.f32 0.0, %v2379
  %v2381 = vpop.f32.mrf.mxu0
  %2382 = vdwg.mxu0
  %2383 = vmatpush.bf16.msra.mxu0 0
  %2384 = vmatpush.bf16.msra.mxu0 0
  %2385 = vmatpush.bf16.msra.mxu0 0
  %2386 = vmatpush.bf16.msra.mxu0 0
  %2387 = vmatpush.bf16.msra.mxu0 0
  %2388 = vmatpush.bf16.msra.mxu0 0
  %2389 = vmatpush.bf16.msra.mxu0 0
  %2390 = vmatpush.bf16.msra.mxu0 %v2336
  %2391 = vmatmul.bf16.gmra.mxu0 %v2324
  %v2392 = vpop.f32.mrf.mxu0
  %v2393 = vadd.f32 0.0, %v2392
  %v2394 = vpop.f32.mrf.mxu0
  %2395 = vdwg.mxu0
  %2396 = vmatpush.bf16.msra.mxu0 0
  %2397 = vmatpush.bf16.msra.mxu0 0
  %2398 = vmatpush.bf16.msra.mxu0 0
  %2399 = vmatpush.bf16.msra.mxu0 0
  %2400 = vmatpush.bf16.msra.mxu0 0
  %2401 = vmatpush.bf16.msra.mxu0 0
  %2402 = vmatpush.bf16.msra.mxu0 0
  %2403 = vmatpush.bf16.msra.mxu0 %v2339
  %2404 = vmatmul.bf16.gmra.mxu0 %v2324
  %v2405 = vpop.f32.mrf.mxu0
  %v2406 = vadd.f32 0.0, %v2405
  %v2407 = vpop.f32.mrf.mxu0
  %2408 = vdwg.mxu0
  %2409 = vmatpush.bf16.msra.mxu0 0
  %2410 = vmatpush.bf16.msra.mxu0 0
  %2411 = vmatpush.bf16.msra.mxu0 0
  %2412 = vmatpush.bf16.msra.mxu0 0
  %2413 = vmatpush.bf16.msra.mxu0 0
  %2414 = vmatpush.bf16.msra.mxu0 0
  %2415 = vmatpush.bf16.msra.mxu0 0
  %2416 = vmatpush.bf16.msra.mxu0 %v2342
  %2417 = vmatmul.bf16.gmra.mxu0 %v2324
  %v2418 = vpop.f32.mrf.mxu0
  %v2419 = vadd.f32 0.0, %v2418
  %v2420 = vpop.f32.mrf.mxu0
  %2421 = vdwg.mxu0
  %v2422 = vadd.f32 %v2298, %v2354
  %v2423 = vadd.f32 %v2299, %v2367
  %v2424 = vadd.f32 %v2300, %v2380
  %v2425 = vadd.f32 %v2301, %v2393
  %v2426 = vadd.f32 %v2302, %v2406
  %v2427 = vadd.f32 %v2303, %v2419
  %v2428 = vld [vmem:[%s10] sm:$0xf]
  %v2430 = vsel %vm150, %v2428, 0
  %2432 = vmatpush.bf16.msra.mxu0 0
  %2433 = vmatpush.bf16.msra.mxu0 0
  %2434 = vmatpush.bf16.msra.mxu0 0
  %2435 = vmatpush.bf16.msra.mxu0 0
  %2436 = vmatpush.bf16.msra.mxu0 0
  %2437 = vmatpush.bf16.msra.mxu0 0
  %2438 = vmatpush.bf16.msra.mxu0 0
  %2439 = vmatpush.bf16.msra.mxu0 %v624
  %2440 = vmatmul.bf16.gmra.mxu0 %v2430
  %v2441 = vpop.f32.mrf.mxu0
  %v2442 = vadd.f32 0.0, %v2441
  %v2443 = vpop.f32.mrf.mxu0
  %2444 = vdwg.mxu0
  %2445 = vmatpush.bf16.msra.mxu0 0
  %2446 = vmatpush.bf16.msra.mxu0 0
  %2447 = vmatpush.bf16.msra.mxu0 0
  %2448 = vmatpush.bf16.msra.mxu0 0
  %2449 = vmatpush.bf16.msra.mxu0 0
  %2450 = vmatpush.bf16.msra.mxu0 0
  %2451 = vmatpush.bf16.msra.mxu0 0
  %2452 = vmatpush.bf16.msra.mxu0 %v627
  %2453 = vmatmul.bf16.gmra.mxu0 %v2430
  %v2454 = vpop.f32.mrf.mxu0
  %v2455 = vadd.f32 0.0, %v2454
  %v2456 = vpop.f32.mrf.mxu0
  %2457 = vdwg.mxu0
  %2458 = vmatpush.bf16.msra.mxu0 0
  %2459 = vmatpush.bf16.msra.mxu0 0
  %2460 = vmatpush.bf16.msra.mxu0 0
  %2461 = vmatpush.bf16.msra.mxu0 0
  %2462 = vmatpush.bf16.msra.mxu0 0
  %2463 = vmatpush.bf16.msra.mxu0 0
  %2464 = vmatpush.bf16.msra.mxu0 0
  %2465 = vmatpush.bf16.msra.mxu0 %v630
  %2466 = vmatmul.bf16.gmra.mxu0 %v2430
  %v2467 = vpop.f32.mrf.mxu0
  %v2468 = vadd.f32 0.0, %v2467
  %v2469 = vpop.f32.mrf.mxu0
  %2470 = vdwg.mxu0
  %2471 = vmatpush.bf16.msra.mxu0 0
  %2472 = vmatpush.bf16.msra.mxu0 0
  %2473 = vmatpush.bf16.msra.mxu0 0
  %2474 = vmatpush.bf16.msra.mxu0 0
  %2475 = vmatpush.bf16.msra.mxu0 0
  %2476 = vmatpush.bf16.msra.mxu0 0
  %2477 = vmatpush.bf16.msra.mxu0 0
  %2478 = vmatpush.bf16.msra.mxu0 %v633
  %2479 = vmatmul.bf16.gmra.mxu0 %v2430
  %v2480 = vpop.f32.mrf.mxu0
  %v2481 = vadd.f32 0.0, %v2480
  %v2482 = vpop.f32.mrf.mxu0
  %2483 = vdwg.mxu0
  %2484 = vmatpush.bf16.msra.mxu0 0
  %2485 = vmatpush.bf16.msra.mxu0 0
  %2486 = vmatpush.bf16.msra.mxu0 0
  %2487 = vmatpush.bf16.msra.mxu0 0
  %2488 = vmatpush.bf16.msra.mxu0 0
  %2489 = vmatpush.bf16.msra.mxu0 0
  %2490 = vmatpush.bf16.msra.mxu0 0
  %2491 = vmatpush.bf16.msra.mxu0 %v636
  %2492 = vmatmul.bf16.gmra.mxu0 %v2430
  %v2493 = vpop.f32.mrf.mxu0
  %v2494 = vadd.f32 0.0, %v2493
  %v2495 = vpop.f32.mrf.mxu0
  %2496 = vdwg.mxu0
  %2497 = vmatpush.bf16.msra.mxu0 0
  %2498 = vmatpush.bf16.msra.mxu0 0
  %2499 = vmatpush.bf16.msra.mxu0 0
  %2500 = vmatpush.bf16.msra.mxu0 0
  %2501 = vmatpush.bf16.msra.mxu0 0
  %2502 = vmatpush.bf16.msra.mxu0 0
  %2503 = vmatpush.bf16.msra.mxu0 0
  %2504 = vmatpush.bf16.msra.mxu0 %v639
  %2505 = vmatmul.bf16.gmra.mxu0 %v2430
  %v2506 = vpop.f32.mrf.mxu0
  %v2507 = vadd.f32 0.0, %v2506
  %v2508 = vpop.f32.mrf.mxu0
  %2509 = vdwg.mxu0
  %v2510 = vld [vmem:[%s6] sm:$0xff]
  %2512 = vset.pattern.permute.xlu0 0
  %2513 = vperm.xlu0 %2512, %v2510
  %v2514 = vpop.permute.xlu0 %2513
  %v2516 = vmul.f32 %v2422, %v2514
  %v2517 = vmul.f32 %v2423, %v2514
  %v2518 = vmul.f32 %v2424, %v2514
  %v2519 = vmul.f32 %v2425, %v2514
  %v2520 = vmul.f32 %v2426, %v2514
  %v2521 = vmul.f32 %v2427, %v2514
  %v2522 = vld [vmem:[%s7] sm:$0xff]
  %2524 = vset.pattern.permute.xlu0 0
  %2525 = vperm.xlu0 %2524, %v2522
  %v2526 = vpop.permute.xlu0 %2525
  %v2528 = vadd.f32 %v2516, %v2526
  %v2529 = vadd.f32 %v2517, %v2526
  %v2530 = vadd.f32 %v2518, %v2526
  %v2531 = vadd.f32 %v2519, %v2526
  %v2532 = vadd.f32 %v2520, %v2526
  %v2533 = vadd.f32 %v2521, %v2526
  %v2534 = vadd.f32 %v2528, %v2442
  %v2535 = vadd.f32 %v2529, %v2455
  %v2536 = vadd.f32 %v2530, %v2468
  %v2537 = vadd.f32 %v2531, %v2481
  %v2538 = vadd.f32 %v2532, %v2494
  %v2539 = vadd.f32 %v2533, %v2507
  %v2540 = vmax.f32 %v2534, 0.0
  %v2541 = vmax.f32 %v2535, 0.0
  %v2542 = vmax.f32 %v2536, 0.0
  %v2543 = vmax.f32 %v2537, 0.0
  %v2544 = vmax.f32 %v2538, 0.0
  %v2545 = vmax.f32 %v2539, 0.0
  %v2546 = vmul.f32 %v2540, %v1268
  %v2547 = vmul.f32 %v2541, %v1269
  %v2548 = vmul.f32 %v2542, %v1270
  %v2549 = vmul.f32 %v2543, %v1271
  %v2550 = vmul.f32 %v2544, %v1272
  %v2551 = vmul.f32 %v2545, %v1266
  %v2552 = vpack.c.bf16 %v2547, %v2546
  %v2553 = vpack.c.bf16 %v2549, %v2548
  %v2554 = vpack.c.bf16 %v2551, %v2550
  %2555 = vst [vmem:[%s11] sm:$0xff] %v2552
  %2556 = vst [vmem:[%s11 + $0x8] sm:$0xff] %v2553
  %vm2557 = vcmask 64516
  %vm2558 = vmor %vm2557, %vm81
  %2559 = vst.msk [vmem:[%s11 + $0x10] sm:$0xff] %vm2558, %v2554
  // Predicated region
  $region46: #{encoder_fwd.4} parent=0 // pred_check
    _
  $region47: #{encoder_fwd.4} parent=0 // pred_check_branch
    %2561 = sbr.rel (0) target = $region49
  $region48: #{encoder_fwd.4} parent=0 // pred_region
    _
  $region49: #{encoder_fwd.4} parent=0 // pred_fallthru
    _
  // Predicated region
  $region50: #{encoder_fwd.4} parent=0 // pred_check
    _
  $region51: #{encoder_fwd.4} parent=0 // pred_check_branch
    %2563 = sbr.rel (0) target = $region53
  $region52: #{encoder_fwd.4} parent=0 // pred_region
    _
  $region53: #{encoder_fwd.4} parent=0 // pred_fallthru
    _

// kernel: encoder_fwd.7
$region0: #{encoder_fwd.7}
  #allocation0 [shape = 'u32[]', space=smem, size = 0x4, offset = 0x4, fixed_abs, tag = 'smem constant byte address 0x4 - core index']
  #allocation1 [shape = 'u32[72,128]{1,0:T(1,128)}', space=vmem, size = 0x9000, scoped, tag = 'internal scratch']
  %s0 = inlined_call_operand.vmem [shape: bf16[4,16,32], index: 0, kind: input, shape index: {}]
  %s1 = inlined_call_operand.vmem [shape: bf16[16,32], index: 1, kind: output, shape index: {}]
  %s2 = sld [smem:[#allocation0]]
  $region14: #{encoder_fwd.7} parent=0
    _
  %s4 = ssub.s32 1, %s2
  %s5 = scalar_select 0, %s4, %s2
  // Predicated region
  $region2: #{encoder_fwd.7} parent=0 // pred_check
    _
  $region3: #{encoder_fwd.7} parent=0 // pred_check_branch
    %7 = sbr.rel (0) target = $region5
  $region4: #{encoder_fwd.7} parent=0 // pred_region
    _
  $region5: #{encoder_fwd.7} parent=0 // pred_fallthru
    _
  %v8 = vld [vmem:[%s0] sm:$0xf]
  %v9 = vld [vmem:[%s0 + $0x4] sm:$0xf]
  %v10 = vld [vmem:[%s0 + $0x8] sm:$0xf]
  %v11 = vld [vmem:[%s0 + $0xc] sm:$0xf]
  %v12 = vld [vmem:[%s0 + $0x10] sm:$0xf]
  %v13 = vld [vmem:[%s0 + $0x14] sm:$0xf]
  %v14 = vld [vmem:[%s0 + $0x18] sm:$0xf]
  %v15 = vld [vmem:[%s0 + $0x1c] sm:$0xf]
  %v16 = vunpack.c.l.bf16 %v8
  %v17 = vunpack.c.l.bf16 %v9
  %v18 = vunpack.c.l.bf16 %v10
  %v19 = vunpack.c.l.bf16 %v11
  %v20 = vunpack.c.l.bf16 %v12
  %v21 = vunpack.c.l.bf16 %v13
  %v22 = vunpack.c.l.bf16 %v14
  %v23 = vunpack.c.l.bf16 %v15
  %vm24 = vcmask 261120
  %v25 = vsel %vm24, %v16, 0.0
  %v26 = vsel %vm24, %v18, 0.0
  %v27 = vadd.f32 %v25, %v26
  %v28 = vsel %vm24, %v20, 0.0
  %v29 = vadd.f32 %v27, %v28
  %v30 = vsel %vm24, %v22, 0.0
  %v31 = vadd.f32 %v29, %v30
  %v32 = vsel %vm24, %v17, 0.0
  %v33 = vsel %vm24, %v19, 0.0
  %v34 = vadd.f32 %v32, %v33
  %v35 = vsel %vm24, %v21, 0.0
  %v36 = vadd.f32 %v34, %v35
  %v37 = vsel %vm24, %v23, 0.0
  %v38 = vadd.f32 %v36, %v37
  %v39 = vmul.f32 %v31, 0.25
  %v40 = vmul.f32 %v38, 0.25
  %v41 = vpack.c.bf16 %v39, %v39
  %v42 = vpack.c.bf16 %v40, %v40
  %vm43 = vcmask 257024
  %44 = vst.msk [vmem:[%s1] sm:$0xf] %vm43, %v41
  %45 = vst.msk [vmem:[%s1 + $0x4] sm:$0xf] %vm43, %v42
  // Predicated region
  $region6: #{encoder_fwd.7} parent=0 // pred_check
    _
  $region7: #{encoder_fwd.7} parent=0 // pred_check_branch
    %47 = sbr.rel (0) target = $region9
  $region8: #{encoder_fwd.7} parent=0 // pred_region
    _
  $region9: #{encoder_fwd.7} parent=0 // pred_fallthru
    _
  // Predicated region
  $region10: #{encoder_fwd.7} parent=0 // pred_check
    _
  $region11: #{encoder_fwd.7} parent=0 // pred_check_branch
    %49 = sbr.rel (0) target = $region13
  $region12: #{encoder_fwd.7} parent=0 // pred_region
    _
  $region13: #{encoder_fwd.7} parent=0 // pred_fallthru
    _

// kernel: encoder_fwd.6
$region0: #{encoder_fwd.6}
  #allocation0 [shape = 'u32[]', space=smem, size = 0x4, offset = 0x4, fixed_abs, tag = 'smem constant byte address 0x4 - core index']
  #allocation1 [shape = 'u32[72,128]{1,0:T(1,128)}', space=vmem, size = 0x9000, scoped, tag = 'internal scratch']
  #allocation2 [shape = 'bf16[16,222]{1,0:T(8,128)(2,1)}', space=vmem, size = 0x2000, scoped, tag = 'scratch operand']
  %s0 = inlined_call_operand.vmem [shape: bf16[8,222], index: 0, kind: input, shape index: {}]
  %s1 = inlined_call_operand.vmem [shape: f32[1,222], index: 1, kind: input, shape index: {}]
  %s2 = inlined_call_operand.vmem [shape: bf16[9,16,8], index: 2, kind: input, shape index: {}]
  %s3 = inlined_call_operand.vmem [shape: bf16[9,16,16], index: 3, kind: input, shape index: {}]
  %s4 = inlined_call_operand.vmem [shape: f32[16,1], index: 4, kind: input, shape index: {}]
  %s5 = inlined_call_operand.vmem [shape: f32[16,1], index: 5, kind: input, shape index: {}]
  %s6 = inlined_call_operand.vmem [shape: f32[16,1], index: 6, kind: input, shape index: {}]
  %s7 = inlined_call_operand.vmem [shape: f32[16,1], index: 7, kind: input, shape index: {}]
  %s8 = inlined_call_operand.vmem [shape: bf16[16,8], index: 8, kind: input, shape index: {}]
  %s9 = inlined_call_operand.vmem [shape: bf16[16,200], index: 9, kind: output, shape index: {}]
  %s10 = sld [smem:[#allocation0]]
  $region46: #{encoder_fwd.6} parent=0
    _
  %s12 = ssub.s32 1, %s10
  %s13 = scalar_select 0, %s12, %s10
  // Predicated region
  $region2: #{encoder_fwd.6} parent=0 // pred_check
    _
  $region3: #{encoder_fwd.6} parent=0 // pred_check_branch
    %15 = sbr.rel (0) target = $region5
  $region4: #{encoder_fwd.6} parent=0 // pred_region
    _
  $region5: #{encoder_fwd.6} parent=0 // pred_fallthru
    _
  // Predicated region
  $region6: #{encoder_fwd.6} parent=0 // pred_check
    _
  $region7: #{encoder_fwd.6} parent=0 // pred_check_branch
    %17 = sbr.rel (0) target = $region9
  $region8: #{encoder_fwd.6} parent=0 // pred_region
    _
  $region9: #{encoder_fwd.6} parent=0 // pred_fallthru
    _
  // Predicated region
  $region10: #{encoder_fwd.6} parent=0 // pred_check
    _
  $region11: #{encoder_fwd.6} parent=0 // pred_check_branch
    %19 = sbr.rel (0) target = $region13
  $region12: #{encoder_fwd.6} parent=0 // pred_region
    _
  $region13: #{encoder_fwd.6} parent=0 // pred_fallthru
    _
  // Predicated region
  $region14: #{encoder_fwd.6} parent=0 // pred_check
    _
  $region15: #{encoder_fwd.6} parent=0 // pred_check_branch
    %21 = sbr.rel (0) target = $region17
  $region16: #{encoder_fwd.6} parent=0 // pred_region
    _
  $region17: #{encoder_fwd.6} parent=0 // pred_fallthru
    _
  // Predicated region
  $region18: #{encoder_fwd.6} parent=0 // pred_check
    _
  $region19: #{encoder_fwd.6} parent=0 // pred_check_branch
    %23 = sbr.rel (0) target = $region21
  $region20: #{encoder_fwd.6} parent=0 // pred_region
    _
  $region21: #{encoder_fwd.6} parent=0 // pred_fallthru
    _
  // Predicated region
  $region22: #{encoder_fwd.6} parent=0 // pred_check
    _
  $region23: #{encoder_fwd.6} parent=0 // pred_check_branch
    %25 = sbr.rel (0) target = $region25
  $region24: #{encoder_fwd.6} parent=0 // pred_region
    _
  $region25: #{encoder_fwd.6} parent=0 // pred_fallthru
    _
  // Predicated region
  $region26: #{encoder_fwd.6} parent=0 // pred_check
    _
  $region27: #{encoder_fwd.6} parent=0 // pred_check_branch
    %27 = sbr.rel (0) target = $region29
  $region28: #{encoder_fwd.6} parent=0 // pred_region
    _
  $region29: #{encoder_fwd.6} parent=0 // pred_fallthru
    _
  // Predicated region
  $region30: #{encoder_fwd.6} parent=0 // pred_check
    _
  $region31: #{encoder_fwd.6} parent=0 // pred_check_branch
    %29 = sbr.rel (0) target = $region33
  $region32: #{encoder_fwd.6} parent=0 // pred_region
    _
  $region33: #{encoder_fwd.6} parent=0 // pred_fallthru
    _
  // Predicated region
  $region34: #{encoder_fwd.6} parent=0 // pred_check
    _
  $region35: #{encoder_fwd.6} parent=0 // pred_check_branch
    %31 = sbr.rel (0) target = $region37
  $region36: #{encoder_fwd.6} parent=0 // pred_region
    _
  $region37: #{encoder_fwd.6} parent=0 // pred_fallthru
    _
  %v33 = vld [vmem:[%s1] sm:$0x3]
  %v34 = vld [vmem:[%s0] sm:$0xff]
  %v35 = vld [vmem:[%s2] sm:$0xf]
  %v36 = vld [vmem:[%s2 + $0x4] sm:$0xf]
  %s37 = scalar_lea.vmem %s2, 8
  %v38 = vld [vmem:[%s37] sm:$0xf]
  %v39 = vld [vmem:[%s37 + $0x4] sm:$0xf]
  %v42 = vunpack.c.l.b16 %v38
  %v43 = vunpack.c.l.b16 %v39
  %v44 = vpack.c.b16 %v43, %v42
  %v46 = vunpack.c.l.b16 %v34
  %v47 = vunpack.c.h.b16 %v34
  %v48 = vpack.c.b16 %v46, %v46
  %v49 = vpack.c.b16 %v47, %v47
  %50 = vrot.lane.b32.xlu0 %v48, 127
  %v51 = vpop.permute.xlu0 %50
  %52 = vrot.lane.b32.xlu0 %v49, 127
  %v53 = vpop.permute.xlu0 %52
  %vm54 = vcmask 1039360
  %v55 = vsel %vm54, %v51, %v53
  %vm56 = vcmask 64512
  %v58 = vsel %vm56, %v44, 0
  %vm60 = vcmask 1043456
  %v62 = vsel %vm60, %v55, 0
  %v65 = vsel %vm60, %v53, 0
  %67 = vmatpush.bf16.msra.mxu0 0
  %68 = vmatpush.bf16.msra.mxu0 0
  %69 = vmatpush.bf16.msra.mxu0 0
  %70 = vmatpush.bf16.msra.mxu0 0
  %71 = vmatpush.bf16.msra.mxu0 0
  %72 = vmatpush.bf16.msra.mxu0 0
  %73 = vmatpush.bf16.msra.mxu0 0
  %74 = vmatpush.bf16.msra.mxu0 %v62
  %75 = vmatmul.bf16.gmra.mxu0 %v58
  %v76 = vpop.f32.mrf.mxu0
  %v77 = vadd.f32 0.0, %v76
  %v78 = vpop.f32.mrf.mxu0
  %v79 = vadd.f32 0.0, %v78
  %80 = vdwg.mxu0
  %81 = vmatpush.bf16.msra.mxu0 0
  %82 = vmatpush.bf16.msra.mxu0 0
  %83 = vmatpush.bf16.msra.mxu0 0
  %84 = vmatpush.bf16.msra.mxu0 0
  %85 = vmatpush.bf16.msra.mxu0 0
  %86 = vmatpush.bf16.msra.mxu0 0
  %87 = vmatpush.bf16.msra.mxu0 0
  %88 = vmatpush.bf16.msra.mxu0 %v65
  %89 = vmatmul.bf16.gmra.mxu0 %v58
  %v90 = vpop.f32.mrf.mxu0
  %v91 = vadd.f32 0.0, %v90
  %v92 = vpop.f32.mrf.mxu0
  %v93 = vadd.f32 0.0, %v92
  %94 = vdwg.mxu0
  %v97 = vunpack.c.l.b16 %v35
  %v98 = vunpack.c.l.b16 %v36
  %v99 = vpack.c.b16 %v98, %v97
  %v101 = vsel %vm56, %v99, 0
  %v104 = vsel %vm60, %v48, 0
  %v107 = vsel %vm60, %v49, 0
  %109 = vmatpush.bf16.msra.mxu0 0
  %110 = vmatpush.bf16.msra.mxu0 0
  %111 = vmatpush.bf16.msra.mxu0 0
  %112 = vmatpush.bf16.msra.mxu0 0
  %113 = vmatpush.bf16.msra.mxu0 0
  %114 = vmatpush.bf16.msra.mxu0 0
  %115 = vmatpush.bf16.msra.mxu0 0
  %116 = vmatpush.bf16.msra.mxu0 %v104
  %117 = vmatmul.bf16.gmra.mxu0 %v101
  %v118 = vpop.f32.mrf.mxu0
  %v119 = vadd.f32 %v77, %v118
  %v120 = vpop.f32.mrf.mxu0
  %v121 = vadd.f32 %v79, %v120
  %122 = vdwg.mxu0
  %123 = vmatpush.bf16.msra.mxu0 0
  %124 = vmatpush.bf16.msra.mxu0 0
  %125 = vmatpush.bf16.msra.mxu0 0
  %126 = vmatpush.bf16.msra.mxu0 0
  %127 = vmatpush.bf16.msra.mxu0 0
  %128 = vmatpush.bf16.msra.mxu0 0
  %129 = vmatpush.bf16.msra.mxu0 0
  %130 = vmatpush.bf16.msra.mxu0 %v107
  %131 = vmatmul.bf16.gmra.mxu0 %v101
  %v132 = vpop.f32.mrf.mxu0
  %v133 = vadd.f32 %v91, %v132
  %v134 = vpop.f32.mrf.mxu0
  %v135 = vadd.f32 %v93, %v134
  %136 = vdwg.mxu0
  %s137 = scalar_lea.vmem %s2, 16
  %v138 = vld [vmem:[%s137] sm:$0xf]
  %v139 = vld [vmem:[%s137 + $0x4] sm:$0xf]
  %v142 = vunpack.c.l.b16 %v138
  %v143 = vunpack.c.l.b16 %v139
  %v144 = vpack.c.b16 %v143, %v142
  %145 = vrot.lane.b32.xlu0 %v48, 126
  %v146 = vpop.permute.xlu0 %145
  %147 = vrot.lane.b32.xlu0 %v49, 126
  %v148 = vpop.permute.xlu0 %147
  %vm149 = vcmask 1031168
  %v150 = vsel %vm149, %v146, %v148
  %v152 = vsel %vm56, %v144, 0
  %v155 = vsel %vm60, %v150, 0
  %v158 = vsel %vm60, %v148, 0
  %160 = vmatpush.bf16.msra.mxu0 0
  %161 = vmatpush.bf16.msra.mxu0 0
  %162 = vmatpush.bf16.msra.mxu0 0
  %163 = vmatpush.bf16.msra.mxu0 0
  %164 = vmatpush.bf16.msra.mxu0 0
  %165 = vmatpush.bf16.msra.mxu0 0
  %166 = vmatpush.bf16.msra.mxu0 0
  %167 = vmatpush.bf16.msra.mxu0 %v155
  %168 = vmatmul.bf16.gmra.mxu0 %v152
  %v169 = vpop.f32.mrf.mxu0
  %v170 = vadd.f32 0.0, %v169
  %v171 = vpop.f32.mrf.mxu0
  %v172 = vadd.f32 0.0, %v171
  %173 = vdwg.mxu0
  %174 = vmatpush.bf16.msra.mxu0 0
  %175 = vmatpush.bf16.msra.mxu0 0
  %176 = vmatpush.bf16.msra.mxu0 0
  %177 = vmatpush.bf16.msra.mxu0 0
  %178 = vmatpush.bf16.msra.mxu0 0
  %179 = vmatpush.bf16.msra.mxu0 0
  %180 = vmatpush.bf16.msra.mxu0 0
  %181 = vmatpush.bf16.msra.mxu0 %v158
  %182 = vmatmul.bf16.gmra.mxu0 %v152
  %v183 = vpop.f32.mrf.mxu0
  %v184 = vadd.f32 0.0, %v183
  %v185 = vpop.f32.mrf.mxu0
  %v186 = vadd.f32 0.0, %v185
  %187 = vdwg.mxu0
  %v188 = vadd.f32 %v119, %v170
  %v189 = vadd.f32 %v133, %v184
  %v190 = vadd.f32 %v121, %v172
  %v191 = vadd.f32 %v135, %v186
  %s192 = scalar_lea.vmem %s2, 24
  %v193 = vld [vmem:[%s192] sm:$0xf]
  %v194 = vld [vmem:[%s192 + $0x4] sm:$0xf]
  %v197 = vunpack.c.l.b16 %v193
  %v198 = vunpack.c.l.b16 %v194
  %v199 = vpack.c.b16 %v198, %v197
  %200 = vrot.lane.b32.xlu0 %v48, 118
  %v201 = vpop.permute.xlu0 %200
  %202 = vrot.lane.b32.xlu0 %v49, 118
  %v203 = vpop.permute.xlu0 %202
  %vm204 = vcmask 965632
  %v205 = vsel %vm204, %v201, %v203
  %v207 = vsel %vm56, %v199, 0
  %v210 = vsel %vm60, %v205, 0
  %v213 = vsel %vm60, %v203, 0
  %215 = vmatpush.bf16.msra.mxu0 0
  %216 = vmatpush.bf16.msra.mxu0 0
  %217 = vmatpush.bf16.msra.mxu0 0
  %218 = vmatpush.bf16.msra.mxu0 0
  %219 = vmatpush.bf16.msra.mxu0 0
  %220 = vmatpush.bf16.msra.mxu0 0
  %221 = vmatpush.bf16.msra.mxu0 0
  %222 = vmatpush.bf16.msra.mxu0 %v210
  %223 = vmatmul.bf16.gmra.mxu0 %v207
  %v224 = vpop.f32.mrf.mxu0
  %v225 = vadd.f32 0.0, %v224
  %v226 = vpop.f32.mrf.mxu0
  %v227 = vadd.f32 0.0, %v226
  %228 = vdwg.mxu0
  %229 = vmatpush.bf16.msra.mxu0 0
  %230 = vmatpush.bf16.msra.mxu0 0
  %231 = vmatpush.bf16.msra.mxu0 0
  %232 = vmatpush.bf16.msra.mxu0 0
  %233 = vmatpush.bf16.msra.mxu0 0
  %234 = vmatpush.bf16.msra.mxu0 0
  %235 = vmatpush.bf16.msra.mxu0 0
  %236 = vmatpush.bf16.msra.mxu0 %v213
  %237 = vmatmul.bf16.gmra.mxu0 %v207
  %v238 = vpop.f32.mrf.mxu0
  %v239 = vadd.f32 0.0, %v238
  %v240 = vpop.f32.mrf.mxu0
  %v241 = vadd.f32 0.0, %v240
  %242 = vdwg.mxu0
  %v243 = vadd.f32 %v188, %v225
  %v244 = vadd.f32 %v189, %v239
  %v245 = vadd.f32 %v190, %v227
  %v246 = vadd.f32 %v191, %v241
  %s247 = scalar_lea.vmem %s2, 32
  %v248 = vld [vmem:[%s247] sm:$0xf]
  %v249 = vld [vmem:[%s247 + $0x4] sm:$0xf]
  %v252 = vunpack.c.l.b16 %v248
  %v253 = vunpack.c.l.b16 %v249
  %v254 = vpack.c.b16 %v253, %v252
  %255 = vrot.lane.b32.xlu0 %v48, 117
  %v256 = vpop.permute.xlu0 %255
  %257 = vrot.lane.b32.xlu0 %v49, 117
  %v258 = vpop.permute.xlu0 %257
  %vm259 = vcmask 957440
  %v260 = vsel %vm259, %v256, %v258
  %v262 = vsel %vm56, %v254, 0
  %v265 = vsel %vm60, %v260, 0
  %v268 = vsel %vm60, %v258, 0
  %270 = vmatpush.bf16.msra.mxu0 0
  %271 = vmatpush.bf16.msra.mxu0 0
  %272 = vmatpush.bf16.msra.mxu0 0
  %273 = vmatpush.bf16.msra.mxu0 0
  %274 = vmatpush.bf16.msra.mxu0 0
  %275 = vmatpush.bf16.msra.mxu0 0
  %276 = vmatpush.bf16.msra.mxu0 0
  %277 = vmatpush.bf16.msra.mxu0 %v265
  %278 = vmatmul.bf16.gmra.mxu0 %v262
  %v279 = vpop.f32.mrf.mxu0
  %v280 = vadd.f32 0.0, %v279
  %v281 = vpop.f32.mrf.mxu0
  %v282 = vadd.f32 0.0, %v281
  %283 = vdwg.mxu0
  %284 = vmatpush.bf16.msra.mxu0 0
  %285 = vmatpush.bf16.msra.mxu0 0
  %286 = vmatpush.bf16.msra.mxu0 0
  %287 = vmatpush.bf16.msra.mxu0 0
  %288 = vmatpush.bf16.msra.mxu0 0
  %289 = vmatpush.bf16.msra.mxu0 0
  %290 = vmatpush.bf16.msra.mxu0 0
  %291 = vmatpush.bf16.msra.mxu0 %v268
  %292 = vmatmul.bf16.gmra.mxu0 %v262
  %v293 = vpop.f32.mrf.mxu0
  %v294 = vadd.f32 0.0, %v293
  %v295 = vpop.f32.mrf.mxu0
  %v296 = vadd.f32 0.0, %v295
  %297 = vdwg.mxu0
  %v298 = vadd.f32 %v243, %v280
  %v299 = vadd.f32 %v244, %v294
  %v300 = vadd.f32 %v245, %v282
  %v301 = vadd.f32 %v246, %v296
  %s302 = scalar_lea.vmem %s2, 40
  %v303 = vld [vmem:[%s302] sm:$0xf]
  %v304 = vld [vmem:[%s302 + $0x4] sm:$0xf]
  %v307 = vunpack.c.l.b16 %v303
  %v308 = vunpack.c.l.b16 %v304
  %v309 = vpack.c.b16 %v308, %v307
  %310 = vrot.lane.b32.xlu0 %v48, 116
  %v311 = vpop.permute.xlu0 %310
  %312 = vrot.lane.b32.xlu0 %v49, 116
  %v313 = vpop.permute.xlu0 %312
  %vm314 = vcmask 949248
  %v315 = vsel %vm314, %v311, %v313
  %v317 = vsel %vm56, %v309, 0
  %v320 = vsel %vm60, %v315, 0
  %v323 = vsel %vm60, %v313, 0
  %325 = vmatpush.bf16.msra.mxu0 0
  %326 = vmatpush.bf16.msra.mxu0 0
  %327 = vmatpush.bf16.msra.mxu0 0
  %328 = vmatpush.bf16.msra.mxu0 0
  %329 = vmatpush.bf16.msra.mxu0 0
  %330 = vmatpush.bf16.msra.mxu0 0
  %331 = vmatpush.bf16.msra.mxu0 0
  %332 = vmatpush.bf16.msra.mxu0 %v320
  %333 = vmatmul.bf16.gmra.mxu0 %v317
  %v334 = vpop.f32.mrf.mxu0
  %v335 = vadd.f32 0.0, %v334
  %v336 = vpop.f32.mrf.mxu0
  %v337 = vadd.f32 0.0, %v336
  %338 = vdwg.mxu0
  %339 = vmatpush.bf16.msra.mxu0 0
  %340 = vmatpush.bf16.msra.mxu0 0
  %341 = vmatpush.bf16.msra.mxu0 0
  %342 = vmatpush.bf16.msra.mxu0 0
  %343 = vmatpush.bf16.msra.mxu0 0
  %344 = vmatpush.bf16.msra.mxu0 0
  %345 = vmatpush.bf16.msra.mxu0 0
  %346 = vmatpush.bf16.msra.mxu0 %v323
  %347 = vmatmul.bf16.gmra.mxu0 %v317
  %v348 = vpop.f32.mrf.mxu0
  %v349 = vadd.f32 0.0, %v348
  %v350 = vpop.f32.mrf.mxu0
  %v351 = vadd.f32 0.0, %v350
  %352 = vdwg.mxu0
  %v353 = vadd.f32 %v298, %v335
  %v354 = vadd.f32 %v299, %v349
  %v355 = vadd.f32 %v300, %v337
  %v356 = vadd.f32 %v301, %v351
  %s357 = scalar_lea.vmem %s2, 48
  %v358 = vld [vmem:[%s357] sm:$0xf]
  %v359 = vld [vmem:[%s357 + $0x4] sm:$0xf]
  %v362 = vunpack.c.l.b16 %v358
  %v363 = vunpack.c.l.b16 %v359
  %v364 = vpack.c.b16 %v363, %v362
  %365 = vrot.lane.b32.xlu0 %v48, 108
  %v366 = vpop.permute.xlu0 %365
  %367 = vrot.lane.b32.xlu0 %v49, 108
  %v368 = vpop.permute.xlu0 %367
  %vm369 = vcmask 883712
  %v370 = vsel %vm369, %v366, %v368
  %v372 = vsel %vm56, %v364, 0
  %v375 = vsel %vm60, %v370, 0
  %v378 = vsel %vm60, %v368, 0
  %380 = vmatpush.bf16.msra.mxu0 0
  %381 = vmatpush.bf16.msra.mxu0 0
  %382 = vmatpush.bf16.msra.mxu0 0
  %383 = vmatpush.bf16.msra.mxu0 0
  %384 = vmatpush.bf16.msra.mxu0 0
  %385 = vmatpush.bf16.msra.mxu0 0
  %386 = vmatpush.bf16.msra.mxu0 0
  %387 = vmatpush.bf16.msra.mxu0 %v375
  %388 = vmatmul.bf16.gmra.mxu0 %v372
  %v389 = vpop.f32.mrf.mxu0
  %v390 = vadd.f32 0.0, %v389
  %v391 = vpop.f32.mrf.mxu0
  %v392 = vadd.f32 0.0, %v391
  %393 = vdwg.mxu0
  %394 = vmatpush.bf16.msra.mxu0 0
  %395 = vmatpush.bf16.msra.mxu0 0
  %396 = vmatpush.bf16.msra.mxu0 0
  %397 = vmatpush.bf16.msra.mxu0 0
  %398 = vmatpush.bf16.msra.mxu0 0
  %399 = vmatpush.bf16.msra.mxu0 0
  %400 = vmatpush.bf16.msra.mxu0 0
  %401 = vmatpush.bf16.msra.mxu0 %v378
  %402 = vmatmul.bf16.gmra.mxu0 %v372
  %v403 = vpop.f32.mrf.mxu0
  %v404 = vadd.f32 0.0, %v403
  %v405 = vpop.f32.mrf.mxu0
  %v406 = vadd.f32 0.0, %v405
  %407 = vdwg.mxu0
  %v408 = vadd.f32 %v353, %v390
  %v409 = vadd.f32 %v354, %v404
  %v410 = vadd.f32 %v355, %v392
  %v411 = vadd.f32 %v356, %v406
  %s412 = scalar_lea.vmem %s2, 56
  %v413 = vld [vmem:[%s412] sm:$0xf]
  %v414 = vld [vmem:[%s412 + $0x4] sm:$0xf]
  %v417 = vunpack.c.l.b16 %v413
  %v418 = vunpack.c.l.b16 %v414
  %v419 = vpack.c.b16 %v418, %v417
  %420 = vrot.lane.b32.xlu0 %v48, 107
  %v421 = vpop.permute.xlu0 %420
  %422 = vrot.lane.b32.xlu0 %v49, 107
  %v423 = vpop.permute.xlu0 %422
  %vm424 = vcmask 875520
  %v425 = vsel %vm424, %v421, %v423
  %v427 = vsel %vm56, %v419, 0
  %v430 = vsel %vm60, %v425, 0
  %v433 = vsel %vm60, %v423, 0
  %435 = vmatpush.bf16.msra.mxu0 0
  %436 = vmatpush.bf16.msra.mxu0 0
  %437 = vmatpush.bf16.msra.mxu0 0
  %438 = vmatpush.bf16.msra.mxu0 0
  %439 = vmatpush.bf16.msra.mxu0 0
  %440 = vmatpush.bf16.msra.mxu0 0
  %441 = vmatpush.bf16.msra.mxu0 0
  %442 = vmatpush.bf16.msra.mxu0 %v430
  %443 = vmatmul.bf16.gmra.mxu0 %v427
  %v444 = vpop.f32.mrf.mxu0
  %v445 = vadd.f32 0.0, %v444
  %v446 = vpop.f32.mrf.mxu0
  %v447 = vadd.f32 0.0, %v446
  %448 = vdwg.mxu0
  %449 = vmatpush.bf16.msra.mxu0 0
  %450 = vmatpush.bf16.msra.mxu0 0
  %451 = vmatpush.bf16.msra.mxu0 0
  %452 = vmatpush.bf16.msra.mxu0 0
  %453 = vmatpush.bf16.msra.mxu0 0
  %454 = vmatpush.bf16.msra.mxu0 0
  %455 = vmatpush.bf16.msra.mxu0 0
  %456 = vmatpush.bf16.msra.mxu0 %v433
  %457 = vmatmul.bf16.gmra.mxu0 %v427
  %v458 = vpop.f32.mrf.mxu0
  %v459 = vadd.f32 0.0, %v458
  %v460 = vpop.f32.mrf.mxu0
  %v461 = vadd.f32 0.0, %v460
  %462 = vdwg.mxu0
  %v463 = vadd.f32 %v408, %v445
  %v464 = vadd.f32 %v409, %v459
  %v465 = vadd.f32 %v410, %v447
  %v466 = vadd.f32 %v411, %v461
  %s467 = scalar_lea.vmem %s2, 64
  %v468 = vld [vmem:[%s467] sm:$0xf]
  %v469 = vld [vmem:[%s467 + $0x4] sm:$0xf]
  %v472 = vunpack.c.l.b16 %v468
  %v473 = vunpack.c.l.b16 %v469
  %v474 = vpack.c.b16 %v473, %v472
  %475 = vrot.lane.b32.xlu0 %v48, 106
  %v476 = vpop.permute.xlu0 %475
  %477 = vrot.lane.b32.xlu0 %v49, 106
  %v478 = vpop.permute.xlu0 %477
  %vm479 = vcmask 867328
  %v480 = vsel %vm479, %v476, %v478
  %v482 = vsel %vm56, %v474, 0
  %v485 = vsel %vm60, %v480, 0
  %v488 = vsel %vm60, %v478, 0
  %490 = vmatpush.bf16.msra.mxu0 0
  %491 = vmatpush.bf16.msra.mxu0 0
  %492 = vmatpush.bf16.msra.mxu0 0
  %493 = vmatpush.bf16.msra.mxu0 0
  %494 = vmatpush.bf16.msra.mxu0 0
  %495 = vmatpush.bf16.msra.mxu0 0
  %496 = vmatpush.bf16.msra.mxu0 0
  %497 = vmatpush.bf16.msra.mxu0 %v485
  %498 = vmatmul.bf16.gmra.mxu0 %v482
  %v499 = vpop.f32.mrf.mxu0
  %v500 = vadd.f32 0.0, %v499
  %v501 = vpop.f32.mrf.mxu0
  %v502 = vadd.f32 0.0, %v501
  %503 = vdwg.mxu0
  %504 = vmatpush.bf16.msra.mxu0 0
  %505 = vmatpush.bf16.msra.mxu0 0
  %506 = vmatpush.bf16.msra.mxu0 0
  %507 = vmatpush.bf16.msra.mxu0 0
  %508 = vmatpush.bf16.msra.mxu0 0
  %509 = vmatpush.bf16.msra.mxu0 0
  %510 = vmatpush.bf16.msra.mxu0 0
  %511 = vmatpush.bf16.msra.mxu0 %v488
  %512 = vmatmul.bf16.gmra.mxu0 %v482
  %v513 = vpop.f32.mrf.mxu0
  %v514 = vadd.f32 0.0, %v513
  %v515 = vpop.f32.mrf.mxu0
  %v516 = vadd.f32 0.0, %v515
  %517 = vdwg.mxu0
  %v518 = vadd.f32 %v463, %v500
  %v519 = vadd.f32 %v464, %v514
  %v520 = vadd.f32 %v465, %v502
  %v521 = vadd.f32 %v466, %v516
  %v522 = vld [vmem:[%s4] sm:$0xff]
  %v523 = vld [vmem:[%s4 + $0x8] sm:$0xff]
  %525 = vset.pattern.permute.xlu0 0
  %526 = vperm.xlu0 %525, %v522
  %v527 = vpop.permute.xlu0 %526
  %530 = vset.pattern.permute.xlu0 0
  %531 = vperm.xlu0 %530, %v523
  %v532 = vpop.permute.xlu0 %531
  %v534 = vmul.f32 %v518, %v527
  %v535 = vmul.f32 %v519, %v527
  %v536 = vmul.f32 %v520, %v532
  %v537 = vmul.f32 %v521, %v532
  %v538 = vld [vmem:[%s5] sm:$0xff]
  %v539 = vld [vmem:[%s5 + $0x8] sm:$0xff]
  %541 = vset.pattern.permute.xlu0 0
  %542 = vperm.xlu0 %541, %v538
  %v543 = vpop.permute.xlu0 %542
  %546 = vset.pattern.permute.xlu0 0
  %547 = vperm.xlu0 %546, %v539
  %v548 = vpop.permute.xlu0 %547
  %v550 = vadd.f32 %v534, %v543
  %v551 = vadd.f32 %v535, %v543
  %v552 = vadd.f32 %v536, %v548
  %v553 = vadd.f32 %v537, %v548
  %v554 = vmax.f32 %v550, 0.0
  %v555 = vmax.f32 %v551, 0.0
  %v556 = vmax.f32 %v552, 0.0
  %v557 = vmax.f32 %v553, 0.0
  %v559 = vperm.slane %v33, 0
  %v560 = vperm.slane %v33, 1
  %561 = vrot.lane.b32.xlu0 %v559, 117
  %v562 = vpop.permute.xlu0 %561
  %563 = vrot.lane.b32.xlu0 %v560, 117
  %v564 = vpop.permute.xlu0 %563
  %vm565 = vcmask 957440
  %v566 = vsel %vm565, %v562, %v564
  %v569 = vmul.f32 %v554, %v566
  %v570 = vmul.f32 %v555, %v564
  %v571 = vmul.f32 %v556, %v566
  %v572 = vmul.f32 %v557, %v564
  %vm573 = vcmask 769028
  %vm574 = vmor %vm573, %vm60
  %575 = vst.msk [vmem:[#allocation2] sm:$0xff] %vm574, 0
  %576 = vst.msk [vmem:[#allocation2 + $0x8] sm:$0xff] %vm574, 0
  %v577 = vpack.c.bf16 %v570, %v569
  %v578 = vpack.c.bf16 %v572, %v571
  %581 = vrot.lane.b32.xlu0 %v577, 11
  %v582 = vpop.permute.xlu0 %581
  %583 = vrot.lane.b32.xlu0 %v578, 11
  %v584 = vpop.permute.xlu0 %583
  %v585 = vrot.slane %v582, 4
  %v586 = vrot.slane %v584, 4
  %vm587 = vcmask 89088
  %v588 = vsel %vm587, %v585, %v582
  %v589 = vsel %vm587, %v586, %v584
  %vm592 = vcmask 1043544
  %vm593 = vcmask 678916
  %vm594 = vmor %vm593, %vm592
  %595 = vst.msk [vmem:[#allocation2] sm:$0xff] %vm594, %v588
  %596 = vst.msk [vmem:[#allocation2 + $0x8] sm:$0xff] %vm594, %v589
  %v597 = vld [vmem:[%s3] sm:$0xf]
  %v598 = vld [vmem:[%s3 + $0x4] sm:$0xf]
  %v599 = vld [vmem:[#allocation2] sm:$0xff]
  %v600 = vld [vmem:[#allocation2 + $0x8] sm:$0xff]
  %s601 = scalar_lea.vmem %s3, 8
  %v602 = vld [vmem:[%s601] sm:$0xf]
  %v603 = vld [vmem:[%s601 + $0x4] sm:$0xf]
  %v606 = vunpack.c.l.b16 %v602
  %v607 = vunpack.c.l.b16 %v603
  %v608 = vpack.c.b16 %v607, %v606
  %v611 = vunpack.c.l.b16 %v599
  %v612 = vunpack.c.h.b16 %v599
  %v613 = vunpack.c.l.b16 %v600
  %v614 = vunpack.c.h.b16 %v600
  %v615 = vpack.c.b16 %v613, %v611
  %v616 = vpack.c.b16 %v614, %v612
  %617 = vrot.lane.b32.xlu0 %v615, 127
  %v618 = vpop.permute.xlu0 %617
  %619 = vrot.lane.b32.xlu0 %v616, 127
  %v620 = vpop.permute.xlu0 %619
  %v621 = vsel %vm54, %v618, %v620
  %vm624 = vcmask 130048
  %v626 = vsel %vm624, %v608, 0
  %628 = vmatpush.bf16.msra.mxu0 0
  %629 = vmatpush.bf16.msra.mxu0 0
  %630 = vmatpush.bf16.msra.mxu0 0
  %631 = vmatpush.bf16.msra.mxu0 0
  %632 = vmatpush.bf16.msra.mxu0 0
  %633 = vmatpush.bf16.msra.mxu0 0
  %634 = vmatpush.bf16.msra.mxu0 0
  %635 = vmatpush.bf16.msra.mxu0 %v621
  %636 = vmatmul.bf16.gmra.mxu0 %v626
  %v637 = vpop.f32.mrf.mxu0
  %v638 = vadd.f32 0.0, %v637
  %v639 = vpop.f32.mrf.mxu0
  %v640 = vadd.f32 0.0, %v639
  %641 = vdwg.mxu0
  %642 = vmatpush.bf16.msra.mxu0 0
  %643 = vmatpush.bf16.msra.mxu0 0
  %644 = vmatpush.bf16.msra.mxu0 0
  %645 = vmatpush.bf16.msra.mxu0 0
  %646 = vmatpush.bf16.msra.mxu0 0
  %647 = vmatpush.bf16.msra.mxu0 0
  %648 = vmatpush.bf16.msra.mxu0 0
  %649 = vmatpush.bf16.msra.mxu0 %v620
  %650 = vmatmul.bf16.gmra.mxu0 %v626
  %v651 = vpop.f32.mrf.mxu0
  %v652 = vadd.f32 0.0, %v651
  %v653 = vpop.f32.mrf.mxu0
  %v654 = vadd.f32 0.0, %v653
  %655 = vdwg.mxu0
  %v658 = vunpack.c.l.b16 %v597
  %v659 = vunpack.c.l.b16 %v598
  %v660 = vpack.c.b16 %v659, %v658
  %v664 = vsel %vm624, %v660, 0
  %666 = vmatpush.bf16.msra.mxu0 0
  %667 = vmatpush.bf16.msra.mxu0 0
  %668 = vmatpush.bf16.msra.mxu0 0
  %669 = vmatpush.bf16.msra.mxu0 0
  %670 = vmatpush.bf16.msra.mxu0 0
  %671 = vmatpush.bf16.msra.mxu0 0
  %672 = vmatpush.bf16.msra.mxu0 0
  %673 = vmatpush.bf16.msra.mxu0 %v615
  %674 = vmatmul.bf16.gmra.mxu0 %v664
  %v675 = vpop.f32.mrf.mxu0
  %v676 = vadd.f32 %v638, %v675
  %v677 = vpop.f32.mrf.mxu0
  %v678 = vadd.f32 %v640, %v677
  %679 = vdwg.mxu0
  %680 = vmatpush.bf16.msra.mxu0 0
  %681 = vmatpush.bf16.msra.mxu0 0
  %682 = vmatpush.bf16.msra.mxu0 0
  %683 = vmatpush.bf16.msra.mxu0 0
  %684 = vmatpush.bf16.msra.mxu0 0
  %685 = vmatpush.bf16.msra.mxu0 0
  %686 = vmatpush.bf16.msra.mxu0 0
  %687 = vmatpush.bf16.msra.mxu0 %v616
  %688 = vmatmul.bf16.gmra.mxu0 %v664
  %v689 = vpop.f32.mrf.mxu0
  %v690 = vadd.f32 %v652, %v689
  %v691 = vpop.f32.mrf.mxu0
  %v692 = vadd.f32 %v654, %v691
  %693 = vdwg.mxu0
  %s694 = scalar_lea.vmem %s3, 16
  %v695 = vld [vmem:[%s694] sm:$0xf]
  %v696 = vld [vmem:[%s694 + $0x4] sm:$0xf]
  %v699 = vunpack.c.l.b16 %v695
  %v700 = vunpack.c.l.b16 %v696
  %v701 = vpack.c.b16 %v700, %v699
  %702 = vrot.lane.b32.xlu0 %v615, 126
  %v703 = vpop.permute.xlu0 %702
  %704 = vrot.lane.b32.xlu0 %v616, 126
  %v705 = vpop.permute.xlu0 %704
  %v706 = vsel %vm149, %v703, %v705
  %v710 = vsel %vm624, %v701, 0
  %712 = vmatpush.bf16.msra.mxu0 0
  %713 = vmatpush.bf16.msra.mxu0 0
  %714 = vmatpush.bf16.msra.mxu0 0
  %715 = vmatpush.bf16.msra.mxu0 0
  %716 = vmatpush.bf16.msra.mxu0 0
  %717 = vmatpush.bf16.msra.mxu0 0
  %718 = vmatpush.bf16.msra.mxu0 0
  %719 = vmatpush.bf16.msra.mxu0 %v706
  %720 = vmatmul.bf16.gmra.mxu0 %v710
  %v721 = vpop.f32.mrf.mxu0
  %v722 = vadd.f32 0.0, %v721
  %v723 = vpop.f32.mrf.mxu0
  %v724 = vadd.f32 0.0, %v723
  %725 = vdwg.mxu0
  %726 = vmatpush.bf16.msra.mxu0 0
  %727 = vmatpush.bf16.msra.mxu0 0
  %728 = vmatpush.bf16.msra.mxu0 0
  %729 = vmatpush.bf16.msra.mxu0 0
  %730 = vmatpush.bf16.msra.mxu0 0
  %731 = vmatpush.bf16.msra.mxu0 0
  %732 = vmatpush.bf16.msra.mxu0 0
  %733 = vmatpush.bf16.msra.mxu0 %v705
  %734 = vmatmul.bf16.gmra.mxu0 %v710
  %v735 = vpop.f32.mrf.mxu0
  %v736 = vadd.f32 0.0, %v735
  %v737 = vpop.f32.mrf.mxu0
  %v738 = vadd.f32 0.0, %v737
  %739 = vdwg.mxu0
  %v740 = vadd.f32 %v676, %v722
  %v741 = vadd.f32 %v690, %v736
  %v742 = vadd.f32 %v678, %v724
  %v743 = vadd.f32 %v692, %v738
  %s744 = scalar_lea.vmem %s3, 24
  %v745 = vld [vmem:[%s744] sm:$0xf]
  %v746 = vld [vmem:[%s744 + $0x4] sm:$0xf]
  %v749 = vunpack.c.l.b16 %v745
  %v750 = vunpack.c.l.b16 %v746
  %v751 = vpack.c.b16 %v750, %v749
  %752 = vrot.lane.b32.xlu0 %v615, 118
  %v753 = vpop.permute.xlu0 %752
  %754 = vrot.lane.b32.xlu0 %v616, 118
  %v755 = vpop.permute.xlu0 %754
  %v756 = vsel %vm204, %v753, %v755
  %v760 = vsel %vm624, %v751, 0
  %762 = vmatpush.bf16.msra.mxu0 0
  %763 = vmatpush.bf16.msra.mxu0 0
  %764 = vmatpush.bf16.msra.mxu0 0
  %765 = vmatpush.bf16.msra.mxu0 0
  %766 = vmatpush.bf16.msra.mxu0 0
  %767 = vmatpush.bf16.msra.mxu0 0
  %768 = vmatpush.bf16.msra.mxu0 0
  %769 = vmatpush.bf16.msra.mxu0 %v756
  %770 = vmatmul.bf16.gmra.mxu0 %v760
  %v771 = vpop.f32.mrf.mxu0
  %v772 = vadd.f32 0.0, %v771
  %v773 = vpop.f32.mrf.mxu0
  %v774 = vadd.f32 0.0, %v773
  %775 = vdwg.mxu0
  %776 = vmatpush.bf16.msra.mxu0 0
  %777 = vmatpush.bf16.msra.mxu0 0
  %778 = vmatpush.bf16.msra.mxu0 0
  %779 = vmatpush.bf16.msra.mxu0 0
  %780 = vmatpush.bf16.msra.mxu0 0
  %781 = vmatpush.bf16.msra.mxu0 0
  %782 = vmatpush.bf16.msra.mxu0 0
  %783 = vmatpush.bf16.msra.mxu0 %v755
  %784 = vmatmul.bf16.gmra.mxu0 %v760
  %v785 = vpop.f32.mrf.mxu0
  %v786 = vadd.f32 0.0, %v785
  %v787 = vpop.f32.mrf.mxu0
  %v788 = vadd.f32 0.0, %v787
  %789 = vdwg.mxu0
  %v790 = vadd.f32 %v740, %v772
  %v791 = vadd.f32 %v741, %v786
  %v792 = vadd.f32 %v742, %v774
  %v793 = vadd.f32 %v743, %v788
  %s794 = scalar_lea.vmem %s3, 32
  %v795 = vld [vmem:[%s794] sm:$0xf]
  %v796 = vld [vmem:[%s794 + $0x4] sm:$0xf]
  %v799 = vunpack.c.l.b16 %v795
  %v800 = vunpack.c.l.b16 %v796
  %v801 = vpack.c.b16 %v800, %v799
  %802 = vrot.lane.b32.xlu0 %v615, 117
  %v803 = vpop.permute.xlu0 %802
  %804 = vrot.lane.b32.xlu0 %v616, 117
  %v805 = vpop.permute.xlu0 %804
  %v806 = vsel %vm259, %v803, %v805
  %v810 = vsel %vm624, %v801, 0
  %812 = vmatpush.bf16.msra.mxu0 0
  %813 = vmatpush.bf16.msra.mxu0 0
  %814 = vmatpush.bf16.msra.mxu0 0
  %815 = vmatpush.bf16.msra.mxu0 0
  %816 = vmatpush.bf16.msra.mxu0 0
  %817 = vmatpush.bf16.msra.mxu0 0
  %818 = vmatpush.bf16.msra.mxu0 0
  %819 = vmatpush.bf16.msra.mxu0 %v806
  %820 = vmatmul.bf16.gmra.mxu0 %v810
  %v821 = vpop.f32.mrf.mxu0
  %v822 = vadd.f32 0.0, %v821
  %v823 = vpop.f32.mrf.mxu0
  %v824 = vadd.f32 0.0, %v823
  %825 = vdwg.mxu0
  %826 = vmatpush.bf16.msra.mxu0 0
  %827 = vmatpush.bf16.msra.mxu0 0
  %828 = vmatpush.bf16.msra.mxu0 0
  %829 = vmatpush.bf16.msra.mxu0 0
  %830 = vmatpush.bf16.msra.mxu0 0
  %831 = vmatpush.bf16.msra.mxu0 0
  %832 = vmatpush.bf16.msra.mxu0 0
  %833 = vmatpush.bf16.msra.mxu0 %v805
  %834 = vmatmul.bf16.gmra.mxu0 %v810
  %v835 = vpop.f32.mrf.mxu0
  %v836 = vadd.f32 0.0, %v835
  %v837 = vpop.f32.mrf.mxu0
  %v838 = vadd.f32 0.0, %v837
  %839 = vdwg.mxu0
  %v840 = vadd.f32 %v790, %v822
  %v841 = vadd.f32 %v791, %v836
  %v842 = vadd.f32 %v792, %v824
  %v843 = vadd.f32 %v793, %v838
  %s844 = scalar_lea.vmem %s3, 40
  %v845 = vld [vmem:[%s844] sm:$0xf]
  %v846 = vld [vmem:[%s844 + $0x4] sm:$0xf]
  %v849 = vunpack.c.l.b16 %v845
  %v850 = vunpack.c.l.b16 %v846
  %v851 = vpack.c.b16 %v850, %v849
  %852 = vrot.lane.b32.xlu0 %v615, 116
  %v853 = vpop.permute.xlu0 %852
  %854 = vrot.lane.b32.xlu0 %v616, 116
  %v855 = vpop.permute.xlu0 %854
  %v856 = vsel %vm314, %v853, %v855
  %v860 = vsel %vm624, %v851, 0
  %862 = vmatpush.bf16.msra.mxu0 0
  %863 = vmatpush.bf16.msra.mxu0 0
  %864 = vmatpush.bf16.msra.mxu0 0
  %865 = vmatpush.bf16.msra.mxu0 0
  %866 = vmatpush.bf16.msra.mxu0 0
  %867 = vmatpush.bf16.msra.mxu0 0
  %868 = vmatpush.bf16.msra.mxu0 0
  %869 = vmatpush.bf16.msra.mxu0 %v856
  %870 = vmatmul.bf16.gmra.mxu0 %v860
  %v871 = vpop.f32.mrf.mxu0
  %v872 = vadd.f32 0.0, %v871
  %v873 = vpop.f32.mrf.mxu0
  %v874 = vadd.f32 0.0, %v873
  %875 = vdwg.mxu0
  %876 = vmatpush.bf16.msra.mxu0 0
  %877 = vmatpush.bf16.msra.mxu0 0
  %878 = vmatpush.bf16.msra.mxu0 0
  %879 = vmatpush.bf16.msra.mxu0 0
  %880 = vmatpush.bf16.msra.mxu0 0
  %881 = vmatpush.bf16.msra.mxu0 0
  %882 = vmatpush.bf16.msra.mxu0 0
  %883 = vmatpush.bf16.msra.mxu0 %v855
  %884 = vmatmul.bf16.gmra.mxu0 %v860
  %v885 = vpop.f32.mrf.mxu0
  %v886 = vadd.f32 0.0, %v885
  %v887 = vpop.f32.mrf.mxu0
  %v888 = vadd.f32 0.0, %v887
  %889 = vdwg.mxu0
  %v890 = vadd.f32 %v840, %v872
  %v891 = vadd.f32 %v841, %v886
  %v892 = vadd.f32 %v842, %v874
  %v893 = vadd.f32 %v843, %v888
  %s894 = scalar_lea.vmem %s3, 48
  %v895 = vld [vmem:[%s894] sm:$0xf]
  %v896 = vld [vmem:[%s894 + $0x4] sm:$0xf]
  %v899 = vunpack.c.l.b16 %v895
  %v900 = vunpack.c.l.b16 %v896
  %v901 = vpack.c.b16 %v900, %v899
  %902 = vrot.lane.b32.xlu0 %v615, 108
  %v903 = vpop.permute.xlu0 %902
  %904 = vrot.lane.b32.xlu0 %v616, 108
  %v905 = vpop.permute.xlu0 %904
  %v906 = vsel %vm369, %v903, %v905
  %v910 = vsel %vm624, %v901, 0
  %912 = vmatpush.bf16.msra.mxu0 0
  %913 = vmatpush.bf16.msra.mxu0 0
  %914 = vmatpush.bf16.msra.mxu0 0
  %915 = vmatpush.bf16.msra.mxu0 0
  %916 = vmatpush.bf16.msra.mxu0 0
  %917 = vmatpush.bf16.msra.mxu0 0
  %918 = vmatpush.bf16.msra.mxu0 0
  %919 = vmatpush.bf16.msra.mxu0 %v906
  %920 = vmatmul.bf16.gmra.mxu0 %v910
  %v921 = vpop.f32.mrf.mxu0
  %v922 = vadd.f32 0.0, %v921
  %v923 = vpop.f32.mrf.mxu0
  %v924 = vadd.f32 0.0, %v923
  %925 = vdwg.mxu0
  %926 = vmatpush.bf16.msra.mxu0 0
  %927 = vmatpush.bf16.msra.mxu0 0
  %928 = vmatpush.bf16.msra.mxu0 0
  %929 = vmatpush.bf16.msra.mxu0 0
  %930 = vmatpush.bf16.msra.mxu0 0
  %931 = vmatpush.bf16.msra.mxu0 0
  %932 = vmatpush.bf16.msra.mxu0 0
  %933 = vmatpush.bf16.msra.mxu0 %v905
  %934 = vmatmul.bf16.gmra.mxu0 %v910
  %v935 = vpop.f32.mrf.mxu0
  %v936 = vadd.f32 0.0, %v935
  %v937 = vpop.f32.mrf.mxu0
  %v938 = vadd.f32 0.0, %v937
  %939 = vdwg.mxu0
  %v940 = vadd.f32 %v890, %v922
  %v941 = vadd.f32 %v891, %v936
  %v942 = vadd.f32 %v892, %v924
  %v943 = vadd.f32 %v893, %v938
  %s944 = scalar_lea.vmem %s3, 56
  %v945 = vld [vmem:[%s944] sm:$0xf]
  %v946 = vld [vmem:[%s944 + $0x4] sm:$0xf]
  %v949 = vunpack.c.l.b16 %v945
  %v950 = vunpack.c.l.b16 %v946
  %v951 = vpack.c.b16 %v950, %v949
  %952 = vrot.lane.b32.xlu0 %v615, 107
  %v953 = vpop.permute.xlu0 %952
  %954 = vrot.lane.b32.xlu0 %v616, 107
  %v955 = vpop.permute.xlu0 %954
  %v956 = vsel %vm424, %v953, %v955
  %v960 = vsel %vm624, %v951, 0
  %962 = vmatpush.bf16.msra.mxu0 0
  %963 = vmatpush.bf16.msra.mxu0 0
  %964 = vmatpush.bf16.msra.mxu0 0
  %965 = vmatpush.bf16.msra.mxu0 0
  %966 = vmatpush.bf16.msra.mxu0 0
  %967 = vmatpush.bf16.msra.mxu0 0
  %968 = vmatpush.bf16.msra.mxu0 0
  %969 = vmatpush.bf16.msra.mxu0 %v956
  %970 = vmatmul.bf16.gmra.mxu0 %v960
  %v971 = vpop.f32.mrf.mxu0
  %v972 = vadd.f32 0.0, %v971
  %v973 = vpop.f32.mrf.mxu0
  %v974 = vadd.f32 0.0, %v973
  %975 = vdwg.mxu0
  %976 = vmatpush.bf16.msra.mxu0 0
  %977 = vmatpush.bf16.msra.mxu0 0
  %978 = vmatpush.bf16.msra.mxu0 0
  %979 = vmatpush.bf16.msra.mxu0 0
  %980 = vmatpush.bf16.msra.mxu0 0
  %981 = vmatpush.bf16.msra.mxu0 0
  %982 = vmatpush.bf16.msra.mxu0 0
  %983 = vmatpush.bf16.msra.mxu0 %v955
  %984 = vmatmul.bf16.gmra.mxu0 %v960
  %v985 = vpop.f32.mrf.mxu0
  %v986 = vadd.f32 0.0, %v985
  %v987 = vpop.f32.mrf.mxu0
  %v988 = vadd.f32 0.0, %v987
  %989 = vdwg.mxu0
  %v990 = vadd.f32 %v940, %v972
  %v991 = vadd.f32 %v941, %v986
  %v992 = vadd.f32 %v942, %v974
  %v993 = vadd.f32 %v943, %v988
  %s994 = scalar_lea.vmem %s3, 64
  %v995 = vld [vmem:[%s994] sm:$0xf]
  %v996 = vld [vmem:[%s994 + $0x4] sm:$0xf]
  %v999 = vunpack.c.l.b16 %v995
  %v1000 = vunpack.c.l.b16 %v996
  %v1001 = vpack.c.b16 %v1000, %v999
  %1002 = vrot.lane.b32.xlu0 %v615, 106
  %v1003 = vpop.permute.xlu0 %1002
  %1004 = vrot.lane.b32.xlu0 %v616, 106
  %v1005 = vpop.permute.xlu0 %1004
  %v1006 = vsel %vm479, %v1003, %v1005
  %v1010 = vsel %vm624, %v1001, 0
  %1012 = vmatpush.bf16.msra.mxu0 0
  %1013 = vmatpush.bf16.msra.mxu0 0
  %1014 = vmatpush.bf16.msra.mxu0 0
  %1015 = vmatpush.bf16.msra.mxu0 0
  %1016 = vmatpush.bf16.msra.mxu0 0
  %1017 = vmatpush.bf16.msra.mxu0 0
  %1018 = vmatpush.bf16.msra.mxu0 0
  %1019 = vmatpush.bf16.msra.mxu0 %v1006
  %1020 = vmatmul.bf16.gmra.mxu0 %v1010
  %v1021 = vpop.f32.mrf.mxu0
  %v1022 = vadd.f32 0.0, %v1021
  %v1023 = vpop.f32.mrf.mxu0
  %v1024 = vadd.f32 0.0, %v1023
  %1025 = vdwg.mxu0
  %1026 = vmatpush.bf16.msra.mxu0 0
  %1027 = vmatpush.bf16.msra.mxu0 0
  %1028 = vmatpush.bf16.msra.mxu0 0
  %1029 = vmatpush.bf16.msra.mxu0 0
  %1030 = vmatpush.bf16.msra.mxu0 0
  %1031 = vmatpush.bf16.msra.mxu0 0
  %1032 = vmatpush.bf16.msra.mxu0 0
  %1033 = vmatpush.bf16.msra.mxu0 %v1005
  %1034 = vmatmul.bf16.gmra.mxu0 %v1010
  %v1035 = vpop.f32.mrf.mxu0
  %v1036 = vadd.f32 0.0, %v1035
  %v1037 = vpop.f32.mrf.mxu0
  %v1038 = vadd.f32 0.0, %v1037
  %1039 = vdwg.mxu0
  %v1040 = vadd.f32 %v990, %v1022
  %v1041 = vadd.f32 %v991, %v1036
  %v1042 = vadd.f32 %v992, %v1024
  %v1043 = vadd.f32 %v993, %v1038
  %v1044 = vld [vmem:[%s8] sm:$0xf]
  %v1045 = vld [vmem:[%s8 + $0x4] sm:$0xf]
  %v1048 = vunpack.c.l.b16 %v1044
  %v1049 = vunpack.c.l.b16 %v1045
  %v1050 = vpack.c.b16 %v1049, %v1048
  %v1052 = vsel %vm56, %v1050, 0
  %1054 = vmatpush.bf16.msra.mxu0 0
  %1055 = vmatpush.bf16.msra.mxu0 0
  %1056 = vmatpush.bf16.msra.mxu0 0
  %1057 = vmatpush.bf16.msra.mxu0 0
  %1058 = vmatpush.bf16.msra.mxu0 0
  %1059 = vmatpush.bf16.msra.mxu0 0
  %1060 = vmatpush.bf16.msra.mxu0 0
  %1061 = vmatpush.bf16.msra.mxu0 %v265
  %1062 = vmatmul.bf16.gmra.mxu0 %v1052
  %v1063 = vpop.f32.mrf.mxu0
  %v1064 = vadd.f32 0.0, %v1063
  %v1065 = vpop.f32.mrf.mxu0
  %v1066 = vadd.f32 0.0, %v1065
  %1067 = vdwg.mxu0
  %1068 = vmatpush.bf16.msra.mxu0 0
  %1069 = vmatpush.bf16.msra.mxu0 0
  %1070 = vmatpush.bf16.msra.mxu0 0
  %1071 = vmatpush.bf16.msra.mxu0 0
  %1072 = vmatpush.bf16.msra.mxu0 0
  %1073 = vmatpush.bf16.msra.mxu0 0
  %1074 = vmatpush.bf16.msra.mxu0 0
  %1075 = vmatpush.bf16.msra.mxu0 %v268
  %1076 = vmatmul.bf16.gmra.mxu0 %v1052
  %v1077 = vpop.f32.mrf.mxu0
  %v1078 = vadd.f32 0.0, %v1077
  %v1079 = vpop.f32.mrf.mxu0
  %v1080 = vadd.f32 0.0, %v1079
  %1081 = vdwg.mxu0
  %v1082 = vld [vmem:[%s6] sm:$0xff]
  %v1083 = vld [vmem:[%s6 + $0x8] sm:$0xff]
  %1085 = vset.pattern.permute.xlu0 0
  %1086 = vperm.xlu0 %1085, %v1082
  %v1087 = vpop.permute.xlu0 %1086
  %1090 = vset.pattern.permute.xlu0 0
  %1091 = vperm.xlu0 %1090, %v1083
  %v1092 = vpop.permute.xlu0 %1091
  %v1094 = vmul.f32 %v1040, %v1087
  %v1095 = vmul.f32 %v1041, %v1087
  %v1096 = vmul.f32 %v1042, %v1092
  %v1097 = vmul.f32 %v1043, %v1092
  %v1098 = vld [vmem:[%s7] sm:$0xff]
  %v1099 = vld [vmem:[%s7 + $0x8] sm:$0xff]
  %1101 = vset.pattern.permute.xlu0 0
  %1102 = vperm.xlu0 %1101, %v1098
  %v1103 = vpop.permute.xlu0 %1102
  %1106 = vset.pattern.permute.xlu0 0
  %1107 = vperm.xlu0 %1106, %v1099
  %v1108 = vpop.permute.xlu0 %1107
  %v1110 = vadd.f32 %v1094, %v1103
  %v1111 = vadd.f32 %v1095, %v1103
  %v1112 = vadd.f32 %v1096, %v1108
  %v1113 = vadd.f32 %v1097, %v1108
  %v1114 = vadd.f32 %v1110, %v1064
  %v1115 = vadd.f32 %v1111, %v1078
  %v1116 = vadd.f32 %v1112, %v1066
  %v1117 = vadd.f32 %v1113, %v1080
  %v1118 = vmax.f32 %v1114, 0.0
  %v1119 = vmax.f32 %v1115, 0.0
  %v1120 = vmax.f32 %v1116, 0.0
  %v1121 = vmax.f32 %v1117, 0.0
  %v1122 = vmul.f32 %v1118, %v566
  %v1123 = vmul.f32 %v1119, %v564
  %v1124 = vmul.f32 %v1120, %v566
  %v1125 = vmul.f32 %v1121, %v564
  %v1126 = vpack.c.bf16 %v1123, %v1122
  %v1127 = vpack.c.bf16 %v1125, %v1124
  %vm1128 = vcmask 588804
  %vm1129 = vmor %vm1128, %vm60
  %1130 = vst.msk [vmem:[%s9] sm:$0xff] %vm1129, %v1126
  %1131 = vst.msk [vmem:[%s9 + $0x8] sm:$0xff] %vm1129, %v1127
  // Predicated region
  $region38: #{encoder_fwd.6} parent=0 // pred_check
    _
  $region39: #{encoder_fwd.6} parent=0 // pred_check_branch
    %1133 = sbr.rel (0) target = $region41
  $region40: #{encoder_fwd.6} parent=0 // pred_region
    _
  $region41: #{encoder_fwd.6} parent=0 // pred_fallthru
    _
  // Predicated region
  $region42: #{encoder_fwd.6} parent=0 // pred_check
    _
  $region43: #{encoder_fwd.6} parent=0 // pred_check_branch
    %1135 = sbr.rel (0) target = $region45
  $region44: #{encoder_fwd.6} parent=0 // pred_region
    _
  $region45: #{encoder_fwd.6} parent=0 // pred_fallthru
    _

</llo_original>
